<compile_context>
chip_gen: v5e
topology: v5e:2x2
jax: 0.10.0
libtpu: 0.0.40
codegen_flags: <defaults>
</compile_context>

<pallas_src>
import functools
import math

import jax
import jax.numpy as jnp
from jax.experimental import pallas as pl
from jax.experimental.pallas import tpu as pltpu


def _layer_norm(y, gamma, beta, eps=1e-5):
    mu = jnp.mean(y, axis=-1, keepdims=True)
    var = jnp.mean((y - mu) ** 2, axis=-1, keepdims=True)
    return (y - mu) * jax.lax.rsqrt(var + eps) * gamma + beta


def _encoder_kernel(
    xq_ref, xf_ref,
    wq_ref, bq_ref, wkv_ref, bkv_ref, wo_ref, bo_ref,
    w1_ref, b1_ref, w2_ref, b2_ref,
    g1_ref, be1_ref, g2_ref, be2_ref,
    out_ref,
    k_scr, v_scr, attn_scr,
    *, num_heads, s_real,
):
    """One (batch, query-tile) grid step.

    xq_ref : (1, TQ, D)    query tile (f32 residual / LayerNorm stream).
    xf_ref : (1, S_pad, D) full (padded) sequence, bf16, only read at qi == 0.
    k_scr / v_scr : (S_pad, D) bf16 VMEM scratch holding the K/V projections,
                    computed once per batch element and reused across qi.
    attn_scr : (TQ, D) bf16 scratch; each head's P@V is written into its
               column slice (only one head's (TQ, S) score matrix is live).
    """
    qi = pl.program_id(1)
    tq, d_model = xq_ref.shape[1], xq_ref.shape[2]
    s_pad = k_scr.shape[0]
    dh = d_model // num_heads
    scale = 1.0 / math.sqrt(dh)

    # ---- K/V projection: once per batch element, fused WK|WV matmul -------
    @pl.when(qi == 0)
    def _():
        kv = jnp.dot(xf_ref[0], wkv_ref[...],
                     preferred_element_type=jnp.float32) + bkv_ref[...]
        kv = kv.astype(jnp.bfloat16)            # (S_pad, 2*D)
        k_scr[...] = kv[:, :d_model]
        v_scr[...] = kv[:, d_model:]

    xq_f32 = xq_ref[0].astype(jnp.float32)      # residual / LN path
    q = (jnp.dot(xq_ref[0].astype(jnp.bfloat16), wq_ref[...],
                 preferred_element_type=jnp.float32)
         + bq_ref[...]).astype(jnp.bfloat16)    # (TQ, D)

    k = k_scr[...]
    v = v_scr[...]

    # Static key-padding mask (only present when S was padded in the wrapper).
    if s_real < s_pad:
        key_valid = jax.lax.broadcasted_iota(jnp.int32, (1, s_pad), 1) < s_real
    else:
        key_valid = None

    # TODO(synk): head-major (H, S, dh) layout + lax.fori_loop for H >= 8 to
    # avoid sub-128-lane slices / masked stores and bound vreg live ranges.
    for h in range(num_heads):
        lo = h * dh
        qh = q[:, lo:lo + dh]                   # (TQ, dh)
        kh = k[:, lo:lo + dh]                   # (S_pad, dh)
        vh = v[:, lo:lo + dh]                   # (S_pad, dh)
        s = jax.lax.dot_general(
            qh, kh, dimension_numbers=(((1,), (1,)), ((), ())),
            preferred_element_type=jnp.float32) * scale        # (TQ, S_pad)
        if key_valid is not None:
            s = jnp.where(key_valid, s, -1e30)
        s = s - jnp.max(s, axis=-1, keepdims=True)
        p = jnp.exp(s)
        p = p * pl.reciprocal(jnp.sum(p, axis=-1, keepdims=True), approx=True)
        attn_scr[:, lo:lo + dh] = jnp.dot(
            p.astype(jnp.bfloat16), vh,
            preferred_element_type=jnp.float32).astype(jnp.bfloat16)

    attn_out = jnp.dot(attn_scr[...], wo_ref[...],
                       preferred_element_type=jnp.float32) + bo_ref[...]

    # ---- Residual + LayerNorm 1 (f32) --------------------------------------
    x1 = _layer_norm(xq_f32 + attn_out, g1_ref[...], be1_ref[...])

    # ---- Feed-forward (bf16 MXU operands, f32 accumulation) ----------------
    h1 = jnp.maximum(
        jnp.dot(x1.astype(jnp.bfloat16), w1_ref[...],
                preferred_element_type=jnp.float32) + b1_ref[...], 0.0)
    ff = jnp.dot(h1.astype(jnp.bfloat16), w2_ref[...],
                 preferred_element_type=jnp.float32) + b2_ref[...]

    # ---- Residual + LayerNorm 2 (f32) --------------------------------------
    x2 = _layer_norm(x1 + ff, g2_ref[...], be2_ref[...])
    out_ref[0] = x2.astype(out_ref.dtype)


def _vmem_capacity_bytes():
    try:
        return int(pltpu.get_tpu_info().vmem_capacity_bytes)
    except Exception:
        return 64 << 20   # conservative: v7x per-TC VMEM


def _choose_query_tile(S, vmem_cap):
    """Returns (tq, S_pad)."""
    if S <= 128:
        return S, S                       # single full-extent query block
    # Larger query tiles on 128-MiB-VMEM parts (v5e/v6e) fill the MXU M dim
    # and amortize per-step grid overhead; keep 128 on v7x (64 MiB / TC).
    if vmem_cap >= (100 << 20) and S % 256 == 0:
        tq = 256
    else:
        tq = 128
    s_pad = ((S + tq - 1) // tq) * tq
    return tq, s_pad


def _encoder_forward(x, prep, *, num_heads, single_buffer_weights):
    B, S, D = x.shape
    assert D % num_heads == 0, "d_model must be divisible by num_heads"
    F = prep["w1"].shape[1]

    vmem_cap = _vmem_capacity_bytes()
    tq, s_pad = _choose_query_tile(S, vmem_cap)
    num_q = s_pad // tq

    xq = x.astype(jnp.float32)           # residual / LayerNorm stream
    xf = x.astype(jnp.bfloat16)          # K/V MXU operand: half the DMA bytes
    if s_pad != S:
        pad = ((0, 0), (0, s_pad - S), (0, 0))
        xq = jnp.pad(xq, pad)
        xf = jnp.pad(xf, pad)

    # ---- VMEM budget (capped per generation: ~56 MiB v7x, ~112 MiB v5e/v6e)
    weight_bytes = 2 * (4 * D * D + 2 * D * F)              # bf16 matmul weights
    small_bytes = 4 * (9 * D + F)                           # f32 biases + LN
    act_bytes = (4 * tq * D * 4                             # xq + out blocks (x2 bufs)
                 + 2 * s_pad * D * 2                        # xf block (x2 bufs, bf16)
                 + 2 * s_pad * D * 2                        # K/V scratch (bf16)
                 + tq * D * 2                               # attention scratch (bf16)
                 + 8 * s_pad * D                            # f32 KV projection temp
                 + 4 * tq * s_pad                           # one head's f32 scores
                 + 4 * tq * F)                              # f32 FFN hidden temp
    weight_resident = weight_bytes if single_buffer_weights else 2 * weight_bytes
    vmem_limit = weight_resident + 2 * small_bytes + act_bytes + (8 << 20)
    vmem_limit = int(min(max(vmem_limit, 32 << 20), (vmem_cap * 7) // 8))

    # ---- Cost estimate: K/V projection counted once per batch element ------
    flops = B * (2 * s_pad * (4 * D * D + 2 * D * F) + 4 * s_pad * s_pad * D)
    transcendentals = B * (num_heads * s_pad * s_pad + num_heads * s_pad + 4 * s_pad)
    bytes_accessed = (B * S * D * 4 + B * s_pad * D * 2 + B * S * D * 4
                      + weight_bytes + small_bytes)
    cost = pl.CostEstimate(flops=int(flops), transcendentals=int(transcendentals),
                           bytes_accessed=int(bytes_accessed))

    def wspec(shape):
        idx = lambda b, qi: (0,) * len(shape)
        if single_buffer_weights:
            # Grid-invariant block: one VMEM buffer, fetched once.
            return pl.BlockSpec(shape, idx, pipeline_mode=pl.Buffered(1))
        return pl.BlockSpec(shape, idx)

    grid_spec = pltpu.PrefetchScalarGridSpec(
        num_scalar_prefetch=0,
        grid=(B, num_q),
        in_specs=[
            pl.BlockSpec((1, tq, D), lambda b, qi: (b, qi, 0)),     # xq (query tile)
            pl.BlockSpec((1, s_pad, D), lambda b, qi: (b, 0, 0)),   # xf (K/V, bf16)
            wspec((D, D)), wspec((1, D)),                           # wq, bq
            wspec((D, 2 * D)), wspec((1, 2 * D)),                   # wkv, bkv
            wspec((D, D)), wspec((1, D)),                           # wo, bo
            wspec((D, F)), wspec((1, F)),                           # w1, b1
            wspec((F, D)), wspec((1, D)),                           # w2, b2
            wspec((1, D)), wspec((1, D)),                           # ln1 gamma, beta
            wspec((1, D)), wspec((1, D)),                           # ln2 gamma, beta
        ],
        out_specs=pl.BlockSpec((1, tq, D), lambda b, qi: (b, qi, 0)),
        scratch_shapes=[
            pltpu.VMEM((s_pad, D), jnp.bfloat16),   # K scratch (per batch element)
            pltpu.VMEM((s_pad, D), jnp.bfloat16),   # V scratch
            pltpu.VMEM((tq, D), jnp.bfloat16),      # per-head attention output slab
        ],
    )

    out = pl.pallas_call(
        functools.partial(_encoder_kernel, num_heads=num_heads, s_real=S),
        out_shape=jax.ShapeDtypeStruct((B, s_pad, D), jnp.float32),
        grid_spec=grid_spec,
        compiler_params=pltpu.CompilerParams(
            # qi must be "arbitrary": K/V scratch is carried across query tiles.
            dimension_semantics=("parallel", "arbitrary"),
            vmem_limit_bytes=vmem_limit,
        ),
        cost_estimate=cost,
    )(xq, xf, prep["wq"], prep["bq"], prep["wkv"], prep["bkv"],
      prep["wo"], prep["bo"], prep["w1"], prep["b1"], prep["w2"], prep["b2"],
      prep["g1"], prep["be1"], prep["g2"], prep["be2"])

    if s_pad != S:
        out = out[:, :S, :]
    return out.astype(x.dtype)


def prepare_params(params):
    """Hoisted parameter prep (call once at load time): bf16 matmul weights,
    fused WK|WV, f32 biases / LayerNorm params."""
    bf16, f32 = jnp.bfloat16, jnp.float32
    return {
        "wq": params["wq"].astype(bf16),
        "wkv": jnp.concatenate([params["wk"], params["wv"]], axis=1).astype(bf16),
        "wo": params["wo"].astype(bf16),
        "w1": params["w1"].astype(bf16),
        "w2": params["w2"].astype(bf16),
        "bq": params["bq"].astype(f32),
        "bkv": jnp.concatenate([params["bk"], params["bv"]], axis=1).astype(f32),
        "bo": params["bo"].astype(f32),
        "b1": params["b1"].astype(f32),
        "b2": params["b2"].astype(f32),
        "g1": params["g1"].astype(f32), "be1": params["be1"].astype(f32),
        "g2": params["g2"].astype(f32), "be2": params["be2"].astype(f32),
    }


_COMPILED_CACHE = {}


def encoder_layer_pallas(x, prep, num_heads):
    """Jitted, cached entry point. First call per config tries single-buffered
    grid-invariant weights; if that pipeline mode is rejected it falls back to
    default buffering. Genuine errors (e.g. real VMEM OOM) fail both variants
    and propagate."""
    key = (x.shape, jnp.dtype(x.dtype).name, num_heads, prep["w1"].shape[1])
    fn = _COMPILED_CACHE.get(key)
    if fn is not None:
        return fn(x, prep)

    last_err = None
    for single in (True, False):
        cand = jax.jit(functools.partial(
            _encoder_forward, num_heads=num_heads, single_buffer_weights=single))
        try:
            out = jax.block_until_ready(cand(x, prep))
        except Exception as e:   # fallback only; both failing re-raises below
            last_err = e
            continue
        _COMPILED_CACHE[key] = cand
        return out
    raise last_err


def encoder_layer_ref(x, params, num_heads):
    """Pure-JAX f32 reference (same math as torch MultiheadAttention, eval mode)."""
    B, S, D = x.shape
    dh = D // num_heads
    q = x @ params["wq"] + params["bq"]
    k = x @ params["wk"] + params["bk"]
    v = x @ params["wv"] + params["bv"]

    def split(t):  # (B,S,D) -> (B,H,S,dh)
        return t.reshape(B, S, num_heads, dh).transpose(0, 2, 1, 3)

    qh, kh, vh = split(q), split(k), split(v)
    s = jnp.einsum("bhqd,bhkd->bhqk", qh, kh) / (dh ** 0.5)
    p = jax.nn.softmax(s, axis=-1)
    o = jnp.einsum("bhqk,bhkd->bhqd", p, vh).transpose(0, 2, 1, 3).reshape(B, S, D)
    attn_out = o @ params["wo"] + params["bo"]

    def ln(y, g, b):
        mu = jnp.mean(y, axis=-1, keepdims=True)
        var = jnp.mean((y - mu) ** 2, axis=-1, keepdims=True)
        return (y - mu) / jnp.sqrt(var + 1e-5) * g + b

    x1 = ln(x + attn_out, params["g1"], params["be1"])
    ff = jnp.maximum(x1 @ params["w1"] + params["b1"], 0.0) @ params["w2"] + params["b2"]
    return ln(x1 + ff, params["g2"], params["be2"])


def init_params(key, d_model, d_ff):
    ks = jax.random.split(key, 8)
    scale = 0.1
    return {
        "wq": jax.random.normal(ks[0], (d_model, d_model), jnp.float32) * scale,
        "wk": jax.random.normal(ks[1], (d_model, d_model), jnp.float32) * scale,
        "wv": jax.random.normal(ks[2], (d_model, d_model), jnp.float32) * scale,
        "wo": jax.random.normal(ks[3], (d_model, d_model), jnp.float32) * scale,
        "w1": jax.random.normal(ks[4], (d_model, d_ff), jnp.float32) * scale,
        "w2": jax.random.normal(ks[5], (d_ff, d_model), jnp.float32) * scale,
        "bq": jax.random.normal(ks[6], (1, d_model), jnp.float32) * scale,
        "bk": jnp.zeros((1, d_model), jnp.float32),
        "bv": jax.random.normal(ks[7], (1, d_model), jnp.float32) * scale,
        "bo": jnp.zeros((1, d_model), jnp.float32),
        "b1": jnp.zeros((1, d_ff), jnp.float32),
        "b2": jnp.zeros((1, d_model), jnp.float32),
        "g1": jnp.ones((1, d_model), jnp.float32),
        "be1": jnp.zeros((1, d_model), jnp.float32),
        "g2": jnp.ones((1, d_model), jnp.float32),
        "be2": jnp.zeros((1, d_model), jnp.float32),
    }


if __name__ == "__main__":
    B, S, d_model, num_heads, d_ff = 2, 8, 32, 4, 64

    key = jax.random.PRNGKey(0)
    kx, kp = jax.random.split(key)
    x = jax.random.normal(kx, (B, S, d_model), jnp.float32)
    params = init_params(kp, d_model, d_ff)
    prep = prepare_params(params)   # hoisted bf16 casts / weight fusion

    out = jax.block_until_ready(encoder_layer_pallas(x, prep, num_heads))
    ref = encoder_layer_ref(x, params, num_heads)
    assert out.shape == (B, S, d_model)
    # bf16 MXU operands (f32 accumulation) vs pure-f32 reference -> ~1e-2 scale.
    assert jnp.max(jnp.abs(out - ref)) < 3e-2, "mismatch vs reference (small S)"

    # Second config: exercises query tiling, K/V-scratch reuse across tiles and
    # padded-key masking (S=130 -> padded to 256, tq=128).
    S2 = 130
    x2 = jax.random.normal(jax.random.PRNGKey(1), (B, S2, d_model), jnp.float32)
    out2 = jax.block_until_ready(encoder_layer_pallas(x2, prep, num_heads))
    ref2 = encoder_layer_ref(x2, params, num_heads)
    assert out2.shape == (B, S2, d_model)
    assert jnp.max(jnp.abs(out2 - ref2)) < 3e-2, "mismatch vs reference (tiled S)"

    print("KERNEL_OK")
</pallas_src>

<mosaic_0001>
module attributes {stable_mosaic.version = 11 : i64} {
  func.func @_encoder_kernel(%arg0: i32, %arg1: i32, %arg2: memref<1x8x32xf32, #tpu.memory_space<vmem>>, %arg3: memref<1x8x32xbf16, #tpu.memory_space<vmem>>, %arg4: memref<32x32xbf16, #tpu.memory_space<vmem>>, %arg5: memref<1x32xf32, #tpu.memory_space<vmem>>, %arg6: memref<32x64xbf16, #tpu.memory_space<vmem>>, %arg7: memref<1x64xf32, #tpu.memory_space<vmem>>, %arg8: memref<32x32xbf16, #tpu.memory_space<vmem>>, %arg9: memref<1x32xf32, #tpu.memory_space<vmem>>, %arg10: memref<32x64xbf16, #tpu.memory_space<vmem>>, %arg11: memref<1x64xf32, #tpu.memory_space<vmem>>, %arg12: memref<64x32xbf16, #tpu.memory_space<vmem>>, %arg13: memref<1x32xf32, #tpu.memory_space<vmem>>, %arg14: memref<1x32xf32, #tpu.memory_space<vmem>>, %arg15: memref<1x32xf32, #tpu.memory_space<vmem>>, %arg16: memref<1x32xf32, #tpu.memory_space<vmem>>, %arg17: memref<1x32xf32, #tpu.memory_space<vmem>>, %arg18: memref<1x8x32xf32, #tpu.memory_space<vmem>>, %arg19: memref<8x32xbf16, #tpu.memory_space<vmem>>, %arg20: memref<8x32xbf16, #tpu.memory_space<vmem>>, %arg21: memref<8x32xbf16, #tpu.memory_space<vmem>>) attributes {dimension_semantics = [#tpu.dimension_semantics<parallel>, #tpu.dimension_semantics<arbitrary>], iteration_bounds = array<i64: 2, 1>, scalar_prefetch = 0 : i64, scratch_operands = 3 : i64, tpu.core_type = #tpu.core_type<tc>, window_params = [{transform_indices = @transform_0, window_bounds = array<i64: 1, 8, 32>}, {transform_indices = @transform_1, window_bounds = array<i64: 1, 8, 32>}, {pipeline_mode = #tpu.pipeline_mode<synchronous>, transform_indices = @transform_2, window_bounds = array<i64: 32, 32>}, {pipeline_mode = #tpu.pipeline_mode<synchronous>, transform_indices = @transform_3, window_bounds = array<i64: 1, 32>}, {pipeline_mode = #tpu.pipeline_mode<synchronous>, transform_indices = @transform_4, window_bounds = array<i64: 32, 64>}, {pipeline_mode = #tpu.pipeline_mode<synchronous>, transform_indices = @transform_5, window_bounds = array<i64: 1, 64>}, {pipeline_mode = #tpu.pipeline_mode<synchronous>, transform_indices = @transform_6, window_bounds = array<i64: 32, 32>}, {pipeline_mode = #tpu.pipeline_mode<synchronous>, transform_indices = @transform_7, window_bounds = array<i64: 1, 32>}, {pipeline_mode = #tpu.pipeline_mode<synchronous>, transform_indices = @transform_8, window_bounds = array<i64: 32, 64>}, {pipeline_mode = #tpu.pipeline_mode<synchronous>, transform_indices = @transform_9, window_bounds = array<i64: 1, 64>}, {pipeline_mode = #tpu.pipeline_mode<synchronous>, transform_indices = @transform_10, window_bounds = array<i64: 64, 32>}, {pipeline_mode = #tpu.pipeline_mode<synchronous>, transform_indices = @transform_11, window_bounds = array<i64: 1, 32>}, {pipeline_mode = #tpu.pipeline_mode<synchronous>, transform_indices = @transform_12, window_bounds = array<i64: 1, 32>}, {pipeline_mode = #tpu.pipeline_mode<synchronous>, transform_indices = @transform_13, window_bounds = array<i64: 1, 32>}, {pipeline_mode = #tpu.pipeline_mode<synchronous>, transform_indices = @transform_14, window_bounds = array<i64: 1, 32>}, {pipeline_mode = #tpu.pipeline_mode<synchronous>, transform_indices = @transform_15, window_bounds = array<i64: 1, 32>}, {transform_indices = @transform_16, window_bounds = array<i64: 1, 8, 32>}]} {
    %c0_i32 = arith.constant 0 : i32
    %0 = arith.cmpi eq, %arg1, %c0_i32 : i32
    %1 = arith.extui %0 : i1 to i32
    %c0_i32_0 = arith.constant 0 : i32
    %2 = arith.cmpi ne, %1, %c0_i32_0 : i32
    scf.if %2 {
      %c0_78 = arith.constant 0 : index
      %c0_79 = arith.constant 0 : index
      %c0_80 = arith.constant 0 : index
      %169 = vector.load %arg3[%c0_78, %c0_79, %c0_80] : memref<1x8x32xbf16, #tpu.memory_space<vmem>>, vector<1x8x32xbf16>
      %170 = vector.shape_cast %169 : vector<1x8x32xbf16> to vector<8x32xbf16>
      %c0_81 = arith.constant 0 : index
      %c0_82 = arith.constant 0 : index
      %171 = vector.load %arg6[%c0_81, %c0_82] : memref<32x64xbf16, #tpu.memory_space<vmem>>, vector<32x64xbf16>
      %cst_83 = arith.constant dense<0.000000e+00> : vector<8x64xf32>
      %172 = tpu.matmul %170, %171, %cst_83 {dimension_numbers = #tpu.dot_dimension_numbers<[1], [0], [0], [1], [0, 0, 1, 1], [], []>} : vector<8x32xbf16>, vector<32x64xbf16>, vector<8x64xf32> -> vector<8x64xf32>
      %c0_84 = arith.constant 0 : index
      %c0_85 = arith.constant 0 : index
      %173 = vector.load %arg7[%c0_84, %c0_85] : memref<1x64xf32, #tpu.memory_space<vmem>>, vector<1x64xf32>
      %174 = vector.broadcast %173 : vector<1x64xf32> to vector<8x64xf32>
      %175 = arith.addf %172, %174 : vector<8x64xf32>
      %176 = arith.truncf %175 : vector<8x64xf32> to vector<8x64xbf16>
      %177 = vector.extract_strided_slice %176 {offsets = [0, 0], sizes = [8, 32], strides = [1, 1]} : vector<8x64xbf16> to vector<8x32xbf16>
      %c0_86 = arith.constant 0 : index
      %c0_87 = arith.constant 0 : index
      %178 = vector.load %arg19[%c0_86, %c0_87] : memref<8x32xbf16, #tpu.memory_space<vmem>>, vector<8x32xbf16>
      tpu.vector_store %arg19[%c0_86, %c0_87], %177 {strides = array<i32>} : memref<8x32xbf16, #tpu.memory_space<vmem>>, vector<8x32xbf16>,
      %179 = vector.extract_strided_slice %176 {offsets = [0, 32], sizes = [8, 32], strides = [1, 1]} : vector<8x64xbf16> to vector<8x32xbf16>
      %c0_88 = arith.constant 0 : index
      %c0_89 = arith.constant 0 : index
      %180 = vector.load %arg20[%c0_88, %c0_89] : memref<8x32xbf16, #tpu.memory_space<vmem>>, vector<8x32xbf16>
      tpu.vector_store %arg20[%c0_88, %c0_89], %179 {strides = array<i32>} : memref<8x32xbf16, #tpu.memory_space<vmem>>, vector<8x32xbf16>,
    } else {
    }
    %c0 = arith.constant 0 : index
    %c0_1 = arith.constant 0 : index
    %c0_2 = arith.constant 0 : index
    %3 = vector.load %arg2[%c0, %c0_1, %c0_2] : memref<1x8x32xf32, #tpu.memory_space<vmem>>, vector<1x8x32xf32>
    %4 = vector.shape_cast %3 : vector<1x8x32xf32> to vector<8x32xf32>
    %c0_3 = arith.constant 0 : index
    %c0_4 = arith.constant 0 : index
    %c0_5 = arith.constant 0 : index
    %5 = vector.load %arg2[%c0_3, %c0_4, %c0_5] : memref<1x8x32xf32, #tpu.memory_space<vmem>>, vector<1x8x32xf32>
    %6 = vector.shape_cast %5 : vector<1x8x32xf32> to vector<8x32xf32>
    %7 = arith.truncf %6 : vector<8x32xf32> to vector<8x32xbf16>
    %c0_6 = arith.constant 0 : index
    %c0_7 = arith.constant 0 : index
    %8 = vector.load %arg4[%c0_6, %c0_7] : memref<32x32xbf16, #tpu.memory_space<vmem>>, vector<32x32xbf16>
    %cst = arith.constant dense<0.000000e+00> : vector<8x32xf32>
    %9 = tpu.matmul %7, %8, %cst {dimension_numbers = #tpu.dot_dimension_numbers<[1], [0], [0], [1], [0, 0, 1, 1], [], []>} : vector<8x32xbf16>, vector<32x32xbf16>, vector<8x32xf32> -> vector<8x32xf32>
    %c0_8 = arith.constant 0 : index
    %c0_9 = arith.constant 0 : index
    %10 = vector.load %arg5[%c0_8, %c0_9] : memref<1x32xf32, #tpu.memory_space<vmem>>, vector<1x32xf32>
    %11 = vector.broadcast %10 : vector<1x32xf32> to vector<8x32xf32>
    %12 = arith.addf %9, %11 : vector<8x32xf32>
    %13 = arith.truncf %12 : vector<8x32xf32> to vector<8x32xbf16>
    %c0_10 = arith.constant 0 : index
    %c0_11 = arith.constant 0 : index
    %14 = vector.load %arg19[%c0_10, %c0_11] : memref<8x32xbf16, #tpu.memory_space<vmem>>, vector<8x32xbf16>
    %c0_12 = arith.constant 0 : index
    %c0_13 = arith.constant 0 : index
    %15 = vector.load %arg20[%c0_12, %c0_13] : memref<8x32xbf16, #tpu.memory_space<vmem>>, vector<8x32xbf16>
    %16 = vector.extract_strided_slice %13 {offsets = [0, 0], sizes = [8, 8], strides = [1, 1]} : vector<8x32xbf16> to vector<8x8xbf16>
    %17 = vector.extract_strided_slice %14 {offsets = [0, 0], sizes = [8, 8], strides = [1, 1]} : vector<8x32xbf16> to vector<8x8xbf16>
    %18 = vector.extract_strided_slice %15 {offsets = [0, 0], sizes = [8, 8], strides = [1, 1]} : vector<8x32xbf16> to vector<8x8xbf16>
    %cst_14 = arith.constant dense<0.000000e+00> : vector<8x8xf32>
    %19 = tpu.matmul %16, %17, %cst_14 {dimension_numbers = #tpu.dot_dimension_numbers<[1], [1], [0], [0], [0, 0, 1, 0], [], []>} : vector<8x8xbf16>, vector<8x8xbf16>, vector<8x8xf32> -> vector<8x8xf32>
    %cst_15 = arith.constant 0.353553385 : f32
    %20 = vector.broadcast %cst_15 : f32 to vector<8x8xf32>
    %21 = arith.mulf %19, %20 : vector<8x8xf32>
    %cst_16 = arith.constant dense<0xFF800000> : vector<8xf32>
    %22 = vector.multi_reduction <maximumf>, %21, %cst_16 [1] : vector<8x8xf32> to vector<8xf32>
    %23 = vector.shape_cast %22 : vector<8xf32> to vector<8x1xf32>
    %24 = vector.broadcast %23 : vector<8x1xf32> to vector<8x8xf32>
    %25 = arith.subf %21, %24 : vector<8x8xf32>
    %26 = math.exp %25 : vector<8x8xf32>
    %cst_17 = arith.constant dense<0.000000e+00> : vector<8xf32>
    %27 = vector.multi_reduction <add>, %26, %cst_17 [1] : vector<8x8xf32> to vector<8xf32>
    %28 = vector.shape_cast %27 : vector<8xf32> to vector<8x1xf32>
    %29 = tpu.reciprocal %28 {approx = true} : vector<8x1xf32> -> vector<8x1xf32>
    %30 = vector.broadcast %29 : vector<8x1xf32> to vector<8x8xf32>
    %31 = arith.mulf %26, %30 : vector<8x8xf32>
    %32 = arith.truncf %31 : vector<8x8xf32> to vector<8x8xbf16>
    %cst_18 = arith.constant dense<0.000000e+00> : vector<8x8xf32>
    %33 = tpu.matmul %32, %18, %cst_18 {dimension_numbers = #tpu.dot_dimension_numbers<[1], [0], [0], [1], [0, 0, 1, 1], [], []>} : vector<8x8xbf16>, vector<8x8xbf16>, vector<8x8xf32> -> vector<8x8xf32>
    %34 = arith.truncf %33 : vector<8x8xf32> to vector<8x8xbf16>
    %c0_19 = arith.constant 0 : index
    %c0_20 = arith.constant 0 : index
    %35 = vector.load %arg21[%c0_19, %c0_20] : memref<8x32xbf16, #tpu.memory_space<vmem>>, vector<8x8xbf16>
    tpu.vector_store %arg21[%c0_19, %c0_20], %34 {strides = array<i32>} : memref<8x32xbf16, #tpu.memory_space<vmem>>, vector<8x8xbf16>,
    %36 = vector.extract_strided_slice %13 {offsets = [0, 8], sizes = [8, 8], strides = [1, 1]} : vector<8x32xbf16> to vector<8x8xbf16>
    %37 = vector.extract_strided_slice %14 {offsets = [0, 8], sizes = [8, 8], strides = [1, 1]} : vector<8x32xbf16> to vector<8x8xbf16>
    %38 = vector.extract_strided_slice %15 {offsets = [0, 8], sizes = [8, 8], strides = [1, 1]} : vector<8x32xbf16> to vector<8x8xbf16>
    %cst_21 = arith.constant dense<0.000000e+00> : vector<8x8xf32>
    %39 = tpu.matmul %36, %37, %cst_21 {dimension_numbers = #tpu.dot_dimension_numbers<[1], [1], [0], [0], [0, 0, 1, 0], [], []>} : vector<8x8xbf16>, vector<8x8xbf16>, vector<8x8xf32> -> vector<8x8xf32>
    %cst_22 = arith.constant 0.353553385 : f32
    %40 = vector.broadcast %cst_22 : f32 to vector<8x8xf32>
    %41 = arith.mulf %39, %40 : vector<8x8xf32>
    %cst_23 = arith.constant dense<0xFF800000> : vector<8xf32>
    %42 = vector.multi_reduction <maximumf>, %41, %cst_23 [1] : vector<8x8xf32> to vector<8xf32>
    %43 = vector.shape_cast %42 : vector<8xf32> to vector<8x1xf32>
    %44 = vector.broadcast %43 : vector<8x1xf32> to vector<8x8xf32>
    %45 = arith.subf %41, %44 : vector<8x8xf32>
    %46 = math.exp %45 : vector<8x8xf32>
    %cst_24 = arith.constant dense<0.000000e+00> : vector<8xf32>
    %47 = vector.multi_reduction <add>, %46, %cst_24 [1] : vector<8x8xf32> to vector<8xf32>
    %48 = vector.shape_cast %47 : vector<8xf32> to vector<8x1xf32>
    %49 = tpu.reciprocal %48 {approx = true} : vector<8x1xf32> -> vector<8x1xf32>
    %50 = vector.broadcast %49 : vector<8x1xf32> to vector<8x8xf32>
    %51 = arith.mulf %46, %50 : vector<8x8xf32>
    %52 = arith.truncf %51 : vector<8x8xf32> to vector<8x8xbf16>
    %cst_25 = arith.constant dense<0.000000e+00> : vector<8x8xf32>
    %53 = tpu.matmul %52, %38, %cst_25 {dimension_numbers = #tpu.dot_dimension_numbers<[1], [0], [0], [1], [0, 0, 1, 1], [], []>} : vector<8x8xbf16>, vector<8x8xbf16>, vector<8x8xf32> -> vector<8x8xf32>
    %54 = arith.truncf %53 : vector<8x8xf32> to vector<8x8xbf16>
    %c0_26 = arith.constant 0 : index
    %c8 = arith.constant 8 : index
    %55 = vector.load %arg21[%c0_26, %c8] : memref<8x32xbf16, #tpu.memory_space<vmem>>, vector<8x8xbf16>
    tpu.vector_store %arg21[%c0_26, %c8], %54 {strides = array<i32>} : memref<8x32xbf16, #tpu.memory_space<vmem>>, vector<8x8xbf16>,
    %56 = vector.extract_strided_slice %13 {offsets = [0, 16], sizes = [8, 8], strides = [1, 1]} : vector<8x32xbf16> to vector<8x8xbf16>
    %57 = vector.extract_strided_slice %14 {offsets = [0, 16], sizes = [8, 8], strides = [1, 1]} : vector<8x32xbf16> to vector<8x8xbf16>
    %58 = vector.extract_strided_slice %15 {offsets = [0, 16], sizes = [8, 8], strides = [1, 1]} : vector<8x32xbf16> to vector<8x8xbf16>
    %cst_27 = arith.constant dense<0.000000e+00> : vector<8x8xf32>
    %59 = tpu.matmul %56, %57, %cst_27 {dimension_numbers = #tpu.dot_dimension_numbers<[1], [1], [0], [0], [0, 0, 1, 0], [], []>} : vector<8x8xbf16>, vector<8x8xbf16>, vector<8x8xf32> -> vector<8x8xf32>
    %cst_28 = arith.constant 0.353553385 : f32
    %60 = vector.broadcast %cst_28 : f32 to vector<8x8xf32>
    %61 = arith.mulf %59, %60 : vector<8x8xf32>
    %cst_29 = arith.constant dense<0xFF800000> : vector<8xf32>
    %62 = vector.multi_reduction <maximumf>, %61, %cst_29 [1] : vector<8x8xf32> to vector<8xf32>
    %63 = vector.shape_cast %62 : vector<8xf32> to vector<8x1xf32>
    %64 = vector.broadcast %63 : vector<8x1xf32> to vector<8x8xf32>
    %65 = arith.subf %61, %64 : vector<8x8xf32>
    %66 = math.exp %65 : vector<8x8xf32>
    %cst_30 = arith.constant dense<0.000000e+00> : vector<8xf32>
    %67 = vector.multi_reduction <add>, %66, %cst_30 [1] : vector<8x8xf32> to vector<8xf32>
    %68 = vector.shape_cast %67 : vector<8xf32> to vector<8x1xf32>
    %69 = tpu.reciprocal %68 {approx = true} : vector<8x1xf32> -> vector<8x1xf32>
    %70 = vector.broadcast %69 : vector<8x1xf32> to vector<8x8xf32>
    %71 = arith.mulf %66, %70 : vector<8x8xf32>
    %72 = arith.truncf %71 : vector<8x8xf32> to vector<8x8xbf16>
    %cst_31 = arith.constant dense<0.000000e+00> : vector<8x8xf32>
    %73 = tpu.matmul %72, %58, %cst_31 {dimension_numbers = #tpu.dot_dimension_numbers<[1], [0], [0], [1], [0, 0, 1, 1], [], []>} : vector<8x8xbf16>, vector<8x8xbf16>, vector<8x8xf32> -> vector<8x8xf32>
    %74 = arith.truncf %73 : vector<8x8xf32> to vector<8x8xbf16>
    %c0_32 = arith.constant 0 : index
    %c16 = arith.constant 16 : index
    %75 = vector.load %arg21[%c0_32, %c16] : memref<8x32xbf16, #tpu.memory_space<vmem>>, vector<8x8xbf16>
    tpu.vector_store %arg21[%c0_32, %c16], %74 {strides = array<i32>} : memref<8x32xbf16, #tpu.memory_space<vmem>>, vector<8x8xbf16>,
    %76 = vector.extract_strided_slice %13 {offsets = [0, 24], sizes = [8, 8], strides = [1, 1]} : vector<8x32xbf16> to vector<8x8xbf16>
    %77 = vector.extract_strided_slice %14 {offsets = [0, 24], sizes = [8, 8], strides = [1, 1]} : vector<8x32xbf16> to vector<8x8xbf16>
    %78 = vector.extract_strided_slice %15 {offsets = [0, 24], sizes = [8, 8], strides = [1, 1]} : vector<8x32xbf16> to vector<8x8xbf16>
    %cst_33 = arith.constant dense<0.000000e+00> : vector<8x8xf32>
    %79 = tpu.matmul %76, %77, %cst_33 {dimension_numbers = #tpu.dot_dimension_numbers<[1], [1], [0], [0], [0, 0, 1, 0], [], []>} : vector<8x8xbf16>, vector<8x8xbf16>, vector<8x8xf32> -> vector<8x8xf32>
    %cst_34 = arith.constant 0.353553385 : f32
    %80 = vector.broadcast %cst_34 : f32 to vector<8x8xf32>
    %81 = arith.mulf %79, %80 : vector<8x8xf32>
    %cst_35 = arith.constant dense<0xFF800000> : vector<8xf32>
    %82 = vector.multi_reduction <maximumf>, %81, %cst_35 [1] : vector<8x8xf32> to vector<8xf32>
    %83 = vector.shape_cast %82 : vector<8xf32> to vector<8x1xf32>
    %84 = vector.broadcast %83 : vector<8x1xf32> to vector<8x8xf32>
    %85 = arith.subf %81, %84 : vector<8x8xf32>
    %86 = math.exp %85 : vector<8x8xf32>
    %cst_36 = arith.constant dense<0.000000e+00> : vector<8xf32>
    %87 = vector.multi_reduction <add>, %86, %cst_36 [1] : vector<8x8xf32> to vector<8xf32>
    %88 = vector.shape_cast %87 : vector<8xf32> to vector<8x1xf32>
    %89 = tpu.reciprocal %88 {approx = true} : vector<8x1xf32> -> vector<8x1xf32>
    %90 = vector.broadcast %89 : vector<8x1xf32> to vector<8x8xf32>
    %91 = arith.mulf %86, %90 : vector<8x8xf32>
    %92 = arith.truncf %91 : vector<8x8xf32> to vector<8x8xbf16>
    %cst_37 = arith.constant dense<0.000000e+00> : vector<8x8xf32>
    %93 = tpu.matmul %92, %78, %cst_37 {dimension_numbers = #tpu.dot_dimension_numbers<[1], [0], [0], [1], [0, 0, 1, 1], [], []>} : vector<8x8xbf16>, vector<8x8xbf16>, vector<8x8xf32> -> vector<8x8xf32>
    %94 = arith.truncf %93 : vector<8x8xf32> to vector<8x8xbf16>
    %c0_38 = arith.constant 0 : index
    %c24 = arith.constant 24 : index
    %95 = vector.load %arg21[%c0_38, %c24] : memref<8x32xbf16, #tpu.memory_space<vmem>>, vector<8x8xbf16>
    tpu.vector_store %arg21[%c0_38, %c24], %94 {strides = array<i32>} : memref<8x32xbf16, #tpu.memory_space<vmem>>, vector<8x8xbf16>,
    %c0_39 = arith.constant 0 : index
    %c0_40 = arith.constant 0 : index
    %96 = vector.load %arg21[%c0_39, %c0_40] : memref<8x32xbf16, #tpu.memory_space<vmem>>, vector<8x32xbf16>
    %c0_41 = arith.constant 0 : index
    %c0_42 = arith.constant 0 : index
    %97 = vector.load %arg8[%c0_41, %c0_42] : memref<32x32xbf16, #tpu.memory_space<vmem>>, vector<32x32xbf16>
    %cst_43 = arith.constant dense<0.000000e+00> : vector<8x32xf32>
    %98 = tpu.matmul %96, %97, %cst_43 {dimension_numbers = #tpu.dot_dimension_numbers<[1], [0], [0], [1], [0, 0, 1, 1], [], []>} : vector<8x32xbf16>, vector<32x32xbf16>, vector<8x32xf32> -> vector<8x32xf32>
    %c0_44 = arith.constant 0 : index
    %c0_45 = arith.constant 0 : index
    %99 = vector.load %arg9[%c0_44, %c0_45] : memref<1x32xf32, #tpu.memory_space<vmem>>, vector<1x32xf32>
    %100 = vector.broadcast %99 : vector<1x32xf32> to vector<8x32xf32>
    %101 = arith.addf %98, %100 : vector<8x32xf32>
    %102 = arith.addf %4, %101 : vector<8x32xf32>
    %c0_46 = arith.constant 0 : index
    %c0_47 = arith.constant 0 : index
    %103 = vector.load %arg14[%c0_46, %c0_47] : memref<1x32xf32, #tpu.memory_space<vmem>>, vector<1x32xf32>
    %c0_48 = arith.constant 0 : index
    %c0_49 = arith.constant 0 : index
    %104 = vector.load %arg15[%c0_48, %c0_49] : memref<1x32xf32, #tpu.memory_space<vmem>>, vector<1x32xf32>
    %cst_50 = arith.constant dense<0.000000e+00> : vector<8xf32>
    %105 = vector.multi_reduction <add>, %102, %cst_50 [1] : vector<8x32xf32> to vector<8xf32>
    %106 = vector.shape_cast %105 : vector<8xf32> to vector<8x1xf32>
    %cst_51 = arith.constant 3.200000e+01 : f32
    %107 = vector.broadcast %cst_51 : f32 to vector<8x1xf32>
    %108 = arith.divf %106, %107 : vector<8x1xf32>
    %109 = vector.broadcast %108 : vector<8x1xf32> to vector<8x32xf32>
    %110 = arith.subf %102, %109 : vector<8x32xf32>
    %111 = arith.mulf %110, %110 : vector<8x32xf32>
    %cst_52 = arith.constant dense<0.000000e+00> : vector<8xf32>
    %112 = vector.multi_reduction <add>, %111, %cst_52 [1] : vector<8x32xf32> to vector<8xf32>
    %113 = vector.shape_cast %112 : vector<8xf32> to vector<8x1xf32>
    %cst_53 = arith.constant 3.200000e+01 : f32
    %114 = vector.broadcast %cst_53 : f32 to vector<8x1xf32>
    %115 = arith.divf %113, %114 : vector<8x1xf32>
    %116 = vector.broadcast %108 : vector<8x1xf32> to vector<8x32xf32>
    %117 = arith.subf %102, %116 : vector<8x32xf32>
    %cst_54 = arith.constant 9.99999974E-6 : f32
    %118 = vector.broadcast %cst_54 : f32 to vector<8x1xf32>
    %119 = arith.addf %115, %118 : vector<8x1xf32>
    %120 = math.rsqrt %119 : vector<8x1xf32>
    %121 = vector.broadcast %120 : vector<8x1xf32> to vector<8x32xf32>
    %122 = arith.mulf %117, %121 : vector<8x32xf32>
    %123 = vector.broadcast %103 : vector<1x32xf32> to vector<8x32xf32>
    %124 = arith.mulf %122, %123 : vector<8x32xf32>
    %125 = vector.broadcast %104 : vector<1x32xf32> to vector<8x32xf32>
    %126 = arith.addf %124, %125 : vector<8x32xf32>
    %127 = arith.truncf %126 : vector<8x32xf32> to vector<8x32xbf16>
    %c0_55 = arith.constant 0 : index
    %c0_56 = arith.constant 0 : index
    %128 = vector.load %arg10[%c0_55, %c0_56] : memref<32x64xbf16, #tpu.memory_space<vmem>>, vector<32x64xbf16>
    %cst_57 = arith.constant dense<0.000000e+00> : vector<8x64xf32>
    %129 = tpu.matmul %127, %128, %cst_57 {dimension_numbers = #tpu.dot_dimension_numbers<[1], [0], [0], [1], [0, 0, 1, 1], [], []>} : vector<8x32xbf16>, vector<32x64xbf16>, vector<8x64xf32> -> vector<8x64xf32>
    %c0_58 = arith.constant 0 : index
    %c0_59 = arith.constant 0 : index
    %130 = vector.load %arg11[%c0_58, %c0_59] : memref<1x64xf32, #tpu.memory_space<vmem>>, vector<1x64xf32>
    %131 = vector.broadcast %130 : vector<1x64xf32> to vector<8x64xf32>
    %132 = arith.addf %129, %131 : vector<8x64xf32>
    %cst_60 = arith.constant 0.000000e+00 : f32
    %133 = vector.broadcast %cst_60 : f32 to vector<8x64xf32>
    %134 = arith.maximumf %132, %133 : vector<8x64xf32>
    %135 = arith.truncf %134 : vector<8x64xf32> to vector<8x64xbf16>
    %c0_61 = arith.constant 0 : index
    %c0_62 = arith.constant 0 : index
    %136 = vector.load %arg12[%c0_61, %c0_62] : memref<64x32xbf16, #tpu.memory_space<vmem>>, vector<64x32xbf16>
    %cst_63 = arith.constant dense<0.000000e+00> : vector<8x32xf32>
    %137 = tpu.matmul %135, %136, %cst_63 {dimension_numbers = #tpu.dot_dimension_numbers<[1], [0], [0], [1], [0, 0, 1, 1], [], []>} : vector<8x64xbf16>, vector<64x32xbf16>, vector<8x32xf32> -> vector<8x32xf32>
    %c0_64 = arith.constant 0 : index
    %c0_65 = arith.constant 0 : index
    %138 = vector.load %arg13[%c0_64, %c0_65] : memref<1x32xf32, #tpu.memory_space<vmem>>, vector<1x32xf32>
    %139 = vector.broadcast %138 : vector<1x32xf32> to vector<8x32xf32>
    %140 = arith.addf %137, %139 : vector<8x32xf32>
    %141 = arith.addf %126, %140 : vector<8x32xf32>
    %c0_66 = arith.constant 0 : index
    %c0_67 = arith.constant 0 : index
    %142 = vector.load %arg16[%c0_66, %c0_67] : memref<1x32xf32, #tpu.memory_space<vmem>>, vector<1x32xf32>
    %c0_68 = arith.constant 0 : index
    %c0_69 = arith.constant 0 : index
    %143 = vector.load %arg17[%c0_68, %c0_69] : memref<1x32xf32, #tpu.memory_space<vmem>>, vector<1x32xf32>
    %cst_70 = arith.constant dense<0.000000e+00> : vector<8xf32>
    %144 = vector.multi_reduction <add>, %141, %cst_70 [1] : vector<8x32xf32> to vector<8xf32>
    %145 = vector.shape_cast %144 : vector<8xf32> to vector<8x1xf32>
    %cst_71 = arith.constant 3.200000e+01 : f32
    %146 = vector.broadcast %cst_71 : f32 to vector<8x1xf32>
    %147 = arith.divf %145, %146 : vector<8x1xf32>
    %148 = vector.broadcast %147 : vector<8x1xf32> to vector<8x32xf32>
    %149 = arith.subf %141, %148 : vector<8x32xf32>
    %150 = arith.mulf %149, %149 : vector<8x32xf32>
    %cst_72 = arith.constant dense<0.000000e+00> : vector<8xf32>
    %151 = vector.multi_reduction <add>, %150, %cst_72 [1] : vector<8x32xf32> to vector<8xf32>
    %152 = vector.shape_cast %151 : vector<8xf32> to vector<8x1xf32>
    %cst_73 = arith.constant 3.200000e+01 : f32
    %153 = vector.broadcast %cst_73 : f32 to vector<8x1xf32>
    %154 = arith.divf %152, %153 : vector<8x1xf32>
    %155 = vector.broadcast %147 : vector<8x1xf32> to vector<8x32xf32>
    %156 = arith.subf %141, %155 : vector<8x32xf32>
    %cst_74 = arith.constant 9.99999974E-6 : f32
    %157 = vector.broadcast %cst_74 : f32 to vector<8x1xf32>
    %158 = arith.addf %154, %157 : vector<8x1xf32>
    %159 = math.rsqrt %158 : vector<8x1xf32>
    %160 = vector.broadcast %159 : vector<8x1xf32> to vector<8x32xf32>
    %161 = arith.mulf %156, %160 : vector<8x32xf32>
    %162 = vector.broadcast %142 : vector<1x32xf32> to vector<8x32xf32>
    %163 = arith.mulf %161, %162 : vector<8x32xf32>
    %164 = vector.broadcast %143 : vector<1x32xf32> to vector<8x32xf32>
    %165 = arith.addf %163, %164 : vector<8x32xf32>
    %c0_75 = arith.constant 0 : index
    %c0_76 = arith.constant 0 : index
    %c0_77 = arith.constant 0 : index
    %166 = vector.load %arg18[%c0_75, %c0_76, %c0_77] : memref<1x8x32xf32, #tpu.memory_space<vmem>>, vector<1x8x32xf32>
    %167 = vector.shape_cast %166 : vector<1x8x32xf32> to vector<8x32xf32>
    %168 = vector.shape_cast %165 : vector<8x32xf32> to vector<1x8x32xf32>
    tpu.vector_store %arg18[%c0_75, %c0_76, %c0_77], %168 {strides = array<i32>} : memref<1x8x32xf32, #tpu.memory_space<vmem>>, vector<1x8x32xf32>,
    return
  }
  func.func @transform_0(%arg0: i32, %arg1: i32) -> (i32, i32, i32) {
    %c0_i32 = arith.constant 0 : i32
    %c0_i32_0 = arith.constant 0 : i32
    return %arg0, %arg1, %c0_i32 : i32, i32, i32
  }
  func.func @transform_1(%arg0: i32, %arg1: i32) -> (i32, i32, i32) {
    %c0_i32 = arith.constant 0 : i32
    %c0_i32_0 = arith.constant 0 : i32
    %c0_i32_1 = arith.constant 0 : i32
    return %arg0, %c0_i32, %c0_i32_0 : i32, i32, i32
  }
  func.func @transform_2(%arg0: i32, %arg1: i32) -> (i32, i32) {
    %c0_i32 = arith.constant 0 : i32
    %c0_i32_0 = arith.constant 0 : i32
    %c0_i32_1 = arith.constant 0 : i32
    return %c0_i32, %c0_i32_0 : i32, i32
  }
  func.func @transform_3(%arg0: i32, %arg1: i32) -> (i32, i32) {
    %c0_i32 = arith.constant 0 : i32
    %c0_i32_0 = arith.constant 0 : i32
    %c0_i32_1 = arith.constant 0 : i32
    return %c0_i32, %c0_i32_0 : i32, i32
  }
  func.func @transform_4(%arg0: i32, %arg1: i32) -> (i32, i32) {
    %c0_i32 = arith.constant 0 : i32
    %c0_i32_0 = arith.constant 0 : i32
    %c0_i32_1 = arith.constant 0 : i32
    return %c0_i32, %c0_i32_0 : i32, i32
  }
  func.func @transform_5(%arg0: i32, %arg1: i32) -> (i32, i32) {
    %c0_i32 = arith.constant 0 : i32
    %c0_i32_0 = arith.constant 0 : i32
    %c0_i32_1 = arith.constant 0 : i32
    return %c0_i32, %c0_i32_0 : i32, i32
  }
  func.func @transform_6(%arg0: i32, %arg1: i32) -> (i32, i32) {
    %c0_i32 = arith.constant 0 : i32
    %c0_i32_0 = arith.constant 0 : i32
    %c0_i32_1 = arith.constant 0 : i32
    return %c0_i32, %c0_i32_0 : i32, i32
  }
  func.func @transform_7(%arg0: i32, %arg1: i32) -> (i32, i32) {
    %c0_i32 = arith.constant 0 : i32
    %c0_i32_0 = arith.constant 0 : i32
    %c0_i32_1 = arith.constant 0 : i32
    return %c0_i32, %c0_i32_0 : i32, i32
  }
  func.func @transform_8(%arg0: i32, %arg1: i32) -> (i32, i32) {
    %c0_i32 = arith.constant 0 : i32
    %c0_i32_0 = arith.constant 0 : i32
    %c0_i32_1 = arith.constant 0 : i32
    return %c0_i32, %c0_i32_0 : i32, i32
  }
  func.func @transform_9(%arg0: i32, %arg1: i32) -> (i32, i32) {
    %c0_i32 = arith.constant 0 : i32
    %c0_i32_0 = arith.constant 0 : i32
    %c0_i32_1 = arith.constant 0 : i32
    return %c0_i32, %c0_i32_0 : i32, i32
  }
  func.func @transform_10(%arg0: i32, %arg1: i32) -> (i32, i32) {
    %c0_i32 = arith.constant 0 : i32
    %c0_i32_0 = arith.constant 0 : i32
    %c0_i32_1 = arith.constant 0 : i32
    return %c0_i32, %c0_i32_0 : i32, i32
  }
  func.func @transform_11(%arg0: i32, %arg1: i32) -> (i32, i32) {
    %c0_i32 = arith.constant 0 : i32
    %c0_i32_0 = arith.constant 0 : i32
    %c0_i32_1 = arith.constant 0 : i32
    return %c0_i32, %c0_i32_0 : i32, i32
  }
  func.func @transform_12(%arg0: i32, %arg1: i32) -> (i32, i32) {
    %c0_i32 = arith.constant 0 : i32
    %c0_i32_0 = arith.constant 0 : i32
    %c0_i32_1 = arith.constant 0 : i32
    return %c0_i32, %c0_i32_0 : i32, i32
  }
  func.func @transform_13(%arg0: i32, %arg1: i32) -> (i32, i32) {
    %c0_i32 = arith.constant 0 : i32
    %c0_i32_0 = arith.constant 0 : i32
    %c0_i32_1 = arith.constant 0 : i32
    return %c0_i32, %c0_i32_0 : i32, i32
  }
  func.func @transform_14(%arg0: i32, %arg1: i32) -> (i32, i32) {
    %c0_i32 = arith.constant 0 : i32
    %c0_i32_0 = arith.constant 0 : i32
    %c0_i32_1 = arith.constant 0 : i32
    return %c0_i32, %c0_i32_0 : i32, i32
  }
  func.func @transform_15(%arg0: i32, %arg1: i32) -> (i32, i32) {
    %c0_i32 = arith.constant 0 : i32
    %c0_i32_0 = arith.constant 0 : i32
    %c0_i32_1 = arith.constant 0 : i32
    return %c0_i32, %c0_i32_0 : i32, i32
  }
  func.func @transform_16(%arg0: i32, %arg1: i32) -> (i32, i32, i32) {
    %c0_i32 = arith.constant 0 : i32
    %c0_i32_0 = arith.constant 0 : i32
    return %arg0, %arg1, %c0_i32 : i32, i32, i32
  }
}

module attributes {stable_mosaic.version = 11 : i64} {
  func.func @_encoder_kernel(%arg0: i32, %arg1: i32, %arg2: memref<1x8x32xf32, #tpu.memory_space<vmem>>, %arg3: memref<1x8x32xbf16, #tpu.memory_space<vmem>>, %arg4: memref<32x32xbf16, #tpu.memory_space<vmem>>, %arg5: memref<1x32xf32, #tpu.memory_space<vmem>>, %arg6: memref<32x64xbf16, #tpu.memory_space<vmem>>, %arg7: memref<1x64xf32, #tpu.memory_space<vmem>>, %arg8: memref<32x32xbf16, #tpu.memory_space<vmem>>, %arg9: memref<1x32xf32, #tpu.memory_space<vmem>>, %arg10: memref<32x64xbf16, #tpu.memory_space<vmem>>, %arg11: memref<1x64xf32, #tpu.memory_space<vmem>>, %arg12: memref<64x32xbf16, #tpu.memory_space<vmem>>, %arg13: memref<1x32xf32, #tpu.memory_space<vmem>>, %arg14: memref<1x32xf32, #tpu.memory_space<vmem>>, %arg15: memref<1x32xf32, #tpu.memory_space<vmem>>, %arg16: memref<1x32xf32, #tpu.memory_space<vmem>>, %arg17: memref<1x32xf32, #tpu.memory_space<vmem>>, %arg18: memref<1x8x32xf32, #tpu.memory_space<vmem>>, %arg19: memref<8x32xbf16, #tpu.memory_space<vmem>>, %arg20: memref<8x32xbf16, #tpu.memory_space<vmem>>, %arg21: memref<8x32xbf16, #tpu.memory_space<vmem>>) attributes {dimension_semantics = [#tpu.dimension_semantics<parallel>, #tpu.dimension_semantics<arbitrary>], iteration_bounds = array<i64: 2, 1>, scalar_prefetch = 0 : i64, scratch_operands = 3 : i64, tpu.core_type = #tpu.core_type<tc>, window_params = [{transform_indices = @transform_0, window_bounds = array<i64: 1, 8, 32>}, {transform_indices = @transform_1, window_bounds = array<i64: 1, 8, 32>}, {pipeline_mode = #tpu.pipeline_mode<synchronous>, transform_indices = @transform_2, window_bounds = array<i64: 32, 32>}, {pipeline_mode = #tpu.pipeline_mode<synchronous>, transform_indices = @transform_3, window_bounds = array<i64: 1, 32>}, {pipeline_mode = #tpu.pipeline_mode<synchronous>, transform_indices = @transform_4, window_bounds = array<i64: 32, 64>}, {pipeline_mode = #tpu.pipeline_mode<synchronous>, transform_indices = @transform_5, window_bounds = array<i64: 1, 64>}, {pipeline_mode = #tpu.pipeline_mode<synchronous>, transform_indices = @transform_6, window_bounds = array<i64: 32, 32>}, {pipeline_mode = #tpu.pipeline_mode<synchronous>, transform_indices = @transform_7, window_bounds = array<i64: 1, 32>}, {pipeline_mode = #tpu.pipeline_mode<synchronous>, transform_indices = @transform_8, window_bounds = array<i64: 32, 64>}, {pipeline_mode = #tpu.pipeline_mode<synchronous>, transform_indices = @transform_9, window_bounds = array<i64: 1, 64>}, {pipeline_mode = #tpu.pipeline_mode<synchronous>, transform_indices = @transform_10, window_bounds = array<i64: 64, 32>}, {pipeline_mode = #tpu.pipeline_mode<synchronous>, transform_indices = @transform_11, window_bounds = array<i64: 1, 32>}, {pipeline_mode = #tpu.pipeline_mode<synchronous>, transform_indices = @transform_12, window_bounds = array<i64: 1, 32>}, {pipeline_mode = #tpu.pipeline_mode<synchronous>, transform_indices = @transform_13, window_bounds = array<i64: 1, 32>}, {pipeline_mode = #tpu.pipeline_mode<synchronous>, transform_indices = @transform_14, window_bounds = array<i64: 1, 32>}, {pipeline_mode = #tpu.pipeline_mode<synchronous>, transform_indices = @transform_15, window_bounds = array<i64: 1, 32>}, {transform_indices = @transform_16, window_bounds = array<i64: 1, 8, 32>}]} {
    %c0_i32 = arith.constant 0 : i32
    %0 = arith.cmpi eq, %arg1, %c0_i32 : i32
    %1 = arith.extui %0 : i1 to i32
    %c0_i32_0 = arith.constant 0 : i32
    %2 = arith.cmpi ne, %1, %c0_i32_0 : i32
    scf.if %2 {
      %c0_78 = arith.constant 0 : index
      %c0_79 = arith.constant 0 : index
      %c0_80 = arith.constant 0 : index
      %169 = vector.load %arg3[%c0_78, %c0_79, %c0_80] : memref<1x8x32xbf16, #tpu.memory_space<vmem>>, vector<1x8x32xbf16>
      %170 = vector.shape_cast %169 : vector<1x8x32xbf16> to vector<8x32xbf16>
      %c0_81 = arith.constant 0 : index
      %c0_82 = arith.constant 0 : index
      %171 = vector.load %arg6[%c0_81, %c0_82] : memref<32x64xbf16, #tpu.memory_space<vmem>>, vector<32x64xbf16>
      %cst_83 = arith.constant dense<0.000000e+00> : vector<8x64xf32>
      %172 = tpu.matmul %170, %171, %cst_83 {dimension_numbers = #tpu.dot_dimension_numbers<[1], [0], [0], [1], [0, 0, 1, 1], [], []>} : vector<8x32xbf16>, vector<32x64xbf16>, vector<8x64xf32> -> vector<8x64xf32>
      %c0_84 = arith.constant 0 : index
      %c0_85 = arith.constant 0 : index
      %173 = vector.load %arg7[%c0_84, %c0_85] : memref<1x64xf32, #tpu.memory_space<vmem>>, vector<1x64xf32>
      %174 = vector.broadcast %173 : vector<1x64xf32> to vector<8x64xf32>
      %175 = arith.addf %172, %174 : vector<8x64xf32>
      %176 = arith.truncf %175 : vector<8x64xf32> to vector<8x64xbf16>
      %177 = vector.extract_strided_slice %176 {offsets = [0, 0], sizes = [8, 32], strides = [1, 1]} : vector<8x64xbf16> to vector<8x32xbf16>
      %c0_86 = arith.constant 0 : index
      %c0_87 = arith.constant 0 : index
      %178 = vector.load %arg19[%c0_86, %c0_87] : memref<8x32xbf16, #tpu.memory_space<vmem>>, vector<8x32xbf16>
      tpu.vector_store %arg19[%c0_86, %c0_87], %177 {strides = array<i32>} : memref<8x32xbf16, #tpu.memory_space<vmem>>, vector<8x32xbf16>,
      %179 = vector.extract_strided_slice %176 {offsets = [0, 32], sizes = [8, 32], strides = [1, 1]} : vector<8x64xbf16> to vector<8x32xbf16>
      %c0_88 = arith.constant 0 : index
      %c0_89 = arith.constant 0 : index
      %180 = vector.load %arg20[%c0_88, %c0_89] : memref<8x32xbf16, #tpu.memory_space<vmem>>, vector<8x32xbf16>
      tpu.vector_store %arg20[%c0_88, %c0_89], %179 {strides = array<i32>} : memref<8x32xbf16, #tpu.memory_space<vmem>>, vector<8x32xbf16>,
    } else {
    }
    %c0 = arith.constant 0 : index
    %c0_1 = arith.constant 0 : index
    %c0_2 = arith.constant 0 : index
    %3 = vector.load %arg2[%c0, %c0_1, %c0_2] : memref<1x8x32xf32, #tpu.memory_space<vmem>>, vector<1x8x32xf32>
    %4 = vector.shape_cast %3 : vector<1x8x32xf32> to vector<8x32xf32>
    %c0_3 = arith.constant 0 : index
    %c0_4 = arith.constant 0 : index
    %c0_5 = arith.constant 0 : index
    %5 = vector.load %arg2[%c0_3, %c0_4, %c0_5] : memref<1x8x32xf32, #tpu.memory_space<vmem>>, vector<1x8x32xf32>
    %6 = vector.shape_cast %5 : vector<1x8x32xf32> to vector<8x32xf32>
    %7 = arith.truncf %6 : vector<8x32xf32> to vector<8x32xbf16>
    %c0_6 = arith.constant 0 : index
    %c0_7 = arith.constant 0 : index
    %8 = vector.load %arg4[%c0_6, %c0_7] : memref<32x32xbf16, #tpu.memory_space<vmem>>, vector<32x32xbf16>
    %cst = arith.constant dense<0.000000e+00> : vector<8x32xf32>
    %9 = tpu.matmul %7, %8, %cst {dimension_numbers = #tpu.dot_dimension_numbers<[1], [0], [0], [1], [0, 0, 1, 1], [], []>} : vector<8x32xbf16>, vector<32x32xbf16>, vector<8x32xf32> -> vector<8x32xf32>
    %c0_8 = arith.constant 0 : index
    %c0_9 = arith.constant 0 : index
    %10 = vector.load %arg5[%c0_8, %c0_9] : memref<1x32xf32, #tpu.memory_space<vmem>>, vector<1x32xf32>
    %11 = vector.broadcast %10 : vector<1x32xf32> to vector<8x32xf32>
    %12 = arith.addf %9, %11 : vector<8x32xf32>
    %13 = arith.truncf %12 : vector<8x32xf32> to vector<8x32xbf16>
    %c0_10 = arith.constant 0 : index
    %c0_11 = arith.constant 0 : index
    %14 = vector.load %arg19[%c0_10, %c0_11] : memref<8x32xbf16, #tpu.memory_space<vmem>>, vector<8x32xbf16>
    %c0_12 = arith.constant 0 : index
    %c0_13 = arith.constant 0 : index
    %15 = vector.load %arg20[%c0_12, %c0_13] : memref<8x32xbf16, #tpu.memory_space<vmem>>, vector<8x32xbf16>
    %16 = vector.extract_strided_slice %13 {offsets = [0, 0], sizes = [8, 8], strides = [1, 1]} : vector<8x32xbf16> to vector<8x8xbf16>
    %17 = vector.extract_strided_slice %14 {offsets = [0, 0], sizes = [8, 8], strides = [1, 1]} : vector<8x32xbf16> to vector<8x8xbf16>
    %18 = vector.extract_strided_slice %15 {offsets = [0, 0], sizes = [8, 8], strides = [1, 1]} : vector<8x32xbf16> to vector<8x8xbf16>
    %cst_14 = arith.constant dense<0.000000e+00> : vector<8x8xf32>
    %19 = tpu.matmul %16, %17, %cst_14 {dimension_numbers = #tpu.dot_dimension_numbers<[1], [1], [0], [0], [0, 0, 1, 0], [], []>} : vector<8x8xbf16>, vector<8x8xbf16>, vector<8x8xf32> -> vector<8x8xf32>
    %cst_15 = arith.constant 0.353553385 : f32
    %20 = vector.broadcast %cst_15 : f32 to vector<8x8xf32>
    %21 = arith.mulf %19, %20 : vector<8x8xf32>
    %cst_16 = arith.constant dense<0xFF800000> : vector<8xf32>
    %22 = vector.multi_reduction <maximumf>, %21, %cst_16 [1] : vector<8x8xf32> to vector<8xf32>
    %23 = vector.shape_cast %22 : vector<8xf32> to vector<8x1xf32>
    %24 = vector.broadcast %23 : vector<8x1xf32> to vector<8x8xf32>
    %25 = arith.subf %21, %24 : vector<8x8xf32>
    %26 = math.exp %25 : vector<8x8xf32>
    %cst_17 = arith.constant dense<0.000000e+00> : vector<8xf32>
    %27 = vector.multi_reduction <add>, %26, %cst_17 [1] : vector<8x8xf32> to vector<8xf32>
    %28 = vector.shape_cast %27 : vector<8xf32> to vector<8x1xf32>
    %29 = tpu.reciprocal %28 {approx = true} : vector<8x1xf32> -> vector<8x1xf32>
    %30 = vector.broadcast %29 : vector<8x1xf32> to vector<8x8xf32>
    %31 = arith.mulf %26, %30 : vector<8x8xf32>
    %32 = arith.truncf %31 : vector<8x8xf32> to vector<8x8xbf16>
    %cst_18 = arith.constant dense<0.000000e+00> : vector<8x8xf32>
    %33 = tpu.matmul %32, %18, %cst_18 {dimension_numbers = #tpu.dot_dimension_numbers<[1], [0], [0], [1], [0, 0, 1, 1], [], []>} : vector<8x8xbf16>, vector<8x8xbf16>, vector<8x8xf32> -> vector<8x8xf32>
    %34 = arith.truncf %33 : vector<8x8xf32> to vector<8x8xbf16>
    %c0_19 = arith.constant 0 : index
    %c0_20 = arith.constant 0 : index
    %35 = vector.load %arg21[%c0_19, %c0_20] : memref<8x32xbf16, #tpu.memory_space<vmem>>, vector<8x8xbf16>
    tpu.vector_store %arg21[%c0_19, %c0_20], %34 {strides = array<i32>} : memref<8x32xbf16, #tpu.memory_space<vmem>>, vector<8x8xbf16>,
    %36 = vector.extract_strided_slice %13 {offsets = [0, 8], sizes = [8, 8], strides = [1, 1]} : vector<8x32xbf16> to vector<8x8xbf16>
    %37 = vector.extract_strided_slice %14 {offsets = [0, 8], sizes = [8, 8], strides = [1, 1]} : vector<8x32xbf16> to vector<8x8xbf16>
    %38 = vector.extract_strided_slice %15 {offsets = [0, 8], sizes = [8, 8], strides = [1, 1]} : vector<8x32xbf16> to vector<8x8xbf16>
    %cst_21 = arith.constant dense<0.000000e+00> : vector<8x8xf32>
    %39 = tpu.matmul %36, %37, %cst_21 {dimension_numbers = #tpu.dot_dimension_numbers<[1], [1], [0], [0], [0, 0, 1, 0], [], []>} : vector<8x8xbf16>, vector<8x8xbf16>, vector<8x8xf32> -> vector<8x8xf32>
    %cst_22 = arith.constant 0.353553385 : f32
    %40 = vector.broadcast %cst_22 : f32 to vector<8x8xf32>
    %41 = arith.mulf %39, %40 : vector<8x8xf32>
    %cst_23 = arith.constant dense<0xFF800000> : vector<8xf32>
    %42 = vector.multi_reduction <maximumf>, %41, %cst_23 [1] : vector<8x8xf32> to vector<8xf32>
    %43 = vector.shape_cast %42 : vector<8xf32> to vector<8x1xf32>
    %44 = vector.broadcast %43 : vector<8x1xf32> to vector<8x8xf32>
    %45 = arith.subf %41, %44 : vector<8x8xf32>
    %46 = math.exp %45 : vector<8x8xf32>
    %cst_24 = arith.constant dense<0.000000e+00> : vector<8xf32>
    %47 = vector.multi_reduction <add>, %46, %cst_24 [1] : vector<8x8xf32> to vector<8xf32>
    %48 = vector.shape_cast %47 : vector<8xf32> to vector<8x1xf32>
    %49 = tpu.reciprocal %48 {approx = true} : vector<8x1xf32> -> vector<8x1xf32>
    %50 = vector.broadcast %49 : vector<8x1xf32> to vector<8x8xf32>
    %51 = arith.mulf %46, %50 : vector<8x8xf32>
    %52 = arith.truncf %51 : vector<8x8xf32> to vector<8x8xbf16>
    %cst_25 = arith.constant dense<0.000000e+00> : vector<8x8xf32>
    %53 = tpu.matmul %52, %38, %cst_25 {dimension_numbers = #tpu.dot_dimension_numbers<[1], [0], [0], [1], [0, 0, 1, 1], [], []>} : vector<8x8xbf16>, vector<8x8xbf16>, vector<8x8xf32> -> vector<8x8xf32>
    %54 = arith.truncf %53 : vector<8x8xf32> to vector<8x8xbf16>
    %c0_26 = arith.constant 0 : index
    %c8 = arith.constant 8 : index
    %55 = vector.load %arg21[%c0_26, %c8] : memref<8x32xbf16, #tpu.memory_space<vmem>>, vector<8x8xbf16>
    tpu.vector_store %arg21[%c0_26, %c8], %54 {strides = array<i32>} : memref<8x32xbf16, #tpu.memory_space<vmem>>, vector<8x8xbf16>,
    %56 = vector.extract_strided_slice %13 {offsets = [0, 16], sizes = [8, 8], strides = [1, 1]} : vector<8x32xbf16> to vector<8x8xbf16>
    %57 = vector.extract_strided_slice %14 {offsets = [0, 16], sizes = [8, 8], strides = [1, 1]} : vector<8x32xbf16> to vector<8x8xbf16>
    %58 = vector.extract_strided_slice %15 {offsets = [0, 16], sizes = [8, 8], strides = [1, 1]} : vector<8x32xbf16> to vector<8x8xbf16>
    %cst_27 = arith.constant dense<0.000000e+00> : vector<8x8xf32>
    %59 = tpu.matmul %56, %57, %cst_27 {dimension_numbers = #tpu.dot_dimension_numbers<[1], [1], [0], [0], [0, 0, 1, 0], [], []>} : vector<8x8xbf16>, vector<8x8xbf16>, vector<8x8xf32> -> vector<8x8xf32>
    %cst_28 = arith.constant 0.353553385 : f32
    %60 = vector.broadcast %cst_28 : f32 to vector<8x8xf32>
    %61 = arith.mulf %59, %60 : vector<8x8xf32>
    %cst_29 = arith.constant dense<0xFF800000> : vector<8xf32>
    %62 = vector.multi_reduction <maximumf>, %61, %cst_29 [1] : vector<8x8xf32> to vector<8xf32>
    %63 = vector.shape_cast %62 : vector<8xf32> to vector<8x1xf32>
    %64 = vector.broadcast %63 : vector<8x1xf32> to vector<8x8xf32>
    %65 = arith.subf %61, %64 : vector<8x8xf32>
    %66 = math.exp %65 : vector<8x8xf32>
    %cst_30 = arith.constant dense<0.000000e+00> : vector<8xf32>
    %67 = vector.multi_reduction <add>, %66, %cst_30 [1] : vector<8x8xf32> to vector<8xf32>
    %68 = vector.shape_cast %67 : vector<8xf32> to vector<8x1xf32>
    %69 = tpu.reciprocal %68 {approx = true} : vector<8x1xf32> -> vector<8x1xf32>
    %70 = vector.broadcast %69 : vector<8x1xf32> to vector<8x8xf32>
    %71 = arith.mulf %66, %70 : vector<8x8xf32>
    %72 = arith.truncf %71 : vector<8x8xf32> to vector<8x8xbf16>
    %cst_31 = arith.constant dense<0.000000e+00> : vector<8x8xf32>
    %73 = tpu.matmul %72, %58, %cst_31 {dimension_numbers = #tpu.dot_dimension_numbers<[1], [0], [0], [1], [0, 0, 1, 1], [], []>} : vector<8x8xbf16>, vector<8x8xbf16>, vector<8x8xf32> -> vector<8x8xf32>
    %74 = arith.truncf %73 : vector<8x8xf32> to vector<8x8xbf16>
    %c0_32 = arith.constant 0 : index
    %c16 = arith.constant 16 : index
    %75 = vector.load %arg21[%c0_32, %c16] : memref<8x32xbf16, #tpu.memory_space<vmem>>, vector<8x8xbf16>
    tpu.vector_store %arg21[%c0_32, %c16], %74 {strides = array<i32>} : memref<8x32xbf16, #tpu.memory_space<vmem>>, vector<8x8xbf16>,
    %76 = vector.extract_strided_slice %13 {offsets = [0, 24], sizes = [8, 8], strides = [1, 1]} : vector<8x32xbf16> to vector<8x8xbf16>
    %77 = vector.extract_strided_slice %14 {offsets = [0, 24], sizes = [8, 8], strides = [1, 1]} : vector<8x32xbf16> to vector<8x8xbf16>
    %78 = vector.extract_strided_slice %15 {offsets = [0, 24], sizes = [8, 8], strides = [1, 1]} : vector<8x32xbf16> to vector<8x8xbf16>
    %cst_33 = arith.constant dense<0.000000e+00> : vector<8x8xf32>
    %79 = tpu.matmul %76, %77, %cst_33 {dimension_numbers = #tpu.dot_dimension_numbers<[1], [1], [0], [0], [0, 0, 1, 0], [], []>} : vector<8x8xbf16>, vector<8x8xbf16>, vector<8x8xf32> -> vector<8x8xf32>
    %cst_34 = arith.constant 0.353553385 : f32
    %80 = vector.broadcast %cst_34 : f32 to vector<8x8xf32>
    %81 = arith.mulf %79, %80 : vector<8x8xf32>
    %cst_35 = arith.constant dense<0xFF800000> : vector<8xf32>
    %82 = vector.multi_reduction <maximumf>, %81, %cst_35 [1] : vector<8x8xf32> to vector<8xf32>
    %83 = vector.shape_cast %82 : vector<8xf32> to vector<8x1xf32>
    %84 = vector.broadcast %83 : vector<8x1xf32> to vector<8x8xf32>
    %85 = arith.subf %81, %84 : vector<8x8xf32>
    %86 = math.exp %85 : vector<8x8xf32>
    %cst_36 = arith.constant dense<0.000000e+00> : vector<8xf32>
    %87 = vector.multi_reduction <add>, %86, %cst_36 [1] : vector<8x8xf32> to vector<8xf32>
    %88 = vector.shape_cast %87 : vector<8xf32> to vector<8x1xf32>
    %89 = tpu.reciprocal %88 {approx = true} : vector<8x1xf32> -> vector<8x1xf32>
    %90 = vector.broadcast %89 : vector<8x1xf32> to vector<8x8xf32>
    %91 = arith.mulf %86, %90 : vector<8x8xf32>
    %92 = arith.truncf %91 : vector<8x8xf32> to vector<8x8xbf16>
    %cst_37 = arith.constant dense<0.000000e+00> : vector<8x8xf32>
    %93 = tpu.matmul %92, %78, %cst_37 {dimension_numbers = #tpu.dot_dimension_numbers<[1], [0], [0], [1], [0, 0, 1, 1], [], []>} : vector<8x8xbf16>, vector<8x8xbf16>, vector<8x8xf32> -> vector<8x8xf32>
    %94 = arith.truncf %93 : vector<8x8xf32> to vector<8x8xbf16>
    %c0_38 = arith.constant 0 : index
    %c24 = arith.constant 24 : index
    %95 = vector.load %arg21[%c0_38, %c24] : memref<8x32xbf16, #tpu.memory_space<vmem>>, vector<8x8xbf16>
    tpu.vector_store %arg21[%c0_38, %c24], %94 {strides = array<i32>} : memref<8x32xbf16, #tpu.memory_space<vmem>>, vector<8x8xbf16>,
    %c0_39 = arith.constant 0 : index
    %c0_40 = arith.constant 0 : index
    %96 = vector.load %arg21[%c0_39, %c0_40] : memref<8x32xbf16, #tpu.memory_space<vmem>>, vector<8x32xbf16>
    %c0_41 = arith.constant 0 : index
    %c0_42 = arith.constant 0 : index
    %97 = vector.load %arg8[%c0_41, %c0_42] : memref<32x32xbf16, #tpu.memory_space<vmem>>, vector<32x32xbf16>
    %cst_43 = arith.constant dense<0.000000e+00> : vector<8x32xf32>
    %98 = tpu.matmul %96, %97, %cst_43 {dimension_numbers = #tpu.dot_dimension_numbers<[1], [0], [0], [1], [0, 0, 1, 1], [], []>} : vector<8x32xbf16>, vector<32x32xbf16>, vector<8x32xf32> -> vector<8x32xf32>
    %c0_44 = arith.constant 0 : index
    %c0_45 = arith.constant 0 : index
    %99 = vector.load %arg9[%c0_44, %c0_45] : memref<1x32xf32, #tpu.memory_space<vmem>>, vector<1x32xf32>
    %100 = vector.broadcast %99 : vector<1x32xf32> to vector<8x32xf32>
    %101 = arith.addf %98, %100 : vector<8x32xf32>
    %102 = arith.addf %4, %101 : vector<8x32xf32>
    %c0_46 = arith.constant 0 : index
    %c0_47 = arith.constant 0 : index
    %103 = vector.load %arg14[%c0_46, %c0_47] : memref<1x32xf32, #tpu.memory_space<vmem>>, vector<1x32xf32>
    %c0_48 = arith.constant 0 : index
    %c0_49 = arith.constant 0 : index
    %104 = vector.load %arg15[%c0_48, %c0_49] : memref<1x32xf32, #tpu.memory_space<vmem>>, vector<1x32xf32>
    %cst_50 = arith.constant dense<0.000000e+00> : vector<8xf32>
    %105 = vector.multi_reduction <add>, %102, %cst_50 [1] : vector<8x32xf32> to vector<8xf32>
    %106 = vector.shape_cast %105 : vector<8xf32> to vector<8x1xf32>
    %cst_51 = arith.constant 3.200000e+01 : f32
    %107 = vector.broadcast %cst_51 : f32 to vector<8x1xf32>
    %108 = arith.divf %106, %107 : vector<8x1xf32>
    %109 = vector.broadcast %108 : vector<8x1xf32> to vector<8x32xf32>
    %110 = arith.subf %102, %109 : vector<8x32xf32>
    %111 = arith.mulf %110, %110 : vector<8x32xf32>
    %cst_52 = arith.constant dense<0.000000e+00> : vector<8xf32>
    %112 = vector.multi_reduction <add>, %111, %cst_52 [1] : vector<8x32xf32> to vector<8xf32>
    %113 = vector.shape_cast %112 : vector<8xf32> to vector<8x1xf32>
    %cst_53 = arith.constant 3.200000e+01 : f32
    %114 = vector.broadcast %cst_53 : f32 to vector<8x1xf32>
    %115 = arith.divf %113, %114 : vector<8x1xf32>
    %116 = vector.broadcast %108 : vector<8x1xf32> to vector<8x32xf32>
    %117 = arith.subf %102, %116 : vector<8x32xf32>
    %cst_54 = arith.constant 9.99999974E-6 : f32
    %118 = vector.broadcast %cst_54 : f32 to vector<8x1xf32>
    %119 = arith.addf %115, %118 : vector<8x1xf32>
    %120 = math.rsqrt %119 : vector<8x1xf32>
    %121 = vector.broadcast %120 : vector<8x1xf32> to vector<8x32xf32>
    %122 = arith.mulf %117, %121 : vector<8x32xf32>
    %123 = vector.broadcast %103 : vector<1x32xf32> to vector<8x32xf32>
    %124 = arith.mulf %122, %123 : vector<8x32xf32>
    %125 = vector.broadcast %104 : vector<1x32xf32> to vector<8x32xf32>
    %126 = arith.addf %124, %125 : vector<8x32xf32>
    %127 = arith.truncf %126 : vector<8x32xf32> to vector<8x32xbf16>
    %c0_55 = arith.constant 0 : index
    %c0_56 = arith.constant 0 : index
    %128 = vector.load %arg10[%c0_55, %c0_56] : memref<32x64xbf16, #tpu.memory_space<vmem>>, vector<32x64xbf16>
    %cst_57 = arith.constant dense<0.000000e+00> : vector<8x64xf32>
    %129 = tpu.matmul %127, %128, %cst_57 {dimension_numbers = #tpu.dot_dimension_numbers<[1], [0], [0], [1], [0, 0, 1, 1], [], []>} : vector<8x32xbf16>, vector<32x64xbf16>, vector<8x64xf32> -> vector<8x64xf32>
    %c0_58 = arith.constant 0 : index
    %c0_59 = arith.constant 0 : index
    %130 = vector.load %arg11[%c0_58, %c0_59] : memref<1x64xf32, #tpu.memory_space<vmem>>, vector<1x64xf32>
    %131 = vector.broadcast %130 : vector<1x64xf32> to vector<8x64xf32>
    %132 = arith.addf %129, %131 : vector<8x64xf32>
    %cst_60 = arith.constant 0.000000e+00 : f32
    %133 = vector.broadcast %cst_60 : f32 to vector<8x64xf32>
    %134 = arith.maximumf %132, %133 : vector<8x64xf32>
    %135 = arith.truncf %134 : vector<8x64xf32> to vector<8x64xbf16>
    %c0_61 = arith.constant 0 : index
    %c0_62 = arith.constant 0 : index
    %136 = vector.load %arg12[%c0_61, %c0_62] : memref<64x32xbf16, #tpu.memory_space<vmem>>, vector<64x32xbf16>
    %cst_63 = arith.constant dense<0.000000e+00> : vector<8x32xf32>
    %137 = tpu.matmul %135, %136, %cst_63 {dimension_numbers = #tpu.dot_dimension_numbers<[1], [0], [0], [1], [0, 0, 1, 1], [], []>} : vector<8x64xbf16>, vector<64x32xbf16>, vector<8x32xf32> -> vector<8x32xf32>
    %c0_64 = arith.constant 0 : index
    %c0_65 = arith.constant 0 : index
    %138 = vector.load %arg13[%c0_64, %c0_65] : memref<1x32xf32, #tpu.memory_space<vmem>>, vector<1x32xf32>
    %139 = vector.broadcast %138 : vector<1x32xf32> to vector<8x32xf32>
    %140 = arith.addf %137, %139 : vector<8x32xf32>
    %141 = arith.addf %126, %140 : vector<8x32xf32>
    %c0_66 = arith.constant 0 : index
    %c0_67 = arith.constant 0 : index
    %142 = vector.load %arg16[%c0_66, %c0_67] : memref<1x32xf32, #tpu.memory_space<vmem>>, vector<1x32xf32>
    %c0_68 = arith.constant 0 : index
    %c0_69 = arith.constant 0 : index
    %143 = vector.load %arg17[%c0_68, %c0_69] : memref<1x32xf32, #tpu.memory_space<vmem>>, vector<1x32xf32>
    %cst_70 = arith.constant dense<0.000000e+00> : vector<8xf32>
    %144 = vector.multi_reduction <add>, %141, %cst_70 [1] : vector<8x32xf32> to vector<8xf32>
    %145 = vector.shape_cast %144 : vector<8xf32> to vector<8x1xf32>
    %cst_71 = arith.constant 3.200000e+01 : f32
    %146 = vector.broadcast %cst_71 : f32 to vector<8x1xf32>
    %147 = arith.divf %145, %146 : vector<8x1xf32>
    %148 = vector.broadcast %147 : vector<8x1xf32> to vector<8x32xf32>
    %149 = arith.subf %141, %148 : vector<8x32xf32>
    %150 = arith.mulf %149, %149 : vector<8x32xf32>
    %cst_72 = arith.constant dense<0.000000e+00> : vector<8xf32>
    %151 = vector.multi_reduction <add>, %150, %cst_72 [1] : vector<8x32xf32> to vector<8xf32>
    %152 = vector.shape_cast %151 : vector<8xf32> to vector<8x1xf32>
    %cst_73 = arith.constant 3.200000e+01 : f32
    %153 = vector.broadcast %cst_73 : f32 to vector<8x1xf32>
    %154 = arith.divf %152, %153 : vector<8x1xf32>
    %155 = vector.broadcast %147 : vector<8x1xf32> to vector<8x32xf32>
    %156 = arith.subf %141, %155 : vector<8x32xf32>
    %cst_74 = arith.constant 9.99999974E-6 : f32
    %157 = vector.broadcast %cst_74 : f32 to vector<8x1xf32>
    %158 = arith.addf %154, %157 : vector<8x1xf32>
    %159 = math.rsqrt %158 : vector<8x1xf32>
    %160 = vector.broadcast %159 : vector<8x1xf32> to vector<8x32xf32>
    %161 = arith.mulf %156, %160 : vector<8x32xf32>
    %162 = vector.broadcast %142 : vector<1x32xf32> to vector<8x32xf32>
    %163 = arith.mulf %161, %162 : vector<8x32xf32>
    %164 = vector.broadcast %143 : vector<1x32xf32> to vector<8x32xf32>
    %165 = arith.addf %163, %164 : vector<8x32xf32>
    %c0_75 = arith.constant 0 : index
    %c0_76 = arith.constant 0 : index
    %c0_77 = arith.constant 0 : index
    %166 = vector.load %arg18[%c0_75, %c0_76, %c0_77] : memref<1x8x32xf32, #tpu.memory_space<vmem>>, vector<1x8x32xf32>
    %167 = vector.shape_cast %166 : vector<1x8x32xf32> to vector<8x32xf32>
    %168 = vector.shape_cast %165 : vector<8x32xf32> to vector<1x8x32xf32>
    tpu.vector_store %arg18[%c0_75, %c0_76, %c0_77], %168 {strides = array<i32>} : memref<1x8x32xf32, #tpu.memory_space<vmem>>, vector<1x8x32xf32>,
    return
  }
  func.func @transform_0(%arg0: i32, %arg1: i32) -> (i32, i32, i32) {
    %c0_i32 = arith.constant 0 : i32
    %c0_i32_0 = arith.constant 0 : i32
    return %arg0, %arg1, %c0_i32 : i32, i32, i32
  }
  func.func @transform_1(%arg0: i32, %arg1: i32) -> (i32, i32, i32) {
    %c0_i32 = arith.constant 0 : i32
    %c0_i32_0 = arith.constant 0 : i32
    %c0_i32_1 = arith.constant 0 : i32
    return %arg0, %c0_i32, %c0_i32_0 : i32, i32, i32
  }
  func.func @transform_2(%arg0: i32, %arg1: i32) -> (i32, i32) {
    %c0_i32 = arith.constant 0 : i32
    %c0_i32_0 = arith.constant 0 : i32
    %c0_i32_1 = arith.constant 0 : i32
    return %c0_i32, %c0_i32_0 : i32, i32
  }
  func.func @transform_3(%arg0: i32, %arg1: i32) -> (i32, i32) {
    %c0_i32 = arith.constant 0 : i32
    %c0_i32_0 = arith.constant 0 : i32
    %c0_i32_1 = arith.constant 0 : i32
    return %c0_i32, %c0_i32_0 : i32, i32
  }
  func.func @transform_4(%arg0: i32, %arg1: i32) -> (i32, i32) {
    %c0_i32 = arith.constant 0 : i32
    %c0_i32_0 = arith.constant 0 : i32
    %c0_i32_1 = arith.constant 0 : i32
    return %c0_i32, %c0_i32_0 : i32, i32
  }
  func.func @transform_5(%arg0: i32, %arg1: i32) -> (i32, i32) {
    %c0_i32 = arith.constant 0 : i32
    %c0_i32_0 = arith.constant 0 : i32
    %c0_i32_1 = arith.constant 0 : i32
    return %c0_i32, %c0_i32_0 : i32, i32
  }
  func.func @transform_6(%arg0: i32, %arg1: i32) -> (i32, i32) {
    %c0_i32 = arith.constant 0 : i32
    %c0_i32_0 = arith.constant 0 : i32
    %c0_i32_1 = arith.constant 0 : i32
    return %c0_i32, %c0_i32_0 : i32, i32
  }
  func.func @transform_7(%arg0: i32, %arg1: i32) -> (i32, i32) {
    %c0_i32 = arith.constant 0 : i32
    %c0_i32_0 = arith.constant 0 : i32
    %c0_i32_1 = arith.constant 0 : i32
    return %c0_i32, %c0_i32_0 : i32, i32
  }
  func.func @transform_8(%arg0: i32, %arg1: i32) -> (i32, i32) {
    %c0_i32 = arith.constant 0 : i32
    %c0_i32_0 = arith.constant 0 : i32
    %c0_i32_1 = arith.constant 0 : i32
    return %c0_i32, %c0_i32_0 : i32, i32
  }
  func.func @transform_9(%arg0: i32, %arg1: i32) -> (i32, i32) {
    %c0_i32 = arith.constant 0 : i32
    %c0_i32_0 = arith.constant 0 : i32
    %c0_i32_1 = arith.constant 0 : i32
    return %c0_i32, %c0_i32_0 : i32, i32
  }
  func.func @transform_10(%arg0: i32, %arg1: i32) -> (i32, i32) {
    %c0_i32 = arith.constant 0 : i32
    %c0_i32_0 = arith.constant 0 : i32
    %c0_i32_1 = arith.constant 0 : i32
    return %c0_i32, %c0_i32_0 : i32, i32
  }
  func.func @transform_11(%arg0: i32, %arg1: i32) -> (i32, i32) {
    %c0_i32 = arith.constant 0 : i32
    %c0_i32_0 = arith.constant 0 : i32
    %c0_i32_1 = arith.constant 0 : i32
    return %c0_i32, %c0_i32_0 : i32, i32
  }
  func.func @transform_12(%arg0: i32, %arg1: i32) -> (i32, i32) {
    %c0_i32 = arith.constant 0 : i32
    %c0_i32_0 = arith.constant 0 : i32
    %c0_i32_1 = arith.constant 0 : i32
    return %c0_i32, %c0_i32_0 : i32, i32
  }
  func.func @transform_13(%arg0: i32, %arg1: i32) -> (i32, i32) {
    %c0_i32 = arith.constant 0 : i32
    %c0_i32_0 = arith.constant 0 : i32
    %c0_i32_1 = arith.constant 0 : i32
    return %c0_i32, %c0_i32_0 : i32, i32
  }
  func.func @transform_14(%arg0: i32, %arg1: i32) -> (i32, i32) {
    %c0_i32 = arith.constant 0 : i32
    %c0_i32_0 = arith.constant 0 : i32
    %c0_i32_1 = arith.constant 0 : i32
    return %c0_i32, %c0_i32_0 : i32, i32
  }
  func.func @transform_15(%arg0: i32, %arg1: i32) -> (i32, i32) {
    %c0_i32 = arith.constant 0 : i32
    %c0_i32_0 = arith.constant 0 : i32
    %c0_i32_1 = arith.constant 0 : i32
    return %c0_i32, %c0_i32_0 : i32, i32
  }
  func.func @transform_16(%arg0: i32, %arg1: i32) -> (i32, i32, i32) {
    %c0_i32 = arith.constant 0 : i32
    %c0_i32_0 = arith.constant 0 : i32
    return %arg0, %arg1, %c0_i32 : i32, i32, i32
  }
}

</mosaic_0001>

<llo_original>
// kernel: _encoder_forward.1
$region0: #{_encoder_forward.1}
  #allocation0 [shape = 'u32[]', space=smem, size = 0x4, offset = 0x4, fixed_abs, tag = 'smem constant byte address 0x4 - core index']
  #allocation1 [shape = 'u32[72,128]{1,0:T(1,128)}', space=vmem, size = 0x9000, scoped, tag = 'internal scratch']
  #allocation2 [shape = 'bf16[8,32]{1,0:T(8,128)(2,1)}', space=vmem, size = 0x800, scoped, tag = 'scratch operand']
  #allocation3 [shape = 'bf16[8,32]{1,0:T(8,128)(2,1)}', space=vmem, size = 0x800, scoped, tag = 'scratch operand']
  #allocation4 [shape = 'bf16[8,32]{1,0:T(8,128)(2,1)}', space=vmem, size = 0x800, scoped, tag = 'scratch operand']
  %s0 = inlined_call_operand.vmem [shape: f32[2,8,32], index: 0, kind: input, shape index: {}]
  %s1 = inlined_call_operand.vmem [shape: bf16[2,8,32], index: 1, kind: input, shape index: {}]
  %s2 = inlined_call_operand.vmem [shape: bf16[32,32], index: 2, kind: input, shape index: {}]
  %s3 = inlined_call_operand.hbm [shape: f32[1,32], index: 3, kind: input, shape index: {}]
  %s4 = inlined_call_operand.vmem [shape: bf16[32,64], index: 4, kind: input, shape index: {}]
  %s5 = inlined_call_operand.hbm [shape: f32[1,64], index: 5, kind: input, shape index: {}]
  %s6 = inlined_call_operand.vmem [shape: bf16[32,32], index: 6, kind: input, shape index: {}]
  %s7 = inlined_call_operand.hbm [shape: f32[1,32], index: 7, kind: input, shape index: {}]
  %s8 = inlined_call_operand.hbm [shape: bf16[32,64], index: 8, kind: input, shape index: {}]
  %s9 = inlined_call_operand.hbm [shape: f32[1,64], index: 9, kind: input, shape index: {}]
  %s10 = inlined_call_operand.vmem [shape: bf16[64,32], index: 10, kind: input, shape index: {}]
  %s11 = inlined_call_operand.hbm [shape: f32[1,32], index: 11, kind: input, shape index: {}]
  %s12 = inlined_call_operand.hbm [shape: f32[1,32], index: 12, kind: input, shape index: {}]
  %s13 = inlined_call_operand.hbm [shape: f32[1,32], index: 13, kind: input, shape index: {}]
  %s14 = inlined_call_operand.hbm [shape: f32[1,32], index: 14, kind: input, shape index: {}]
  %s15 = inlined_call_operand.hbm [shape: f32[1,32], index: 15, kind: input, shape index: {}]
  %s16 = inlined_call_operand.hbm [shape: f32[2,8,32], index: 16, kind: output, shape index: {}]
  %s17 = sld [smem:[#allocation0]]
  $region141: #{_encoder_forward.1} parent=0
    _
  %s19 = ssub.s32 1, %s17
  %s20 = scalar_select 0, %s19, %s17
  $region1: #{_encoder_forward.1} parent=0
    #allocation5 [shape = 'u8[512]{0}', space=vmem, size = 0x400, scoped, tag = 'input window, operand 3, single buffered']
    #allocation6 [shape = 's32[2]{0}', space=sflag, size = 0x8, scoped, tag = 'scoped memory for _encoder_forward.1']
    #allocation7 [shape = 's32[2]{0}', space=sflag, size = 0x8, scoped, tag = 'scoped memory for _encoder_forward.1']
    #allocation8 [shape = 'u8[512]{0}', space=vmem, size = 0x400, scoped, tag = 'input window, operand 5, single buffered']
    #allocation9 [shape = 's32[1]{0}', space=sflag, size = 0x4, scoped, tag = 'scoped memory for _encoder_forward.1']
    #allocation10 [shape = 'u8[512]{0}', space=vmem, size = 0x400, scoped, tag = 'input window, operand 7, single buffered']
    #allocation11 [shape = 'u8[8192]{0}', space=vmem, size = 0x2000, scoped, tag = 'input window, operand 8, single buffered']
    #allocation12 [shape = 's32[1]{0}', space=sflag, size = 0x4, scoped, tag = 'scoped memory for _encoder_forward.1']
    #allocation13 [shape = 'u8[512]{0}', space=vmem, size = 0x400, scoped, tag = 'input window, operand 9, single buffered']
    #allocation14 [shape = 'u8[512]{0}', space=vmem, size = 0x400, scoped, tag = 'input window, operand 11, single buffered']
    #allocation15 [shape = 's32[1]{0}', space=sflag, size = 0x4, scoped, tag = 'scoped memory for _encoder_forward.1']
    #allocation16 [shape = 'u8[512]{0}', space=vmem, size = 0x400, scoped, tag = 'input window, operand 12, single buffered']
    #allocation17 [shape = 'u8[512]{0}', space=vmem, size = 0x400, scoped, tag = 'input window, operand 13, single buffered']
    #allocation18 [shape = 's32[1]{0}', space=sflag, size = 0x4, scoped, tag = 'scoped memory for _encoder_forward.1']
    #allocation19 [shape = 'u8[512]{0}', space=vmem, size = 0x400, scoped, tag = 'input window, operand 14, single buffered']
    #allocation20 [shape = 'u8[512]{0}', space=vmem, size = 0x400, scoped, tag = 'input window, operand 15, single buffered']
    #allocation21 [shape = 's32[1]{0}', space=sflag, size = 0x4, scoped, tag = 'scoped memory for _encoder_forward.1']
    #allocation22 [shape = 'u8[8192]{0}', space=vmem, size = 0x2000, scoped, tag = 'output window, operand 0']
    %21 = vsyncpa [#allocation6], 0
    %22 = vsyncpa [#allocation9], 0
    %23 = vsyncpa [#allocation12], 0
    %24 = vsyncpa [#allocation15], 0
    %25 = vsyncpa [#allocation18], 0
    %26 = vsyncpa [#allocation21], 0
    %27 = vsyncpa [#allocation7], 0
    %s28 = scalar_lea.sflag [#allocation7], 1
    %29 = vsyncpa %s28, 0
    loop: start=0, step=1, limit=4
    $region2: #{_encoder_forward.1} parent=1 // loop_pre_header
      _
    $region3: #{_encoder_forward.1} parent=1 // loop_header
      %s31 = sphi 0, %s35
      %p32 = scmp.ge.s32.totalorder %s31, 4
      %s38 = sphi 0, %s50
      %s39 = sphi 0, %s46
      %s40 = sphi 0, %s38
      %s41 = sphi 0, %s39
      %s42 = sphi 0, %s40
      %s43 = sphi 0, %s41
      %s55 = sphi 0, %s57
      %s58 = sphi 0, %s55
      %s59 = sphi 0, %s58
      %s75 = sphi 0, %s59
      %s81 = sphi 0, %s83
      %s84 = sphi 0, %s81
      %s85 = sphi 0, %s84
      %s101 = sphi 0, %s85
      %s105 = sphi 0, %s105
      %s107 = sphi 0, %s105
      %s108 = sphi 0, %s107
      %s122 = sphi 0, %s108
      %s126 = sphi 0, %s126
      %s128 = sphi 0, %s126
      %s129 = sphi 0, %s128
      %s143 = sphi 0, %s129
      %s147 = sphi 0, %s147
      %s149 = sphi 0, %s147
      %s150 = sphi 0, %s149
      %s164 = sphi 0, %s150
      %s168 = sphi 0, %s168
      %s170 = sphi 0, %s168
      %s171 = sphi 0, %s170
      %s185 = sphi 0, %s171
      %s189 = sphi 0, %s189
      %s191 = sphi 0, %s189
      %s192 = sphi 0, %s191
      %s206 = sphi 0, %s192
      %s210 = sphi 0, %s210
      %s212 = sphi 0, %s210
      %s213 = sphi 0, %s212
      %s227 = sphi 0, %s213
      %s231 = sphi 0, %s231
      %s233 = sphi 0, %s231
      %s234 = sphi 0, %s233
      %s248 = sphi 0, %s234
      %s252 = sphi 0, %s252
      %s254 = sphi 0, %s252
      %s255 = sphi 0, %s254
      %s269 = sphi 0, %s255
      %s273 = sphi 0, %s273
      %s275 = sphi 0, %s273
      %s276 = sphi 0, %s275
      %s290 = sphi 0, %s276
      %s294 = sphi 0, %s294
      %s296 = sphi 0, %s294
      %s297 = sphi 0, %s296
      %s311 = sphi 0, %s297
      %s315 = sphi 0, %s315
      %s317 = sphi 0, %s315
      %s318 = sphi 0, %s317
      %s332 = sphi 0, %s318
      %s336 = sphi 0, %s336
      %s338 = sphi 0, %s336
      %s339 = sphi 0, %s338
      %s353 = sphi 0, %s339
      %s357 = sphi 0, %s357
      %s359 = sphi 0, %s357
      %s360 = sphi 0, %s359
      %s374 = sphi 0, %s360
      %s378 = sphi 0, %s378
      %s380 = sphi 0, %s378
      %s381 = sphi 0, %s380
      %s395 = sphi 0, %s381
      %s403 = sphi 0, %s405
      %s406 = sphi 0, %s403
      %s407 = sphi 0, %s406
      %s423 = sphi 0, %s407
    $region4: #{_encoder_forward.1} parent=1 // loop_header_branch
      %34 = sbr.rel (%p32) target = $region8
    $region5: #{_encoder_forward.1} parent=1 // loop_body
      %s36 = ssub.s32 %s31, 1
      %s37 = ssub.s32 %s31, 2
      %s44 = sadd.s32 1, %s39
      %p45 = scmp.ge.s32.totalorder %s44, 1
      %s46 = scalar_select %p45, 0, %s44
      %s47 = sadd.s32 1, %s38
      %s48 = scalar_select %p45, %s47, %s38
      %p49 = scmp.ge.s32.totalorder %s48, 2
      %s50 = scalar_select %p49, 0, %s48
      %s51 = ssub.s32 %s38, %s50
      %s52 = ssub.s32 %s39, %s46
      %s53 = sor.u32 %s51, %s52
      %p54 = scmp.eq.s32.totalorder %s53, 0
      %s56 = sadd.s32 %s55, 1
      %s57 = scalar_select %p54, %s55, %s56
      %p60 = pneg %p54
      %p61 = scmp.eq.s32.totalorder %s31, 1
      %p62 = por %p60, %p61
      %p63 = scmp.ne.s32.totalorder %s55, %s58
      %p64 = scmp.eq.s32.totalorder %s31, 0
      %p65 = por %p63, %p64
      %p66 = scmp.ne.s32.totalorder %s55, %s58
      %p67 = scmp.eq.s32.totalorder %s36, 1
      %p68 = por %p66, %p67
      %p69 = scmp.ne.s32.totalorder %s58, %s59
      %p70 = scmp.eq.s32.totalorder %s36, 0
      %p71 = por %p69, %p70
      %p72 = scmp.ne.s32.totalorder %s58, %s59
      %p73 = scmp.eq.s32.totalorder %s37, 1
      %p74 = por %p72, %p73
      %p76 = scmp.ne.s32.totalorder %s59, %s75
      %p77 = scmp.eq.s32.totalorder %s37, 0
      %p78 = por %p76, %p77
      %s79 = ssub.s32 %s38, %s50
      %p80 = scmp.eq.s32.totalorder %s79, 0
      %s82 = sadd.s32 %s81, 1
      %s83 = scalar_select %p80, %s81, %s82
      %p86 = pneg %p80
      %p87 = scmp.eq.s32.totalorder %s31, 1
      %p88 = por %p86, %p87
      %p89 = scmp.ne.s32.totalorder %s81, %s84
      %p90 = scmp.eq.s32.totalorder %s31, 0
      %p91 = por %p89, %p90
      %p92 = scmp.ne.s32.totalorder %s81, %s84
      %p93 = scmp.eq.s32.totalorder %s36, 1
      %p94 = por %p92, %p93
      %p95 = scmp.ne.s32.totalorder %s84, %s85
      %p96 = scmp.eq.s32.totalorder %s36, 0
      %p97 = por %p95, %p96
      %p98 = scmp.ne.s32.totalorder %s84, %s85
      %p99 = scmp.eq.s32.totalorder %s37, 1
      %p100 = por %p98, %p99
      %p102 = scmp.ne.s32.totalorder %s85, %s101
      %p103 = scmp.eq.s32.totalorder %s37, 0
      %p104 = por %p102, %p103
      %s106 = sadd.s32 %s105, 1
      %p109 = scmp.eq.s32.totalorder %s31, 1
      %p110 = scmp.ne.s32.totalorder %s105, %s107
      %p111 = scmp.eq.s32.totalorder %s31, 0
      %p112 = por %p110, %p111
      %p113 = scmp.ne.s32.totalorder %s105, %s107
      %p114 = scmp.eq.s32.totalorder %s36, 1
      %p115 = por %p113, %p114
      %p116 = scmp.ne.s32.totalorder %s107, %s108
      %p117 = scmp.eq.s32.totalorder %s36, 0
      %p118 = por %p116, %p117
      %p119 = scmp.ne.s32.totalorder %s107, %s108
      %p120 = scmp.eq.s32.totalorder %s37, 1
      %p121 = por %p119, %p120
      %p123 = scmp.ne.s32.totalorder %s108, %s122
      %p124 = scmp.eq.s32.totalorder %s37, 0
      %p125 = por %p123, %p124
      %s127 = sadd.s32 %s126, 1
      %p130 = scmp.eq.s32.totalorder %s31, 1
      %p131 = scmp.ne.s32.totalorder %s126, %s128
      %p132 = scmp.eq.s32.totalorder %s31, 0
      %p133 = por %p131, %p132
      %p134 = scmp.ne.s32.totalorder %s126, %s128
      %p135 = scmp.eq.s32.totalorder %s36, 1
      %p136 = por %p134, %p135
      %p137 = scmp.ne.s32.totalorder %s128, %s129
      %p138 = scmp.eq.s32.totalorder %s36, 0
      %p139 = por %p137, %p138
      %p140 = scmp.ne.s32.totalorder %s128, %s129
      %p141 = scmp.eq.s32.totalorder %s37, 1
      %p142 = por %p140, %p141
      %p144 = scmp.ne.s32.totalorder %s129, %s143
      %p145 = scmp.eq.s32.totalorder %s37, 0
      %p146 = por %p144, %p145
      %s148 = sadd.s32 %s147, 1
      %p151 = scmp.eq.s32.totalorder %s31, 1
      %p152 = scmp.ne.s32.totalorder %s147, %s149
      %p153 = scmp.eq.s32.totalorder %s31, 0
      %p154 = por %p152, %p153
      %p155 = scmp.ne.s32.totalorder %s147, %s149
      %p156 = scmp.eq.s32.totalorder %s36, 1
      %p157 = por %p155, %p156
      %p158 = scmp.ne.s32.totalorder %s149, %s150
      %p159 = scmp.eq.s32.totalorder %s36, 0
      %p160 = por %p158, %p159
      %p161 = scmp.ne.s32.totalorder %s149, %s150
      %p162 = scmp.eq.s32.totalorder %s37, 1
      %p163 = por %p161, %p162
      %p165 = scmp.ne.s32.totalorder %s150, %s164
      %p166 = scmp.eq.s32.totalorder %s37, 0
      %p167 = por %p165, %p166
      %s169 = sadd.s32 %s168, 1
      %p172 = scmp.eq.s32.totalorder %s31, 1
      %p173 = scmp.ne.s32.totalorder %s168, %s170
      %p174 = scmp.eq.s32.totalorder %s31, 0
      %p175 = por %p173, %p174
      %p176 = scmp.ne.s32.totalorder %s168, %s170
      %p177 = scmp.eq.s32.totalorder %s36, 1
      %p178 = por %p176, %p177
      %p179 = scmp.ne.s32.totalorder %s170, %s171
      %p180 = scmp.eq.s32.totalorder %s36, 0
      %p181 = por %p179, %p180
      %p182 = scmp.ne.s32.totalorder %s170, %s171
      %p183 = scmp.eq.s32.totalorder %s37, 1
      %p184 = por %p182, %p183
      %p186 = scmp.ne.s32.totalorder %s171, %s185
      %p187 = scmp.eq.s32.totalorder %s37, 0
      %p188 = por %p186, %p187
      %s190 = sadd.s32 %s189, 1
      %p193 = scmp.eq.s32.totalorder %s31, 1
      %p194 = scmp.ne.s32.totalorder %s189, %s191
      %p195 = scmp.eq.s32.totalorder %s31, 0
      %p196 = por %p194, %p195
      %p197 = scmp.ne.s32.totalorder %s189, %s191
      %p198 = scmp.eq.s32.totalorder %s36, 1
      %p199 = por %p197, %p198
      %p200 = scmp.ne.s32.totalorder %s191, %s192
      %p201 = scmp.eq.s32.totalorder %s36, 0
      %p202 = por %p200, %p201
      %p203 = scmp.ne.s32.totalorder %s191, %s192
      %p204 = scmp.eq.s32.totalorder %s37, 1
      %p205 = por %p203, %p204
      %p207 = scmp.ne.s32.totalorder %s192, %s206
      %p208 = scmp.eq.s32.totalorder %s37, 0
      %p209 = por %p207, %p208
      %s211 = sadd.s32 %s210, 1
      %p214 = scmp.eq.s32.totalorder %s31, 1
      %p215 = scmp.ne.s32.totalorder %s210, %s212
      %p216 = scmp.eq.s32.totalorder %s31, 0
      %p217 = por %p215, %p216
      %p218 = scmp.ne.s32.totalorder %s210, %s212
      %p219 = scmp.eq.s32.totalorder %s36, 1
      %p220 = por %p218, %p219
      %p221 = scmp.ne.s32.totalorder %s212, %s213
      %p222 = scmp.eq.s32.totalorder %s36, 0
      %p223 = por %p221, %p222
      %p224 = scmp.ne.s32.totalorder %s212, %s213
      %p225 = scmp.eq.s32.totalorder %s37, 1
      %p226 = por %p224, %p225
      %p228 = scmp.ne.s32.totalorder %s213, %s227
      %p229 = scmp.eq.s32.totalorder %s37, 0
      %p230 = por %p228, %p229
      %s232 = sadd.s32 %s231, 1
      %p235 = scmp.eq.s32.totalorder %s31, 1
      %p236 = scmp.ne.s32.totalorder %s231, %s233
      %p237 = scmp.eq.s32.totalorder %s31, 0
      %p238 = por %p236, %p237
      %p239 = scmp.ne.s32.totalorder %s231, %s233
      %p240 = scmp.eq.s32.totalorder %s36, 1
      %p241 = por %p239, %p240
      %p242 = scmp.ne.s32.totalorder %s233, %s234
      %p243 = scmp.eq.s32.totalorder %s36, 0
      %p244 = por %p242, %p243
      %p245 = scmp.ne.s32.totalorder %s233, %s234
      %p246 = scmp.eq.s32.totalorder %s37, 1
      %p247 = por %p245, %p246
      %p249 = scmp.ne.s32.totalorder %s234, %s248
      %p250 = scmp.eq.s32.totalorder %s37, 0
      %p251 = por %p249, %p250
      %s253 = sadd.s32 %s252, 1
      %p256 = scmp.eq.s32.totalorder %s31, 1
      %p257 = scmp.ne.s32.totalorder %s252, %s254
      %p258 = scmp.eq.s32.totalorder %s31, 0
      %p259 = por %p257, %p258
      %p260 = scmp.ne.s32.totalorder %s252, %s254
      %p261 = scmp.eq.s32.totalorder %s36, 1
      %p262 = por %p260, %p261
      %p263 = scmp.ne.s32.totalorder %s254, %s255
      %p264 = scmp.eq.s32.totalorder %s36, 0
      %p265 = por %p263, %p264
      %p266 = scmp.ne.s32.totalorder %s254, %s255
      %p267 = scmp.eq.s32.totalorder %s37, 1
      %p268 = por %p266, %p267
      %p270 = scmp.ne.s32.totalorder %s255, %s269
      %p271 = scmp.eq.s32.totalorder %s37, 0
      %p272 = por %p270, %p271
      %s274 = sadd.s32 %s273, 1
      %p277 = scmp.eq.s32.totalorder %s31, 1
      %p278 = scmp.ne.s32.totalorder %s273, %s275
      %p279 = scmp.eq.s32.totalorder %s31, 0
      %p280 = por %p278, %p279
      %p281 = scmp.ne.s32.totalorder %s273, %s275
      %p282 = scmp.eq.s32.totalorder %s36, 1
      %p283 = por %p281, %p282
      %p284 = scmp.ne.s32.totalorder %s275, %s276
      %p285 = scmp.eq.s32.totalorder %s36, 0
      %p286 = por %p284, %p285
      %p287 = scmp.ne.s32.totalorder %s275, %s276
      %p288 = scmp.eq.s32.totalorder %s37, 1
      %p289 = por %p287, %p288
      %p291 = scmp.ne.s32.totalorder %s276, %s290
      %p292 = scmp.eq.s32.totalorder %s37, 0
      %p293 = por %p291, %p292
      %s295 = sadd.s32 %s294, 1
      %p298 = scmp.eq.s32.totalorder %s31, 1
      %p299 = scmp.ne.s32.totalorder %s294, %s296
      %p300 = scmp.eq.s32.totalorder %s31, 0
      %p301 = por %p299, %p300
      %p302 = scmp.ne.s32.totalorder %s294, %s296
      %p303 = scmp.eq.s32.totalorder %s36, 1
      %p304 = por %p302, %p303
      %p305 = scmp.ne.s32.totalorder %s296, %s297
      %p306 = scmp.eq.s32.totalorder %s36, 0
      %p307 = por %p305, %p306
      %p308 = scmp.ne.s32.totalorder %s296, %s297
      %p309 = scmp.eq.s32.totalorder %s37, 1
      %p310 = por %p308, %p309
      %p312 = scmp.ne.s32.totalorder %s297, %s311
      %p313 = scmp.eq.s32.totalorder %s37, 0
      %p314 = por %p312, %p313
      %s316 = sadd.s32 %s315, 1
      %p319 = scmp.eq.s32.totalorder %s31, 1
      %p320 = scmp.ne.s32.totalorder %s315, %s317
      %p321 = scmp.eq.s32.totalorder %s31, 0
      %p322 = por %p320, %p321
      %p323 = scmp.ne.s32.totalorder %s315, %s317
      %p324 = scmp.eq.s32.totalorder %s36, 1
      %p325 = por %p323, %p324
      %p326 = scmp.ne.s32.totalorder %s317, %s318
      %p327 = scmp.eq.s32.totalorder %s36, 0
      %p328 = por %p326, %p327
      %p329 = scmp.ne.s32.totalorder %s317, %s318
      %p330 = scmp.eq.s32.totalorder %s37, 1
      %p331 = por %p329, %p330
      %p333 = scmp.ne.s32.totalorder %s318, %s332
      %p334 = scmp.eq.s32.totalorder %s37, 0
      %p335 = por %p333, %p334
      %s337 = sadd.s32 %s336, 1
      %p340 = scmp.eq.s32.totalorder %s31, 1
      %p341 = scmp.ne.s32.totalorder %s336, %s338
      %p342 = scmp.eq.s32.totalorder %s31, 0
      %p343 = por %p341, %p342
      %p344 = scmp.ne.s32.totalorder %s336, %s338
      %p345 = scmp.eq.s32.totalorder %s36, 1
      %p346 = por %p344, %p345
      %p347 = scmp.ne.s32.totalorder %s338, %s339
      %p348 = scmp.eq.s32.totalorder %s36, 0
      %p349 = por %p347, %p348
      %p350 = scmp.ne.s32.totalorder %s338, %s339
      %p351 = scmp.eq.s32.totalorder %s37, 1
      %p352 = por %p350, %p351
      %p354 = scmp.ne.s32.totalorder %s339, %s353
      %p355 = scmp.eq.s32.totalorder %s37, 0
      %p356 = por %p354, %p355
      %s358 = sadd.s32 %s357, 1
      %p361 = scmp.eq.s32.totalorder %s31, 1
      %p362 = scmp.ne.s32.totalorder %s357, %s359
      %p363 = scmp.eq.s32.totalorder %s31, 0
      %p364 = por %p362, %p363
      %p365 = scmp.ne.s32.totalorder %s357, %s359
      %p366 = scmp.eq.s32.totalorder %s36, 1
      %p367 = por %p365, %p366
      %p368 = scmp.ne.s32.totalorder %s359, %s360
      %p369 = scmp.eq.s32.totalorder %s36, 0
      %p370 = por %p368, %p369
      %p371 = scmp.ne.s32.totalorder %s359, %s360
      %p372 = scmp.eq.s32.totalorder %s37, 1
      %p373 = por %p371, %p372
      %p375 = scmp.ne.s32.totalorder %s360, %s374
      %p376 = scmp.eq.s32.totalorder %s37, 0
      %p377 = por %p375, %p376
      %s379 = sadd.s32 %s378, 1
      %p382 = scmp.eq.s32.totalorder %s31, 1
      %p383 = scmp.ne.s32.totalorder %s378, %s380
      %p384 = scmp.eq.s32.totalorder %s31, 0
      %p385 = por %p383, %p384
      %p386 = scmp.ne.s32.totalorder %s378, %s380
      %p387 = scmp.eq.s32.totalorder %s36, 1
      %p388 = por %p386, %p387
      %p389 = scmp.ne.s32.totalorder %s380, %s381
      %p390 = scmp.eq.s32.totalorder %s36, 0
      %p391 = por %p389, %p390
      %p392 = scmp.ne.s32.totalorder %s380, %s381
      %p393 = scmp.eq.s32.totalorder %s37, 1
      %p394 = por %p392, %p393
      %p396 = scmp.ne.s32.totalorder %s381, %s395
      %p397 = scmp.eq.s32.totalorder %s37, 0
      %p398 = por %p396, %p397
      %s399 = ssub.s32 %s38, %s50
      %s400 = ssub.s32 %s39, %s46
      %s401 = sor.u32 %s399, %s400
      %p402 = scmp.eq.s32.totalorder %s401, 0
      %s404 = sadd.s32 %s403, 1
      %s405 = scalar_select %p402, %s403, %s404
      %p408 = pneg %p402
      %p409 = scmp.eq.s32.totalorder %s31, 1
      %p410 = por %p408, %p409
      %p411 = scmp.ne.s32.totalorder %s403, %s406
      %p412 = scmp.eq.s32.totalorder %s31, 0
      %p413 = por %p411, %p412
      %p414 = scmp.ne.s32.totalorder %s403, %s406
      %p415 = scmp.eq.s32.totalorder %s36, 1
      %p416 = por %p414, %p415
      %p417 = scmp.ne.s32.totalorder %s406, %s407
      %p418 = scmp.eq.s32.totalorder %s36, 0
      %p419 = por %p417, %p418
      %p420 = scmp.ne.s32.totalorder %s406, %s407
      %p421 = scmp.eq.s32.totalorder %s37, 1
      %p422 = por %p420, %p421
      %p424 = scmp.ne.s32.totalorder %s407, %s423
      %p425 = scmp.eq.s32.totalorder %s37, 0
      %p426 = por %p424, %p425
      %p427 = scmp.le.s32.totalorder 1, %s31
      %p428 = scmp.lt.s32.totalorder %s31, 3
      %p429 = pnand %p427, %p428
      %p430 = pneg %p429
      // Predicated region
      $region9: #{_encoder_forward.1} parent=5 // pred_check
        _
      $region10: #{_encoder_forward.1} parent=5 // pred_check_branch
        %432 = sbr.rel (%p429) target = $region12
      $region11: #{_encoder_forward.1} parent=5 // pred_region
        %s433 = ssub.s32 %s31, 1
        // Predicated region
        $region13: #{_encoder_forward.1} parent=11 // pred_check
          %p434 = pneg %p118
        $region14: #{_encoder_forward.1} parent=11 // pred_check_branch
          %436 = sbr.rel (%p434) target = $region16
        $region15: #{_encoder_forward.1} parent=11 // pred_region
          _
        $region16: #{_encoder_forward.1} parent=11 // pred_fallthru
          _
        // Predicated region
        $region17: #{_encoder_forward.1} parent=11 // pred_check
          %p437 = pneg %p139
        $region18: #{_encoder_forward.1} parent=11 // pred_check_branch
          %439 = sbr.rel (%p437) target = $region20
        $region19: #{_encoder_forward.1} parent=11 // pred_region
          %441 = vsyncadd [#allocation6], 0
          %s443 = sshll.u32 %s3, 4
          %s444 = int_to_ptr.hbm [resolvable:$true] %s443
          %s445 = sshll.u32 [#allocation5], 4
          %s446 = int_to_ptr.vmem [resolvable:$true] %s445
          %448 = dma.hbm_to_vmem [thread:$0]  %s444, 16, %s446, [#allocation6]
        $region20: #{_encoder_forward.1} parent=11 // pred_fallthru
          _
        // Predicated region
        $region21: #{_encoder_forward.1} parent=11 // pred_check
          %p449 = pneg %p160
        $region22: #{_encoder_forward.1} parent=11 // pred_check_branch
          %451 = sbr.rel (%p449) target = $region24
        $region23: #{_encoder_forward.1} parent=11 // pred_region
          _
        $region24: #{_encoder_forward.1} parent=11 // pred_fallthru
          _
        // Predicated region
        $region25: #{_encoder_forward.1} parent=11 // pred_check
          %p452 = pneg %p181
        $region26: #{_encoder_forward.1} parent=11 // pred_check_branch
          %454 = sbr.rel (%p452) target = $region28
        $region27: #{_encoder_forward.1} parent=11 // pred_region
          %456 = vsyncadd [#allocation9], 0
          %s458 = sshll.u32 %s5, 4
          %s459 = int_to_ptr.hbm [resolvable:$true] %s458
          %s460 = sshll.u32 [#allocation8], 4
          %s461 = int_to_ptr.vmem [resolvable:$true] %s460
          %463 = dma.hbm_to_vmem [thread:$0]  %s459, 16, %s461, [#allocation9]
        $region28: #{_encoder_forward.1} parent=11 // pred_fallthru
          _
        // Predicated region
        $region29: #{_encoder_forward.1} parent=11 // pred_check
          %p464 = pneg %p202
        $region30: #{_encoder_forward.1} parent=11 // pred_check_branch
          %466 = sbr.rel (%p464) target = $region32
        $region31: #{_encoder_forward.1} parent=11 // pred_region
          _
        $region32: #{_encoder_forward.1} parent=11 // pred_fallthru
          _
        // Predicated region
        $region33: #{_encoder_forward.1} parent=11 // pred_check
          %p467 = pneg %p223
        $region34: #{_encoder_forward.1} parent=11 // pred_check_branch
          %469 = sbr.rel (%p467) target = $region36
        $region35: #{_encoder_forward.1} parent=11 // pred_region
          %471 = vsyncadd [#allocation9], 0
          %s473 = sshll.u32 %s7, 4
          %s474 = int_to_ptr.hbm [resolvable:$true] %s473
          %s475 = sshll.u32 [#allocation10], 4
          %s476 = int_to_ptr.vmem [resolvable:$true] %s475
          %478 = dma.hbm_to_vmem [thread:$0]  %s474, 16, %s476, [#allocation9]
        $region36: #{_encoder_forward.1} parent=11 // pred_fallthru
          _
        // Predicated region
        $region37: #{_encoder_forward.1} parent=11 // pred_check
          %p479 = pneg %p244
        $region38: #{_encoder_forward.1} parent=11 // pred_check_branch
          %481 = sbr.rel (%p479) target = $region40
        $region39: #{_encoder_forward.1} parent=11 // pred_region
          %483 = vsyncadd [#allocation12], 0
          %s484 = sshll.u32 %s8, 4
          %s485 = int_to_ptr.hbm [resolvable:$true] %s484
          %s486 = sshll.u32 [#allocation11], 4
          %s487 = int_to_ptr.vmem [resolvable:$true] %s486
          %492 = dma.hbm_to_vmem [thread:$0]  %s485, 256, %s487, [#allocation12], 64, 64, 4
        $region40: #{_encoder_forward.1} parent=11 // pred_fallthru
          _
        // Predicated region
        $region41: #{_encoder_forward.1} parent=11 // pred_check
          %p493 = pneg %p265
        $region42: #{_encoder_forward.1} parent=11 // pred_check_branch
          %495 = sbr.rel (%p493) target = $region44
        $region43: #{_encoder_forward.1} parent=11 // pred_region
          %497 = vsyncadd [#allocation12], 0
          %s499 = sshll.u32 %s9, 4
          %s500 = int_to_ptr.hbm [resolvable:$true] %s499
          %s501 = sshll.u32 [#allocation13], 4
          %s502 = int_to_ptr.vmem [resolvable:$true] %s501
          %504 = dma.hbm_to_vmem [thread:$0]  %s500, 16, %s502, [#allocation12]
        $region44: #{_encoder_forward.1} parent=11 // pred_fallthru
          _
        // Predicated region
        $region45: #{_encoder_forward.1} parent=11 // pred_check
          %p505 = pneg %p286
        $region46: #{_encoder_forward.1} parent=11 // pred_check_branch
          %507 = sbr.rel (%p505) target = $region48
        $region47: #{_encoder_forward.1} parent=11 // pred_region
          _
        $region48: #{_encoder_forward.1} parent=11 // pred_fallthru
          _
        // Predicated region
        $region49: #{_encoder_forward.1} parent=11 // pred_check
          %p508 = pneg %p307
        $region50: #{_encoder_forward.1} parent=11 // pred_check_branch
          %510 = sbr.rel (%p508) target = $region52
        $region51: #{_encoder_forward.1} parent=11 // pred_region
          %512 = vsyncadd [#allocation15], 0
          %s514 = sshll.u32 %s11, 4
          %s515 = int_to_ptr.hbm [resolvable:$true] %s514
          %s516 = sshll.u32 [#allocation14], 4
          %s517 = int_to_ptr.vmem [resolvable:$true] %s516
          %519 = dma.hbm_to_vmem [thread:$0]  %s515, 16, %s517, [#allocation15]
        $region52: #{_encoder_forward.1} parent=11 // pred_fallthru
          _
        // Predicated region
        $region53: #{_encoder_forward.1} parent=11 // pred_check
          %p520 = pneg %p328
        $region54: #{_encoder_forward.1} parent=11 // pred_check_branch
          %522 = sbr.rel (%p520) target = $region56
        $region55: #{_encoder_forward.1} parent=11 // pred_region
          %524 = vsyncadd [#allocation15], 0
          %s526 = sshll.u32 %s12, 4
          %s527 = int_to_ptr.hbm [resolvable:$true] %s526
          %s528 = sshll.u32 [#allocation16], 4
          %s529 = int_to_ptr.vmem [resolvable:$true] %s528
          %531 = dma.hbm_to_vmem [thread:$0]  %s527, 16, %s529, [#allocation15]
        $region56: #{_encoder_forward.1} parent=11 // pred_fallthru
          _
        // Predicated region
        $region57: #{_encoder_forward.1} parent=11 // pred_check
          %p532 = pneg %p349
        $region58: #{_encoder_forward.1} parent=11 // pred_check_branch
          %534 = sbr.rel (%p532) target = $region60
        $region59: #{_encoder_forward.1} parent=11 // pred_region
          %536 = vsyncadd [#allocation18], 0
          %s538 = sshll.u32 %s13, 4
          %s539 = int_to_ptr.hbm [resolvable:$true] %s538
          %s540 = sshll.u32 [#allocation17], 4
          %s541 = int_to_ptr.vmem [resolvable:$true] %s540
          %543 = dma.hbm_to_vmem [thread:$0]  %s539, 16, %s541, [#allocation18]
        $region60: #{_encoder_forward.1} parent=11 // pred_fallthru
          _
        // Predicated region
        $region61: #{_encoder_forward.1} parent=11 // pred_check
          %p544 = pneg %p370
        $region62: #{_encoder_forward.1} parent=11 // pred_check_branch
          %546 = sbr.rel (%p544) target = $region64
        $region63: #{_encoder_forward.1} parent=11 // pred_region
          %548 = vsyncadd [#allocation18], 0
          %s550 = sshll.u32 %s14, 4
          %s551 = int_to_ptr.hbm [resolvable:$true] %s550
          %s552 = sshll.u32 [#allocation19], 4
          %s553 = int_to_ptr.vmem [resolvable:$true] %s552
          %555 = dma.hbm_to_vmem [thread:$0]  %s551, 16, %s553, [#allocation18]
        $region64: #{_encoder_forward.1} parent=11 // pred_fallthru
          _
        // Predicated region
        $region65: #{_encoder_forward.1} parent=11 // pred_check
          %p556 = pneg %p391
        $region66: #{_encoder_forward.1} parent=11 // pred_check_branch
          %558 = sbr.rel (%p556) target = $region68
        $region67: #{_encoder_forward.1} parent=11 // pred_region
          %560 = vsyncadd [#allocation21], 0
          %s562 = sshll.u32 %s15, 4
          %s563 = int_to_ptr.hbm [resolvable:$true] %s562
          %s564 = sshll.u32 [#allocation20], 4
          %s565 = int_to_ptr.vmem [resolvable:$true] %s564
          %567 = dma.hbm_to_vmem [thread:$0]  %s563, 16, %s565, [#allocation21]
        $region68: #{_encoder_forward.1} parent=11 // pred_fallthru
          _
      $region12: #{_encoder_forward.1} parent=5 // pred_fallthru
        _
      %p568 = scmp.lt.s32.totalorder %s31, 2
      // Predicated region
      $region69: #{_encoder_forward.1} parent=5 // pred_check
        %p569 = pneg %p568
      $region70: #{_encoder_forward.1} parent=5 // pred_check_branch
        %571 = sbr.rel (%p569) target = $region72
      $region71: #{_encoder_forward.1} parent=5 // pred_region
        // Predicated region
        $region73: #{_encoder_forward.1} parent=71 // pred_check
          %p572 = pneg %p65
        $region74: #{_encoder_forward.1} parent=71 // pred_check_branch
          %574 = sbr.rel (%p572) target = $region76
        $region75: #{_encoder_forward.1} parent=71 // pred_region
          %p575 = scmp.lt.s32.totalorder %s38, 1
          %s576 = scalar_select %p575, %s38, 1
          %p577 = scmp.lt.s32.totalorder %s39, 0
          %s578 = scalar_select %p577, %s39, 0
          %s579 = sadd.s32 %s578, %s576
          %s580 = smul.addr %s579, 8
          %s581 = scalar_lea.vmem %s0, %s580
        $region76: #{_encoder_forward.1} parent=71 // pred_fallthru
          _
        // Predicated region
        $region77: #{_encoder_forward.1} parent=71 // pred_check
          %p582 = pneg %p91
        $region78: #{_encoder_forward.1} parent=71 // pred_check_branch
          %584 = sbr.rel (%p582) target = $region80
        $region79: #{_encoder_forward.1} parent=71 // pred_region
          %p585 = scmp.lt.s32.totalorder %s38, 1
          %s586 = scalar_select %p585, %s38, 1
          %s587 = smul.addr %s586, 4
          %s588 = scalar_lea.vmem %s1, %s587
        $region80: #{_encoder_forward.1} parent=71 // pred_fallthru
          _
      $region72: #{_encoder_forward.1} parent=5 // pred_fallthru
        _
      %p589 = scmp.le.s32.totalorder 1, %s31
      %p590 = scmp.lt.s32.totalorder %s31, 3
      %p591 = pnand %p589, %p590
      %p592 = pneg %p591
      // Predicated region
      $region81: #{_encoder_forward.1} parent=5 // pred_check
        _
      $region82: #{_encoder_forward.1} parent=5 // pred_check_branch
        %594 = sbr.rel (%p591) target = $region84
      $region83: #{_encoder_forward.1} parent=5 // pred_region
        %s595 = ssub.s32 %s31, 1
        // Predicated region
        $region85: #{_encoder_forward.1} parent=83 // pred_check
          %p596 = pneg %p139
        $region86: #{_encoder_forward.1} parent=83 // pred_check_branch
          %598 = sbr.rel (%p596) target = $region88
        $region87: #{_encoder_forward.1} parent=83 // pred_region
          %600 = dma.done [#allocation6], 16
        $region88: #{_encoder_forward.1} parent=83 // pred_fallthru
          _
        // Predicated region
        $region89: #{_encoder_forward.1} parent=83 // pred_check
          %p601 = pneg %p181
        $region90: #{_encoder_forward.1} parent=83 // pred_check_branch
          %603 = sbr.rel (%p601) target = $region92
        $region91: #{_encoder_forward.1} parent=83 // pred_region
          %605 = dma.done [#allocation9], 16
        $region92: #{_encoder_forward.1} parent=83 // pred_fallthru
          _
        // Predicated region
        $region93: #{_encoder_forward.1} parent=83 // pred_check
          %p606 = pneg %p223
        $region94: #{_encoder_forward.1} parent=83 // pred_check_branch
          %608 = sbr.rel (%p606) target = $region96
        $region95: #{_encoder_forward.1} parent=83 // pred_region
          %610 = dma.done [#allocation9], 16
        $region96: #{_encoder_forward.1} parent=83 // pred_fallthru
          _
        // Predicated region
        $region97: #{_encoder_forward.1} parent=83 // pred_check
          %p611 = pneg %p244
        $region98: #{_encoder_forward.1} parent=83 // pred_check_branch
          %613 = sbr.rel (%p611) target = $region100
        $region99: #{_encoder_forward.1} parent=83 // pred_region
          %615 = dma.done [#allocation12], 256
        $region100: #{_encoder_forward.1} parent=83 // pred_fallthru
          _
        // Predicated region
        $region101: #{_encoder_forward.1} parent=83 // pred_check
          %p616 = pneg %p265
        $region102: #{_encoder_forward.1} parent=83 // pred_check_branch
          %618 = sbr.rel (%p616) target = $region104
        $region103: #{_encoder_forward.1} parent=83 // pred_region
          %620 = dma.done [#allocation12], 16
        $region104: #{_encoder_forward.1} parent=83 // pred_fallthru
          _
        // Predicated region
        $region105: #{_encoder_forward.1} parent=83 // pred_check
          %p621 = pneg %p307
        $region106: #{_encoder_forward.1} parent=83 // pred_check_branch
          %623 = sbr.rel (%p621) target = $region108
        $region107: #{_encoder_forward.1} parent=83 // pred_region
          %625 = dma.done [#allocation15], 16
        $region108: #{_encoder_forward.1} parent=83 // pred_fallthru
          _
        // Predicated region
        $region109: #{_encoder_forward.1} parent=83 // pred_check
          %p626 = pneg %p328
        $region110: #{_encoder_forward.1} parent=83 // pred_check_branch
          %628 = sbr.rel (%p626) target = $region112
        $region111: #{_encoder_forward.1} parent=83 // pred_region
          %630 = dma.done [#allocation15], 16
        $region112: #{_encoder_forward.1} parent=83 // pred_fallthru
          _
        // Predicated region
        $region113: #{_encoder_forward.1} parent=83 // pred_check
          %p631 = pneg %p349
        $region114: #{_encoder_forward.1} parent=83 // pred_check_branch
          %633 = sbr.rel (%p631) target = $region116
        $region115: #{_encoder_forward.1} parent=83 // pred_region
          %635 = dma.done [#allocation18], 16
        $region116: #{_encoder_forward.1} parent=83 // pred_fallthru
          _
        // Predicated region
        $region117: #{_encoder_forward.1} parent=83 // pred_check
          %p636 = pneg %p370
        $region118: #{_encoder_forward.1} parent=83 // pred_check_branch
          %638 = sbr.rel (%p636) target = $region120
        $region119: #{_encoder_forward.1} parent=83 // pred_region
          %640 = dma.done [#allocation18], 16
        $region120: #{_encoder_forward.1} parent=83 // pred_fallthru
          _
        // Predicated region
        $region121: #{_encoder_forward.1} parent=83 // pred_check
          %p641 = pneg %p391
        $region122: #{_encoder_forward.1} parent=83 // pred_check_branch
          %643 = sbr.rel (%p641) target = $region124
        $region123: #{_encoder_forward.1} parent=83 // pred_region
          %645 = dma.done [#allocation21], 16
        $region124: #{_encoder_forward.1} parent=83 // pred_fallthru
          _
        %p646 = scmp.lt.s32.totalorder %s40, 1
        %s647 = scalar_select %p646, %s40, 1
        %p648 = scmp.lt.s32.totalorder %s41, 0
        %s649 = scalar_select %p648, %s41, 0
        %s650 = sadd.s32 %s649, %s647
        %s651 = smul.addr %s650, 8
        %s652 = scalar_lea.vmem %s0, %s651
        %p653 = pneg %p71
        %p654 = pneg %p68
        %p655 = scmp.lt.s32.totalorder %s40, 1
        %s656 = scalar_select %p655, %s40, 1
        %s657 = smul.addr %s656, 4
        %s658 = scalar_lea.vmem %s1, %s657
        %p659 = pneg %p97
        %p660 = pneg %p94
        %p661 = pneg %p118
        %p662 = pneg %p115
        %p663 = pneg %p139
        %p664 = pneg %p136
        %p665 = pneg %p160
        %p666 = pneg %p157
        %p667 = pneg %p181
        %p668 = pneg %p178
        %p669 = pneg %p202
        %p670 = pneg %p199
        %p671 = pneg %p223
        %p672 = pneg %p220
        %p673 = pneg %p244
        %p674 = pneg %p241
        %p675 = pneg %p265
        %p676 = pneg %p262
        %p677 = pneg %p286
        %p678 = pneg %p283
        %p679 = pneg %p307
        %p680 = pneg %p304
        %p681 = pneg %p328
        %p682 = pneg %p325
        %p683 = pneg %p349
        %p684 = pneg %p346
        %p685 = pneg %p370
        %p686 = pneg %p367
        %p687 = pneg %p391
        %p688 = pneg %p388
        %p689 = pneg %p419
        %p690 = pneg %p416
        %s691 = sand.u32 %s406, 1
        %s692 = scalar_lea.sflag [#allocation7], %s691
        %s693 = sand.u32 %s406, 1
        %s694 = smul.addr %s693, 8
        %s695 = scalar_lea.vmem [#allocation22], %s694
        %p696 = scmp.lt.s32.totalorder %s40, 1
        %s697 = scalar_select %p696, %s40, 1
        %p698 = scmp.lt.s32.totalorder %s41, 0
        %s699 = scalar_select %p698, %s41, 0
        %s700 = sadd.s32 %s699, %s697
        %s701 = smul.addr %s700, 8
        %s702 = scalar_lea.vmem %s0, %s701
        %p703 = scmp.lt.s32.totalorder %s40, 1
        %s704 = scalar_select %p703, %s40, 1
        %s705 = smul.addr %s704, 4
        %s706 = scalar_lea.vmem %s1, %s705
        %p708 = scmp.eq.s32.totalorder %s41, 0
        // Predicated region
        $region125: #{_encoder_forward.1} parent=83 // pred_check
          %p709 = pneg %p708
        $region126: #{_encoder_forward.1} parent=83 // pred_check_branch
          %711 = sbr.rel (%p709) target = $region128
        $region127: #{_encoder_forward.1} parent=83 // pred_region
          %v712 = vld [vmem:[%s706] sm:$0xf]
          %v713 = vld [vmem:[%s4] sm:$0xf]
          %v714 = vld [vmem:[%s4 + $0x4] sm:$0xf]
          %v715 = vld [vmem:[%s4 + $0x8] sm:$0xf]
          %v716 = vld [vmem:[%s4 + $0xc] sm:$0xf]
          %v717 = vld [vmem:[#allocation8] sm:$0x1]
          %v719 = vperm.slane %v717, 0
          %v725 = vunpack.c.l.b16 %v713
          %v726 = vunpack.c.l.b16 %v714
          %v727 = vunpack.c.l.b16 %v715
          %v728 = vunpack.c.l.b16 %v716
          %v729 = vpack.c.b16 %v726, %v725
          %v730 = vpack.c.b16 %v728, %v727
          %vm733 = vcmask 261120
          %v735 = vsel %vm733, %v712, 0
          %737 = vmatpush.bf16.msra.mxu0 0
          %738 = vmatpush.bf16.msra.mxu0 0
          %739 = vmatpush.bf16.msra.mxu0 0
          %740 = vmatpush.bf16.msra.mxu0 0
          %741 = vmatpush.bf16.msra.mxu0 0
          %742 = vmatpush.bf16.msra.mxu0 0
          %743 = vmatpush.bf16.msra.mxu0 %v730
          %744 = vmatpush.bf16.msra.mxu0 %v729
          %745 = vmatmul.bf16.gmra.mxu0 %v735
          %v746 = vpop.f32.mrf.mxu0
          %v747 = vadd.f32 %v719, %v746
          %v748 = vpop.f32.mrf.mxu0
          %749 = vdwg.mxu0
          %v750 = vpack.c.bf16 %v747, %v747
          %vm751 = vcmask 257024
          %752 = vst.msk [vmem:[#allocation2] sm:$0xf] %vm751, %v750
          %754 = vrot.lane.b32.xlu0 %v750, 96
          %v755 = vpop.permute.xlu0 %754
          %757 = vst.msk [vmem:[#allocation3] sm:$0xf] %vm751, %v755
        $region128: #{_encoder_forward.1} parent=83 // pred_fallthru
          _
        %v758 = vld [vmem:[%s702] sm:$0xff]
        %v759 = vpack.c.bf16 %v758, %v758
        %v760 = vld [vmem:[%s2] sm:$0xf]
        %v761 = vld [vmem:[%s2 + $0x4] sm:$0xf]
        %v762 = vld [vmem:[%s2 + $0x8] sm:$0xf]
        %v763 = vld [vmem:[%s2 + $0xc] sm:$0xf]
        %v764 = vld [vmem:[#allocation5] sm:$0x1]
        %v766 = vperm.slane %v764, 0
        %v772 = vunpack.c.l.b16 %v760
        %v773 = vunpack.c.l.b16 %v761
        %v774 = vunpack.c.l.b16 %v762
        %v775 = vunpack.c.l.b16 %v763
        %v776 = vpack.c.b16 %v773, %v772
        %v777 = vpack.c.b16 %v775, %v774
        %vm780 = vcmask 261120
        %v782 = vsel %vm780, %v759, 0
        %784 = vmatpush.bf16.msra.mxu0 0
        %785 = vmatpush.bf16.msra.mxu0 0
        %786 = vmatpush.bf16.msra.mxu0 0
        %787 = vmatpush.bf16.msra.mxu0 0
        %788 = vmatpush.bf16.msra.mxu0 0
        %789 = vmatpush.bf16.msra.mxu0 0
        %790 = vmatpush.bf16.msra.mxu0 %v777
        %791 = vmatpush.bf16.msra.mxu0 %v776
        %792 = vmatmul.bf16.gmra.mxu0 %v782
        %v793 = vpop.f32.mrf.mxu0
        %v794 = vadd.f32 %v766, %v793
        %v795 = vpop.f32.mrf.mxu0
        %796 = vdwg.mxu0
        %v797 = vpack.c.bf16 %v794, %v794
        %v798 = vld [vmem:[#allocation2] sm:$0xf]
        %v799 = vld [vmem:[#allocation3] sm:$0xf]
        %vm800 = vcmask 64512
        %v802 = vsel %vm800, %v797, 0
        %v805 = vsel %vm800, %v798, 0
        %807 = vmatpush.bf16.xpose.msra.mxu0 0
        %808 = vmatpush.bf16.xpose.msra.mxu0 0
        %809 = vmatpush.bf16.xpose.msra.mxu0 0
        %810 = vmatpush.bf16.xpose.msra.mxu0 0
        %811 = vmatpush.bf16.xpose.msra.mxu0 0
        %812 = vmatpush.bf16.xpose.msra.mxu0 0
        %813 = vmatpush.bf16.xpose.msra.mxu0 0
        %814 = vmatpush.bf16.xpose.msra.mxu0 %v805
        %815 = vmatmul.bf16.gmra.mxu0 %v802
        %v816 = vpop.f32.mrf.mxu0
        %v817 = vadd.f32 0.0, %v816
        %v818 = vpop.f32.mrf.mxu0
        %819 = vdwg.mxu0
        %v820 = vmul.f32 %v817, 0.35355338
        %v821 = vsel %vm800, %v820, -inf
        %822 = vmax.xlane.f32.xlu0 %v821
        %v823 = vpop.xlane.xlu0 %822
        %v824 = vsub.f32 %v820, %v823
        %v825 = vmul.f32 %v824, 1.442695
        %v826 = vpow.pop %v825
        %v827 = vsel %vm800, %v826, 0.0
        %828 = vadd.xlane.f32.xlu0 %v827
        %v829 = vpop.xlane.xlu0 %828
        %v830 = vrcp.pop %v829
        %v831 = vmul.f32 %v826, %v830
        %v832 = vpack.c.bf16 %v831, %v831
        %v834 = vsel %vm800, %v832, 0
        %vm836 = vcmask 1043456
        %v838 = vsel %vm836, %v799, 0
        %840 = vmatpush.bf16.msra.mxu0 0
        %841 = vmatpush.bf16.msra.mxu0 0
        %842 = vmatpush.bf16.msra.mxu0 0
        %843 = vmatpush.bf16.msra.mxu0 0
        %844 = vmatpush.bf16.msra.mxu0 0
        %845 = vmatpush.bf16.msra.mxu0 0
        %846 = vmatpush.bf16.msra.mxu0 0
        %847 = vmatpush.bf16.msra.mxu0 %v838
        %848 = vmatmul.bf16.gmra.mxu0 %v834
        %v849 = vpop.f32.mrf.mxu0
        %v850 = vadd.f32 0.0, %v849
        %v851 = vpop.f32.mrf.mxu0
        %852 = vdwg.mxu0
        %v853 = vpack.c.bf16 %v850, %v850
        %vm854 = vcmask 60416
        %855 = vst.msk [vmem:[#allocation4] sm:$0xf] %vm854, %v853
        %v857 = vunpack.c.l.b16 %v797
        %v858 = vpack.c.b16 %v857, %v857
        %859 = vrot.lane.b32.xlu0 %v858, 120
        %v860 = vpop.permute.xlu0 %859
        %v862 = vunpack.c.l.b16 %v798
        %v863 = vpack.c.b16 %v862, %v862
        %864 = vrot.lane.b32.xlu0 %v863, 120
        %v865 = vpop.permute.xlu0 %864
        %v867 = vsel %vm800, %v860, 0
        %v870 = vsel %vm800, %v865, 0
        %872 = vmatpush.bf16.xpose.msra.mxu0 0
        %873 = vmatpush.bf16.xpose.msra.mxu0 0
        %874 = vmatpush.bf16.xpose.msra.mxu0 0
        %875 = vmatpush.bf16.xpose.msra.mxu0 0
        %876 = vmatpush.bf16.xpose.msra.mxu0 0
        %877 = vmatpush.bf16.xpose.msra.mxu0 0
        %878 = vmatpush.bf16.xpose.msra.mxu0 0
        %879 = vmatpush.bf16.xpose.msra.mxu0 %v870
        %880 = vmatmul.bf16.gmra.mxu0 %v867
        %v881 = vpop.f32.mrf.mxu0
        %v882 = vadd.f32 0.0, %v881
        %v883 = vpop.f32.mrf.mxu0
        %884 = vdwg.mxu0
        %v885 = vmul.f32 %v882, 0.35355338
        %v886 = vsel %vm800, %v885, -inf
        %887 = vmax.xlane.f32.xlu0 %v886
        %v888 = vpop.xlane.xlu0 %887
        %v889 = vsub.f32 %v885, %v888
        %v890 = vmul.f32 %v889, 1.442695
        %v891 = vpow.pop %v890
        %v892 = vsel %vm800, %v891, 0.0
        %893 = vadd.xlane.f32.xlu0 %v892
        %v894 = vpop.xlane.xlu0 %893
        %v895 = vrcp.pop %v894
        %v896 = vmul.f32 %v891, %v895
        %v897 = vpack.c.bf16 %v896, %v896
        %v899 = vunpack.c.l.b16 %v799
        %v900 = vpack.c.b16 %v899, %v899
        %901 = vrot.lane.b32.xlu0 %v900, 120
        %v902 = vpop.permute.xlu0 %901
        %v904 = vsel %vm800, %v897, 0
        %v907 = vsel %vm836, %v902, 0
        %909 = vmatpush.bf16.msra.mxu0 0
        %910 = vmatpush.bf16.msra.mxu0 0
        %911 = vmatpush.bf16.msra.mxu0 0
        %912 = vmatpush.bf16.msra.mxu0 0
        %913 = vmatpush.bf16.msra.mxu0 0
        %914 = vmatpush.bf16.msra.mxu0 0
        %915 = vmatpush.bf16.msra.mxu0 0
        %916 = vmatpush.bf16.msra.mxu0 %v907
        %917 = vmatmul.bf16.gmra.mxu0 %v904
        %v918 = vpop.f32.mrf.mxu0
        %v919 = vadd.f32 0.0, %v918
        %v920 = vpop.f32.mrf.mxu0
        %921 = vdwg.mxu0
        %v922 = vpack.c.bf16 %v919, %v919
        %924 = vrot.lane.b32.xlu0 %v922, 8
        %v925 = vpop.permute.xlu0 %924
        %vm927 = vcmask 126016
        %928 = vst.msk [vmem:[#allocation4] sm:$0xf] %vm927, %v925
        %929 = vrot.lane.b32.xlu0 %v858, 112
        %v930 = vpop.permute.xlu0 %929
        %931 = vrot.lane.b32.xlu0 %v863, 112
        %v932 = vpop.permute.xlu0 %931
        %v934 = vsel %vm800, %v930, 0
        %v937 = vsel %vm800, %v932, 0
        %939 = vmatpush.bf16.xpose.msra.mxu0 0
        %940 = vmatpush.bf16.xpose.msra.mxu0 0
        %941 = vmatpush.bf16.xpose.msra.mxu0 0
        %942 = vmatpush.bf16.xpose.msra.mxu0 0
        %943 = vmatpush.bf16.xpose.msra.mxu0 0
        %944 = vmatpush.bf16.xpose.msra.mxu0 0
        %945 = vmatpush.bf16.xpose.msra.mxu0 0
        %946 = vmatpush.bf16.xpose.msra.mxu0 %v937
        %947 = vmatmul.bf16.gmra.mxu0 %v934
        %v948 = vpop.f32.mrf.mxu0
        %v949 = vadd.f32 0.0, %v948
        %v950 = vpop.f32.mrf.mxu0
        %951 = vdwg.mxu0
        %v952 = vmul.f32 %v949, 0.35355338
        %v953 = vsel %vm800, %v952, -inf
        %954 = vmax.xlane.f32.xlu0 %v953
        %v955 = vpop.xlane.xlu0 %954
        %v956 = vsub.f32 %v952, %v955
        %v957 = vmul.f32 %v956, 1.442695
        %v958 = vpow.pop %v957
        %v959 = vsel %vm800, %v958, 0.0
        %960 = vadd.xlane.f32.xlu0 %v959
        %v961 = vpop.xlane.xlu0 %960
        %v962 = vrcp.pop %v961
        %v963 = vmul.f32 %v958, %v962
        %v964 = vpack.c.bf16 %v963, %v963
        %965 = vrot.lane.b32.xlu0 %v900, 112
        %v966 = vpop.permute.xlu0 %965
        %v968 = vsel %vm800, %v964, 0
        %v971 = vsel %vm836, %v966, 0
        %973 = vmatpush.bf16.msra.mxu0 0
        %974 = vmatpush.bf16.msra.mxu0 0
        %975 = vmatpush.bf16.msra.mxu0 0
        %976 = vmatpush.bf16.msra.mxu0 0
        %977 = vmatpush.bf16.msra.mxu0 0
        %978 = vmatpush.bf16.msra.mxu0 0
        %979 = vmatpush.bf16.msra.mxu0 0
        %980 = vmatpush.bf16.msra.mxu0 %v971
        %981 = vmatmul.bf16.gmra.mxu0 %v968
        %v982 = vpop.f32.mrf.mxu0
        %v983 = vadd.f32 0.0, %v982
        %v984 = vpop.f32.mrf.mxu0
        %985 = vdwg.mxu0
        %v986 = vpack.c.bf16 %v983, %v983
        %988 = vrot.lane.b32.xlu0 %v986, 16
        %v989 = vpop.permute.xlu0 %988
        %vm991 = vcmask 191616
        %992 = vst.msk [vmem:[#allocation4] sm:$0xf] %vm991, %v989
        %993 = vrot.lane.b32.xlu0 %v858, 104
        %v994 = vpop.permute.xlu0 %993
        %995 = vrot.lane.b32.xlu0 %v863, 104
        %v996 = vpop.permute.xlu0 %995
        %v998 = vsel %vm800, %v994, 0
        %v1001 = vsel %vm800, %v996, 0
        %1003 = vmatpush.bf16.xpose.msra.mxu0 0
        %1004 = vmatpush.bf16.xpose.msra.mxu0 0
        %1005 = vmatpush.bf16.xpose.msra.mxu0 0
        %1006 = vmatpush.bf16.xpose.msra.mxu0 0
        %1007 = vmatpush.bf16.xpose.msra.mxu0 0
        %1008 = vmatpush.bf16.xpose.msra.mxu0 0
        %1009 = vmatpush.bf16.xpose.msra.mxu0 0
        %1010 = vmatpush.bf16.xpose.msra.mxu0 %v1001
        %1011 = vmatmul.bf16.gmra.mxu0 %v998
        %v1012 = vpop.f32.mrf.mxu0
        %v1013 = vadd.f32 0.0, %v1012
        %v1014 = vpop.f32.mrf.mxu0
        %1015 = vdwg.mxu0
        %v1016 = vmul.f32 %v1013, 0.35355338
        %v1017 = vsel %vm800, %v1016, -inf
        %1018 = vmax.xlane.f32.xlu0 %v1017
        %v1019 = vpop.xlane.xlu0 %1018
        %v1020 = vsub.f32 %v1016, %v1019
        %v1021 = vmul.f32 %v1020, 1.442695
        %v1022 = vpow.pop %v1021
        %v1023 = vsel %vm800, %v1022, 0.0
        %1024 = vadd.xlane.f32.xlu0 %v1023
        %v1025 = vpop.xlane.xlu0 %1024
        %v1026 = vrcp.pop %v1025
        %v1027 = vmul.f32 %v1022, %v1026
        %v1028 = vpack.c.bf16 %v1027, %v1027
        %1029 = vrot.lane.b32.xlu0 %v900, 104
        %v1030 = vpop.permute.xlu0 %1029
        %v1032 = vsel %vm800, %v1028, 0
        %v1035 = vsel %vm836, %v1030, 0
        %1037 = vmatpush.bf16.msra.mxu0 0
        %1038 = vmatpush.bf16.msra.mxu0 0
        %1039 = vmatpush.bf16.msra.mxu0 0
        %1040 = vmatpush.bf16.msra.mxu0 0
        %1041 = vmatpush.bf16.msra.mxu0 0
        %1042 = vmatpush.bf16.msra.mxu0 0
        %1043 = vmatpush.bf16.msra.mxu0 0
        %1044 = vmatpush.bf16.msra.mxu0 %v1035
        %1045 = vmatmul.bf16.gmra.mxu0 %v1032
        %v1046 = vpop.f32.mrf.mxu0
        %v1047 = vadd.f32 0.0, %v1046
        %v1048 = vpop.f32.mrf.mxu0
        %1049 = vdwg.mxu0
        %v1050 = vpack.c.bf16 %v1047, %v1047
        %1052 = vrot.lane.b32.xlu0 %v1050, 24
        %v1053 = vpop.permute.xlu0 %1052
        %vm1055 = vcmask 257216
        %1056 = vst.msk [vmem:[#allocation4] sm:$0xf] %vm1055, %v1053
        %v1057 = vld [vmem:[#allocation4] sm:$0xf]
        %v1058 = vld [vmem:[%s6] sm:$0xf]
        %v1059 = vld [vmem:[%s6 + $0x4] sm:$0xf]
        %v1060 = vld [vmem:[%s6 + $0x8] sm:$0xf]
        %v1061 = vld [vmem:[%s6 + $0xc] sm:$0xf]
        %v1062 = vld [vmem:[#allocation10] sm:$0x1]
        %v1064 = vperm.slane %v1062, 0
        %v1070 = vunpack.c.l.b16 %v1058
        %v1071 = vunpack.c.l.b16 %v1059
        %v1072 = vunpack.c.l.b16 %v1060
        %v1073 = vunpack.c.l.b16 %v1061
        %v1074 = vpack.c.b16 %v1071, %v1070
        %v1075 = vpack.c.b16 %v1073, %v1072
        %v1079 = vsel %vm780, %v1057, 0
        %1081 = vmatpush.bf16.msra.mxu0 0
        %1082 = vmatpush.bf16.msra.mxu0 0
        %1083 = vmatpush.bf16.msra.mxu0 0
        %1084 = vmatpush.bf16.msra.mxu0 0
        %1085 = vmatpush.bf16.msra.mxu0 0
        %1086 = vmatpush.bf16.msra.mxu0 0
        %1087 = vmatpush.bf16.msra.mxu0 %v1075
        %1088 = vmatpush.bf16.msra.mxu0 %v1074
        %1089 = vmatmul.bf16.gmra.mxu0 %v1079
        %v1090 = vpop.f32.mrf.mxu0
        %v1091 = vadd.f32 %v1064, %v1090
        %v1092 = vpop.f32.mrf.mxu0
        %1093 = vdwg.mxu0
        %v1094 = vadd.f32 %v758, %v1091
        %v1095 = vld [vmem:[#allocation16] sm:$0x1]
        %v1096 = vld [vmem:[#allocation17] sm:$0x1]
        %v1097 = vsel %vm780, %v1094, 0.0
        %1098 = vadd.xlane.f32.xlu0 %v1097
        %v1099 = vpop.xlane.xlu0 %1098
        %v1100 = vrcp.pop 32.0
        %v1101 = vmul.f32 32.0, %v1100
        %v1102 = vsub.f32 1.0, %v1101
        %v1103 = vmul.f32 %v1100, %v1102
        %v1104 = vadd.f32 %v1100, %v1103
        %vm1105 = vweird.f32 %v1100
        %v1106 = vsel %vm1105, %v1100, %v1104
        %v1107 = vmul.f32 %v1099, %v1106
        %v1108 = vsub.f32 %v1094, %v1107
        %v1109 = vmul.f32 %v1108, %v1108
        %v1110 = vsel %vm780, %v1109, 0.0
        %1111 = vadd.xlane.f32.xlu0 %v1110
        %v1112 = vpop.xlane.xlu0 %1111
        %v1113 = vmul.f32 %v1112, %v1106
        %v1114 = vadd.f32 %v1113, 1e-05
        %v1115 = vrsqrt.pop %v1114
        %v1116 = vmul.f32 %v1115, %v1114
        %v1117 = vmul.f32 %v1116, %v1115
        %v1118 = vmul.f32 0.5, %v1117
        %v1119 = vsub.f32 1.5, %v1118
        %v1120 = vmul.f32 %v1115, %v1119
        %vm1121 = vweird.f32 %v1114
        %vm1122 = vweird.f32 %v1115
        %vm1123 = vmor %vm1121, %vm1122
        %v1124 = vsel %vm1123, %v1115, %v1120
        %v1125 = vmul.f32 %v1108, %v1124
        %v1127 = vperm.slane %v1095, 0
        %v1129 = vmul.f32 %v1125, %v1127
        %v1131 = vperm.slane %v1096, 0
        %v1133 = vadd.f32 %v1129, %v1131
        %v1134 = vpack.c.bf16 %v1133, %v1133
        %v1135 = vld [vmem:[#allocation11] sm:$0xf]
        %v1136 = vld [vmem:[#allocation11 + $0x4] sm:$0xf]
        %v1137 = vld [vmem:[#allocation11 + $0x8] sm:$0xf]
        %v1138 = vld [vmem:[#allocation11 + $0xc] sm:$0xf]
        %v1139 = vld [vmem:[#allocation13] sm:$0x1]
        %v1141 = vperm.slane %v1139, 0
        %v1147 = vunpack.c.l.b16 %v1135
        %v1148 = vunpack.c.l.b16 %v1136
        %v1149 = vunpack.c.l.b16 %v1137
        %v1150 = vunpack.c.l.b16 %v1138
        %v1151 = vpack.c.b16 %v1148, %v1147
        %v1152 = vpack.c.b16 %v1150, %v1149
        %v1156 = vsel %vm780, %v1134, 0
        %1158 = vmatpush.bf16.msra.mxu0 0
        %1159 = vmatpush.bf16.msra.mxu0 0
        %1160 = vmatpush.bf16.msra.mxu0 0
        %1161 = vmatpush.bf16.msra.mxu0 0
        %1162 = vmatpush.bf16.msra.mxu0 0
        %1163 = vmatpush.bf16.msra.mxu0 0
        %1164 = vmatpush.bf16.msra.mxu0 %v1152
        %1165 = vmatpush.bf16.msra.mxu0 %v1151
        %1166 = vmatmul.bf16.gmra.mxu0 %v1156
        %v1167 = vpop.f32.mrf.mxu0
        %v1168 = vadd.f32 %v1141, %v1167
        %v1169 = vpop.f32.mrf.mxu0
        %1170 = vdwg.mxu0
        %v1171 = vmax.f32 %v1168, 0.0
        %v1172 = vpack.c.bf16 %v1171, %v1171
        %v1173 = vld [vmem:[%s10] sm:$0xf]
        %v1174 = vld [vmem:[%s10 + $0x4] sm:$0xf]
        %v1175 = vld [vmem:[%s10 + $0x8] sm:$0xf]
        %v1176 = vld [vmem:[%s10 + $0xc] sm:$0xf]
        %v1177 = vld [vmem:[%s10 + $0x10] sm:$0xf]
        %v1178 = vld [vmem:[%s10 + $0x14] sm:$0xf]
        %v1179 = vld [vmem:[%s10 + $0x18] sm:$0xf]
        %v1180 = vld [vmem:[%s10 + $0x1c] sm:$0xf]
        %v1181 = vld [vmem:[#allocation14] sm:$0x1]
        %v1183 = vperm.slane %v1181, 0
        %v1193 = vunpack.c.l.b16 %v1173
        %v1194 = vunpack.c.l.b16 %v1174
        %v1195 = vunpack.c.l.b16 %v1175
        %v1196 = vunpack.c.l.b16 %v1176
        %v1197 = vunpack.c.l.b16 %v1177
        %v1198 = vunpack.c.l.b16 %v1178
        %v1199 = vunpack.c.l.b16 %v1179
        %v1200 = vunpack.c.l.b16 %v1180
        %v1201 = vpack.c.b16 %v1194, %v1193
        %v1202 = vpack.c.b16 %v1196, %v1195
        %v1203 = vpack.c.b16 %v1198, %v1197
        %v1204 = vpack.c.b16 %v1200, %v1199
        %vm1209 = vcmask 523264
        %v1211 = vsel %vm1209, %v1172, 0
        %1213 = vmatpush.bf16.msra.mxu0 0
        %1214 = vmatpush.bf16.msra.mxu0 0
        %1215 = vmatpush.bf16.msra.mxu0 0
        %1216 = vmatpush.bf16.msra.mxu0 0
        %1217 = vmatpush.bf16.msra.mxu0 %v1204
        %1218 = vmatpush.bf16.msra.mxu0 %v1203
        %1219 = vmatpush.bf16.msra.mxu0 %v1202
        %1220 = vmatpush.bf16.msra.mxu0 %v1201
        %1221 = vmatmul.bf16.gmra.mxu0 %v1211
        %v1222 = vpop.f32.mrf.mxu0
        %v1223 = vadd.f32 %v1183, %v1222
        %v1224 = vpop.f32.mrf.mxu0
        %1225 = vdwg.mxu0
        %v1226 = vadd.f32 %v1133, %v1223
        %v1227 = vld [vmem:[#allocation19] sm:$0x1]
        %v1228 = vld [vmem:[#allocation20] sm:$0x1]
        %v1229 = vsel %vm780, %v1226, 0.0
        %1230 = vadd.xlane.f32.xlu0 %v1229
        %v1231 = vpop.xlane.xlu0 %1230
        %v1232 = vmul.f32 %v1231, %v1106
        %v1233 = vsub.f32 %v1226, %v1232
        %v1234 = vmul.f32 %v1233, %v1233
        %v1235 = vsel %vm780, %v1234, 0.0
        %1236 = vadd.xlane.f32.xlu0 %v1235
        %v1237 = vpop.xlane.xlu0 %1236
        %v1238 = vmul.f32 %v1237, %v1106
        %v1239 = vadd.f32 %v1238, 1e-05
        %v1240 = vrsqrt.pop %v1239
        %v1241 = vmul.f32 %v1240, %v1239
        %v1242 = vmul.f32 %v1241, %v1240
        %v1243 = vmul.f32 0.5, %v1242
        %v1244 = vsub.f32 1.5, %v1243
        %v1245 = vmul.f32 %v1240, %v1244
        %vm1246 = vweird.f32 %v1239
        %vm1247 = vweird.f32 %v1240
        %vm1248 = vmor %vm1246, %vm1247
        %v1249 = vsel %vm1248, %v1240, %v1245
        %v1250 = vmul.f32 %v1233, %v1249
        %v1252 = vperm.slane %v1227, 0
        %v1254 = vmul.f32 %v1250, %v1252
        %v1256 = vperm.slane %v1228, 0
        %v1258 = vadd.f32 %v1254, %v1256
        %1259 = vst.msk [vmem:[%s695] sm:$0xff] %vm780, %v1258
        %s1260 = sand.u32 %s406, 1
        %s1261 = scalar_lea.sflag [#allocation7], %s1260
        %s1262 = sand.u32 %s406, 1
        %s1263 = smul.addr %s1262, 8
        %s1264 = scalar_lea.vmem [#allocation22], %s1263
        // Predicated region
        $region129: #{_encoder_forward.1} parent=83 // pred_check
          %p1265 = pneg %p416
        $region130: #{_encoder_forward.1} parent=83 // pred_check_branch
          %1267 = sbr.rel (%p1265) target = $region132
        $region131: #{_encoder_forward.1} parent=83 // pred_region
          %1269 = vsyncadd %s1261, 0
          %s1270 = sadd.s32 %s41, %s40
          %s1271 = smul.addr %s1270, 8
          %s1272 = scalar_lea.hbm %s16, %s1271
          %s1274 = sshll.u32 %s1264, 4
          %s1275 = int_to_ptr.vmem [resolvable:$true] %s1274
          %s1276 = sshll.u32 %s1272, 4
          %s1277 = int_to_ptr.hbm [resolvable:$true] %s1276
          %1279 = dma.vmem_to_hbm [thread:$0]  %s1275, 128, %s1277, %s1261
        $region132: #{_encoder_forward.1} parent=83 // pred_fallthru
          _
      $region84: #{_encoder_forward.1} parent=5 // pred_fallthru
        _
      %p1280 = scmp.le.s32.totalorder 2, %s31
      // Predicated region
      $region133: #{_encoder_forward.1} parent=5 // pred_check
        %p1281 = pneg %p1280
      $region134: #{_encoder_forward.1} parent=5 // pred_check_branch
        %1283 = sbr.rel (%p1281) target = $region136
      $region135: #{_encoder_forward.1} parent=5 // pred_region
        %s1284 = ssub.s32 %s31, 2
        // Predicated region
        $region137: #{_encoder_forward.1} parent=135 // pred_check
          %p1285 = pneg %p422
        $region138: #{_encoder_forward.1} parent=135 // pred_check_branch
          %1287 = sbr.rel (%p1285) target = $region140
        $region139: #{_encoder_forward.1} parent=135 // pred_region
          %s1288 = sand.u32 %s407, 1
          %s1289 = scalar_lea.sflag [#allocation7], %s1288
          %s1290 = sand.u32 %s407, 1
          %s1291 = smul.addr %s1290, 8
          %s1292 = scalar_lea.vmem [#allocation22], %s1291
          %1294 = dma.done %s1289, 128
        $region140: #{_encoder_forward.1} parent=135 // pred_fallthru
          _
      $region136: #{_encoder_forward.1} parent=5 // pred_fallthru
        _
    $region6: #{_encoder_forward.1} parent=1 // loop_footer
      %s35 = sadd.s32 1, %s31
    $region7: #{_encoder_forward.1} parent=1 // loop_footer_branch
      %30 = sbr.rel target = $region3
    $region8: #{_encoder_forward.1} parent=1 // loop_exit
      _
    %1295 = vsyncpa [#allocation6], 1
    %s1296 = scalar_lea.sflag [#allocation6], 1
    %1297 = vsyncpa %s1296, 1
    %1298 = vsyncpa [#allocation9], 1
    %1299 = vsyncpa [#allocation12], 1
    %1300 = vsyncpa [#allocation15], 1
    %1301 = vsyncpa [#allocation18], 1
    %1302 = vsyncpa [#allocation21], 1
    %1303 = vsyncpa [#allocation7], 1
    %s1304 = scalar_lea.sflag [#allocation7], 1
    %1305 = vsyncpa %s1304, 1

// kernel: _encoder_forward.1
$region0: #{_encoder_forward.1}
  #allocation0 [shape = 'u32[]', space=smem, size = 0x4, offset = 0x4, fixed_abs, tag = 'smem constant byte address 0x4 - core index']
  #allocation1 [shape = 'u32[72,128]{1,0:T(1,128)}', space=vmem, size = 0x9000, scoped, tag = 'internal scratch']
  #allocation2 [shape = 'bf16[8,32]{1,0:T(8,128)(2,1)}', space=vmem, size = 0x800, scoped, tag = 'scratch operand']
  #allocation3 [shape = 'bf16[8,32]{1,0:T(8,128)(2,1)}', space=vmem, size = 0x800, scoped, tag = 'scratch operand']
  #allocation4 [shape = 'bf16[8,32]{1,0:T(8,128)(2,1)}', space=vmem, size = 0x800, scoped, tag = 'scratch operand']
  %s0 = inlined_call_operand.vmem [shape: f32[2,8,32], index: 0, kind: input, shape index: {}]
  %s1 = inlined_call_operand.vmem [shape: bf16[2,8,32], index: 1, kind: input, shape index: {}]
  %s2 = inlined_call_operand.vmem [shape: bf16[32,32], index: 2, kind: input, shape index: {}]
  %s3 = inlined_call_operand.hbm [shape: f32[1,32], index: 3, kind: input, shape index: {}]
  %s4 = inlined_call_operand.vmem [shape: bf16[32,64], index: 4, kind: input, shape index: {}]
  %s5 = inlined_call_operand.hbm [shape: f32[1,64], index: 5, kind: input, shape index: {}]
  %s6 = inlined_call_operand.vmem [shape: bf16[32,32], index: 6, kind: input, shape index: {}]
  %s7 = inlined_call_operand.hbm [shape: f32[1,32], index: 7, kind: input, shape index: {}]
  %s8 = inlined_call_operand.hbm [shape: bf16[32,64], index: 8, kind: input, shape index: {}]
  %s9 = inlined_call_operand.hbm [shape: f32[1,64], index: 9, kind: input, shape index: {}]
  %s10 = inlined_call_operand.vmem [shape: bf16[64,32], index: 10, kind: input, shape index: {}]
  %s11 = inlined_call_operand.hbm [shape: f32[1,32], index: 11, kind: input, shape index: {}]
  %s12 = inlined_call_operand.hbm [shape: f32[1,32], index: 12, kind: input, shape index: {}]
  %s13 = inlined_call_operand.hbm [shape: f32[1,32], index: 13, kind: input, shape index: {}]
  %s14 = inlined_call_operand.hbm [shape: f32[1,32], index: 14, kind: input, shape index: {}]
  %s15 = inlined_call_operand.hbm [shape: f32[1,32], index: 15, kind: input, shape index: {}]
  %s16 = inlined_call_operand.hbm [shape: f32[2,8,32], index: 16, kind: output, shape index: {}]
  %s17 = sld [smem:[#allocation0]]
  $region141: #{_encoder_forward.1} parent=0
    _
  %s19 = ssub.s32 1, %s17
  %s20 = scalar_select 0, %s19, %s17
  $region1: #{_encoder_forward.1} parent=0
    #allocation5 [shape = 'u8[512]{0}', space=vmem, size = 0x400, scoped, tag = 'input window, operand 3, single buffered']
    #allocation6 [shape = 's32[2]{0}', space=sflag, size = 0x8, scoped, tag = 'scoped memory for _encoder_forward.1']
    #allocation7 [shape = 's32[2]{0}', space=sflag, size = 0x8, scoped, tag = 'scoped memory for _encoder_forward.1']
    #allocation8 [shape = 'u8[512]{0}', space=vmem, size = 0x400, scoped, tag = 'input window, operand 5, single buffered']
    #allocation9 [shape = 's32[1]{0}', space=sflag, size = 0x4, scoped, tag = 'scoped memory for _encoder_forward.1']
    #allocation10 [shape = 'u8[512]{0}', space=vmem, size = 0x400, scoped, tag = 'input window, operand 7, single buffered']
    #allocation11 [shape = 'u8[8192]{0}', space=vmem, size = 0x2000, scoped, tag = 'input window, operand 8, single buffered']
    #allocation12 [shape = 's32[1]{0}', space=sflag, size = 0x4, scoped, tag = 'scoped memory for _encoder_forward.1']
    #allocation13 [shape = 'u8[512]{0}', space=vmem, size = 0x400, scoped, tag = 'input window, operand 9, single buffered']
    #allocation14 [shape = 'u8[512]{0}', space=vmem, size = 0x400, scoped, tag = 'input window, operand 11, single buffered']
    #allocation15 [shape = 's32[1]{0}', space=sflag, size = 0x4, scoped, tag = 'scoped memory for _encoder_forward.1']
    #allocation16 [shape = 'u8[512]{0}', space=vmem, size = 0x400, scoped, tag = 'input window, operand 12, single buffered']
    #allocation17 [shape = 'u8[512]{0}', space=vmem, size = 0x400, scoped, tag = 'input window, operand 13, single buffered']
    #allocation18 [shape = 's32[1]{0}', space=sflag, size = 0x4, scoped, tag = 'scoped memory for _encoder_forward.1']
    #allocation19 [shape = 'u8[512]{0}', space=vmem, size = 0x400, scoped, tag = 'input window, operand 14, single buffered']
    #allocation20 [shape = 'u8[512]{0}', space=vmem, size = 0x400, scoped, tag = 'input window, operand 15, single buffered']
    #allocation21 [shape = 's32[1]{0}', space=sflag, size = 0x4, scoped, tag = 'scoped memory for _encoder_forward.1']
    #allocation22 [shape = 'u8[8192]{0}', space=vmem, size = 0x2000, scoped, tag = 'output window, operand 0']
    %21 = vsyncpa [#allocation6], 0
    %22 = vsyncpa [#allocation9], 0
    %23 = vsyncpa [#allocation12], 0
    %24 = vsyncpa [#allocation15], 0
    %25 = vsyncpa [#allocation18], 0
    %26 = vsyncpa [#allocation21], 0
    %27 = vsyncpa [#allocation7], 0
    %s28 = scalar_lea.sflag [#allocation7], 1
    %29 = vsyncpa %s28, 0
    loop: start=0, step=1, limit=4
    $region2: #{_encoder_forward.1} parent=1 // loop_pre_header
      _
    $region3: #{_encoder_forward.1} parent=1 // loop_header
      %s31 = sphi 0, %s35
      %p32 = scmp.ge.s32.totalorder %s31, 4
      %s38 = sphi 0, %s50
      %s39 = sphi 0, %s46
      %s40 = sphi 0, %s38
      %s41 = sphi 0, %s39
      %s42 = sphi 0, %s40
      %s43 = sphi 0, %s41
      %s55 = sphi 0, %s57
      %s58 = sphi 0, %s55
      %s59 = sphi 0, %s58
      %s75 = sphi 0, %s59
      %s81 = sphi 0, %s83
      %s84 = sphi 0, %s81
      %s85 = sphi 0, %s84
      %s101 = sphi 0, %s85
      %s105 = sphi 0, %s105
      %s107 = sphi 0, %s105
      %s108 = sphi 0, %s107
      %s122 = sphi 0, %s108
      %s126 = sphi 0, %s126
      %s128 = sphi 0, %s126
      %s129 = sphi 0, %s128
      %s143 = sphi 0, %s129
      %s147 = sphi 0, %s147
      %s149 = sphi 0, %s147
      %s150 = sphi 0, %s149
      %s164 = sphi 0, %s150
      %s168 = sphi 0, %s168
      %s170 = sphi 0, %s168
      %s171 = sphi 0, %s170
      %s185 = sphi 0, %s171
      %s189 = sphi 0, %s189
      %s191 = sphi 0, %s189
      %s192 = sphi 0, %s191
      %s206 = sphi 0, %s192
      %s210 = sphi 0, %s210
      %s212 = sphi 0, %s210
      %s213 = sphi 0, %s212
      %s227 = sphi 0, %s213
      %s231 = sphi 0, %s231
      %s233 = sphi 0, %s231
      %s234 = sphi 0, %s233
      %s248 = sphi 0, %s234
      %s252 = sphi 0, %s252
      %s254 = sphi 0, %s252
      %s255 = sphi 0, %s254
      %s269 = sphi 0, %s255
      %s273 = sphi 0, %s273
      %s275 = sphi 0, %s273
      %s276 = sphi 0, %s275
      %s290 = sphi 0, %s276
      %s294 = sphi 0, %s294
      %s296 = sphi 0, %s294
      %s297 = sphi 0, %s296
      %s311 = sphi 0, %s297
      %s315 = sphi 0, %s315
      %s317 = sphi 0, %s315
      %s318 = sphi 0, %s317
      %s332 = sphi 0, %s318
      %s336 = sphi 0, %s336
      %s338 = sphi 0, %s336
      %s339 = sphi 0, %s338
      %s353 = sphi 0, %s339
      %s357 = sphi 0, %s357
      %s359 = sphi 0, %s357
      %s360 = sphi 0, %s359
      %s374 = sphi 0, %s360
      %s378 = sphi 0, %s378
      %s380 = sphi 0, %s378
      %s381 = sphi 0, %s380
      %s395 = sphi 0, %s381
      %s403 = sphi 0, %s405
      %s406 = sphi 0, %s403
      %s407 = sphi 0, %s406
      %s423 = sphi 0, %s407
    $region4: #{_encoder_forward.1} parent=1 // loop_header_branch
      %34 = sbr.rel (%p32) target = $region8
    $region5: #{_encoder_forward.1} parent=1 // loop_body
      %s36 = ssub.s32 %s31, 1
      %s37 = ssub.s32 %s31, 2
      %s44 = sadd.s32 1, %s39
      %p45 = scmp.ge.s32.totalorder %s44, 1
      %s46 = scalar_select %p45, 0, %s44
      %s47 = sadd.s32 1, %s38
      %s48 = scalar_select %p45, %s47, %s38
      %p49 = scmp.ge.s32.totalorder %s48, 2
      %s50 = scalar_select %p49, 0, %s48
      %s51 = ssub.s32 %s38, %s50
      %s52 = ssub.s32 %s39, %s46
      %s53 = sor.u32 %s51, %s52
      %p54 = scmp.eq.s32.totalorder %s53, 0
      %s56 = sadd.s32 %s55, 1
      %s57 = scalar_select %p54, %s55, %s56
      %p60 = pneg %p54
      %p61 = scmp.eq.s32.totalorder %s31, 1
      %p62 = por %p60, %p61
      %p63 = scmp.ne.s32.totalorder %s55, %s58
      %p64 = scmp.eq.s32.totalorder %s31, 0
      %p65 = por %p63, %p64
      %p66 = scmp.ne.s32.totalorder %s55, %s58
      %p67 = scmp.eq.s32.totalorder %s36, 1
      %p68 = por %p66, %p67
      %p69 = scmp.ne.s32.totalorder %s58, %s59
      %p70 = scmp.eq.s32.totalorder %s36, 0
      %p71 = por %p69, %p70
      %p72 = scmp.ne.s32.totalorder %s58, %s59
      %p73 = scmp.eq.s32.totalorder %s37, 1
      %p74 = por %p72, %p73
      %p76 = scmp.ne.s32.totalorder %s59, %s75
      %p77 = scmp.eq.s32.totalorder %s37, 0
      %p78 = por %p76, %p77
      %s79 = ssub.s32 %s38, %s50
      %p80 = scmp.eq.s32.totalorder %s79, 0
      %s82 = sadd.s32 %s81, 1
      %s83 = scalar_select %p80, %s81, %s82
      %p86 = pneg %p80
      %p87 = scmp.eq.s32.totalorder %s31, 1
      %p88 = por %p86, %p87
      %p89 = scmp.ne.s32.totalorder %s81, %s84
      %p90 = scmp.eq.s32.totalorder %s31, 0
      %p91 = por %p89, %p90
      %p92 = scmp.ne.s32.totalorder %s81, %s84
      %p93 = scmp.eq.s32.totalorder %s36, 1
      %p94 = por %p92, %p93
      %p95 = scmp.ne.s32.totalorder %s84, %s85
      %p96 = scmp.eq.s32.totalorder %s36, 0
      %p97 = por %p95, %p96
      %p98 = scmp.ne.s32.totalorder %s84, %s85
      %p99 = scmp.eq.s32.totalorder %s37, 1
      %p100 = por %p98, %p99
      %p102 = scmp.ne.s32.totalorder %s85, %s101
      %p103 = scmp.eq.s32.totalorder %s37, 0
      %p104 = por %p102, %p103
      %s106 = sadd.s32 %s105, 1
      %p109 = scmp.eq.s32.totalorder %s31, 1
      %p110 = scmp.ne.s32.totalorder %s105, %s107
      %p111 = scmp.eq.s32.totalorder %s31, 0
      %p112 = por %p110, %p111
      %p113 = scmp.ne.s32.totalorder %s105, %s107
      %p114 = scmp.eq.s32.totalorder %s36, 1
      %p115 = por %p113, %p114
      %p116 = scmp.ne.s32.totalorder %s107, %s108
      %p117 = scmp.eq.s32.totalorder %s36, 0
      %p118 = por %p116, %p117
      %p119 = scmp.ne.s32.totalorder %s107, %s108
      %p120 = scmp.eq.s32.totalorder %s37, 1
      %p121 = por %p119, %p120
      %p123 = scmp.ne.s32.totalorder %s108, %s122
      %p124 = scmp.eq.s32.totalorder %s37, 0
      %p125 = por %p123, %p124
      %s127 = sadd.s32 %s126, 1
      %p130 = scmp.eq.s32.totalorder %s31, 1
      %p131 = scmp.ne.s32.totalorder %s126, %s128
      %p132 = scmp.eq.s32.totalorder %s31, 0
      %p133 = por %p131, %p132
      %p134 = scmp.ne.s32.totalorder %s126, %s128
      %p135 = scmp.eq.s32.totalorder %s36, 1
      %p136 = por %p134, %p135
      %p137 = scmp.ne.s32.totalorder %s128, %s129
      %p138 = scmp.eq.s32.totalorder %s36, 0
      %p139 = por %p137, %p138
      %p140 = scmp.ne.s32.totalorder %s128, %s129
      %p141 = scmp.eq.s32.totalorder %s37, 1
      %p142 = por %p140, %p141
      %p144 = scmp.ne.s32.totalorder %s129, %s143
      %p145 = scmp.eq.s32.totalorder %s37, 0
      %p146 = por %p144, %p145
      %s148 = sadd.s32 %s147, 1
      %p151 = scmp.eq.s32.totalorder %s31, 1
      %p152 = scmp.ne.s32.totalorder %s147, %s149
      %p153 = scmp.eq.s32.totalorder %s31, 0
      %p154 = por %p152, %p153
      %p155 = scmp.ne.s32.totalorder %s147, %s149
      %p156 = scmp.eq.s32.totalorder %s36, 1
      %p157 = por %p155, %p156
      %p158 = scmp.ne.s32.totalorder %s149, %s150
      %p159 = scmp.eq.s32.totalorder %s36, 0
      %p160 = por %p158, %p159
      %p161 = scmp.ne.s32.totalorder %s149, %s150
      %p162 = scmp.eq.s32.totalorder %s37, 1
      %p163 = por %p161, %p162
      %p165 = scmp.ne.s32.totalorder %s150, %s164
      %p166 = scmp.eq.s32.totalorder %s37, 0
      %p167 = por %p165, %p166
      %s169 = sadd.s32 %s168, 1
      %p172 = scmp.eq.s32.totalorder %s31, 1
      %p173 = scmp.ne.s32.totalorder %s168, %s170
      %p174 = scmp.eq.s32.totalorder %s31, 0
      %p175 = por %p173, %p174
      %p176 = scmp.ne.s32.totalorder %s168, %s170
      %p177 = scmp.eq.s32.totalorder %s36, 1
      %p178 = por %p176, %p177
      %p179 = scmp.ne.s32.totalorder %s170, %s171
      %p180 = scmp.eq.s32.totalorder %s36, 0
      %p181 = por %p179, %p180
      %p182 = scmp.ne.s32.totalorder %s170, %s171
      %p183 = scmp.eq.s32.totalorder %s37, 1
      %p184 = por %p182, %p183
      %p186 = scmp.ne.s32.totalorder %s171, %s185
      %p187 = scmp.eq.s32.totalorder %s37, 0
      %p188 = por %p186, %p187
      %s190 = sadd.s32 %s189, 1
      %p193 = scmp.eq.s32.totalorder %s31, 1
      %p194 = scmp.ne.s32.totalorder %s189, %s191
      %p195 = scmp.eq.s32.totalorder %s31, 0
      %p196 = por %p194, %p195
      %p197 = scmp.ne.s32.totalorder %s189, %s191
      %p198 = scmp.eq.s32.totalorder %s36, 1
      %p199 = por %p197, %p198
      %p200 = scmp.ne.s32.totalorder %s191, %s192
      %p201 = scmp.eq.s32.totalorder %s36, 0
      %p202 = por %p200, %p201
      %p203 = scmp.ne.s32.totalorder %s191, %s192
      %p204 = scmp.eq.s32.totalorder %s37, 1
      %p205 = por %p203, %p204
      %p207 = scmp.ne.s32.totalorder %s192, %s206
      %p208 = scmp.eq.s32.totalorder %s37, 0
      %p209 = por %p207, %p208
      %s211 = sadd.s32 %s210, 1
      %p214 = scmp.eq.s32.totalorder %s31, 1
      %p215 = scmp.ne.s32.totalorder %s210, %s212
      %p216 = scmp.eq.s32.totalorder %s31, 0
      %p217 = por %p215, %p216
      %p218 = scmp.ne.s32.totalorder %s210, %s212
      %p219 = scmp.eq.s32.totalorder %s36, 1
      %p220 = por %p218, %p219
      %p221 = scmp.ne.s32.totalorder %s212, %s213
      %p222 = scmp.eq.s32.totalorder %s36, 0
      %p223 = por %p221, %p222
      %p224 = scmp.ne.s32.totalorder %s212, %s213
      %p225 = scmp.eq.s32.totalorder %s37, 1
      %p226 = por %p224, %p225
      %p228 = scmp.ne.s32.totalorder %s213, %s227
      %p229 = scmp.eq.s32.totalorder %s37, 0
      %p230 = por %p228, %p229
      %s232 = sadd.s32 %s231, 1
      %p235 = scmp.eq.s32.totalorder %s31, 1
      %p236 = scmp.ne.s32.totalorder %s231, %s233
      %p237 = scmp.eq.s32.totalorder %s31, 0
      %p238 = por %p236, %p237
      %p239 = scmp.ne.s32.totalorder %s231, %s233
      %p240 = scmp.eq.s32.totalorder %s36, 1
      %p241 = por %p239, %p240
      %p242 = scmp.ne.s32.totalorder %s233, %s234
      %p243 = scmp.eq.s32.totalorder %s36, 0
      %p244 = por %p242, %p243
      %p245 = scmp.ne.s32.totalorder %s233, %s234
      %p246 = scmp.eq.s32.totalorder %s37, 1
      %p247 = por %p245, %p246
      %p249 = scmp.ne.s32.totalorder %s234, %s248
      %p250 = scmp.eq.s32.totalorder %s37, 0
      %p251 = por %p249, %p250
      %s253 = sadd.s32 %s252, 1
      %p256 = scmp.eq.s32.totalorder %s31, 1
      %p257 = scmp.ne.s32.totalorder %s252, %s254
      %p258 = scmp.eq.s32.totalorder %s31, 0
      %p259 = por %p257, %p258
      %p260 = scmp.ne.s32.totalorder %s252, %s254
      %p261 = scmp.eq.s32.totalorder %s36, 1
      %p262 = por %p260, %p261
      %p263 = scmp.ne.s32.totalorder %s254, %s255
      %p264 = scmp.eq.s32.totalorder %s36, 0
      %p265 = por %p263, %p264
      %p266 = scmp.ne.s32.totalorder %s254, %s255
      %p267 = scmp.eq.s32.totalorder %s37, 1
      %p268 = por %p266, %p267
      %p270 = scmp.ne.s32.totalorder %s255, %s269
      %p271 = scmp.eq.s32.totalorder %s37, 0
      %p272 = por %p270, %p271
      %s274 = sadd.s32 %s273, 1
      %p277 = scmp.eq.s32.totalorder %s31, 1
      %p278 = scmp.ne.s32.totalorder %s273, %s275
      %p279 = scmp.eq.s32.totalorder %s31, 0
      %p280 = por %p278, %p279
      %p281 = scmp.ne.s32.totalorder %s273, %s275
      %p282 = scmp.eq.s32.totalorder %s36, 1
      %p283 = por %p281, %p282
      %p284 = scmp.ne.s32.totalorder %s275, %s276
      %p285 = scmp.eq.s32.totalorder %s36, 0
      %p286 = por %p284, %p285
      %p287 = scmp.ne.s32.totalorder %s275, %s276
      %p288 = scmp.eq.s32.totalorder %s37, 1
      %p289 = por %p287, %p288
      %p291 = scmp.ne.s32.totalorder %s276, %s290
      %p292 = scmp.eq.s32.totalorder %s37, 0
      %p293 = por %p291, %p292
      %s295 = sadd.s32 %s294, 1
      %p298 = scmp.eq.s32.totalorder %s31, 1
      %p299 = scmp.ne.s32.totalorder %s294, %s296
      %p300 = scmp.eq.s32.totalorder %s31, 0
      %p301 = por %p299, %p300
      %p302 = scmp.ne.s32.totalorder %s294, %s296
      %p303 = scmp.eq.s32.totalorder %s36, 1
      %p304 = por %p302, %p303
      %p305 = scmp.ne.s32.totalorder %s296, %s297
      %p306 = scmp.eq.s32.totalorder %s36, 0
      %p307 = por %p305, %p306
      %p308 = scmp.ne.s32.totalorder %s296, %s297
      %p309 = scmp.eq.s32.totalorder %s37, 1
      %p310 = por %p308, %p309
      %p312 = scmp.ne.s32.totalorder %s297, %s311
      %p313 = scmp.eq.s32.totalorder %s37, 0
      %p314 = por %p312, %p313
      %s316 = sadd.s32 %s315, 1
      %p319 = scmp.eq.s32.totalorder %s31, 1
      %p320 = scmp.ne.s32.totalorder %s315, %s317
      %p321 = scmp.eq.s32.totalorder %s31, 0
      %p322 = por %p320, %p321
      %p323 = scmp.ne.s32.totalorder %s315, %s317
      %p324 = scmp.eq.s32.totalorder %s36, 1
      %p325 = por %p323, %p324
      %p326 = scmp.ne.s32.totalorder %s317, %s318
      %p327 = scmp.eq.s32.totalorder %s36, 0
      %p328 = por %p326, %p327
      %p329 = scmp.ne.s32.totalorder %s317, %s318
      %p330 = scmp.eq.s32.totalorder %s37, 1
      %p331 = por %p329, %p330
      %p333 = scmp.ne.s32.totalorder %s318, %s332
      %p334 = scmp.eq.s32.totalorder %s37, 0
      %p335 = por %p333, %p334
      %s337 = sadd.s32 %s336, 1
      %p340 = scmp.eq.s32.totalorder %s31, 1
      %p341 = scmp.ne.s32.totalorder %s336, %s338
      %p342 = scmp.eq.s32.totalorder %s31, 0
      %p343 = por %p341, %p342
      %p344 = scmp.ne.s32.totalorder %s336, %s338
      %p345 = scmp.eq.s32.totalorder %s36, 1
      %p346 = por %p344, %p345
      %p347 = scmp.ne.s32.totalorder %s338, %s339
      %p348 = scmp.eq.s32.totalorder %s36, 0
      %p349 = por %p347, %p348
      %p350 = scmp.ne.s32.totalorder %s338, %s339
      %p351 = scmp.eq.s32.totalorder %s37, 1
      %p352 = por %p350, %p351
      %p354 = scmp.ne.s32.totalorder %s339, %s353
      %p355 = scmp.eq.s32.totalorder %s37, 0
      %p356 = por %p354, %p355
      %s358 = sadd.s32 %s357, 1
      %p361 = scmp.eq.s32.totalorder %s31, 1
      %p362 = scmp.ne.s32.totalorder %s357, %s359
      %p363 = scmp.eq.s32.totalorder %s31, 0
      %p364 = por %p362, %p363
      %p365 = scmp.ne.s32.totalorder %s357, %s359
      %p366 = scmp.eq.s32.totalorder %s36, 1
      %p367 = por %p365, %p366
      %p368 = scmp.ne.s32.totalorder %s359, %s360
      %p369 = scmp.eq.s32.totalorder %s36, 0
      %p370 = por %p368, %p369
      %p371 = scmp.ne.s32.totalorder %s359, %s360
      %p372 = scmp.eq.s32.totalorder %s37, 1
      %p373 = por %p371, %p372
      %p375 = scmp.ne.s32.totalorder %s360, %s374
      %p376 = scmp.eq.s32.totalorder %s37, 0
      %p377 = por %p375, %p376
      %s379 = sadd.s32 %s378, 1
      %p382 = scmp.eq.s32.totalorder %s31, 1
      %p383 = scmp.ne.s32.totalorder %s378, %s380
      %p384 = scmp.eq.s32.totalorder %s31, 0
      %p385 = por %p383, %p384
      %p386 = scmp.ne.s32.totalorder %s378, %s380
      %p387 = scmp.eq.s32.totalorder %s36, 1
      %p388 = por %p386, %p387
      %p389 = scmp.ne.s32.totalorder %s380, %s381
      %p390 = scmp.eq.s32.totalorder %s36, 0
      %p391 = por %p389, %p390
      %p392 = scmp.ne.s32.totalorder %s380, %s381
      %p393 = scmp.eq.s32.totalorder %s37, 1
      %p394 = por %p392, %p393
      %p396 = scmp.ne.s32.totalorder %s381, %s395
      %p397 = scmp.eq.s32.totalorder %s37, 0
      %p398 = por %p396, %p397
      %s399 = ssub.s32 %s38, %s50
      %s400 = ssub.s32 %s39, %s46
      %s401 = sor.u32 %s399, %s400
      %p402 = scmp.eq.s32.totalorder %s401, 0
      %s404 = sadd.s32 %s403, 1
      %s405 = scalar_select %p402, %s403, %s404
      %p408 = pneg %p402
      %p409 = scmp.eq.s32.totalorder %s31, 1
      %p410 = por %p408, %p409
      %p411 = scmp.ne.s32.totalorder %s403, %s406
      %p412 = scmp.eq.s32.totalorder %s31, 0
      %p413 = por %p411, %p412
      %p414 = scmp.ne.s32.totalorder %s403, %s406
      %p415 = scmp.eq.s32.totalorder %s36, 1
      %p416 = por %p414, %p415
      %p417 = scmp.ne.s32.totalorder %s406, %s407
      %p418 = scmp.eq.s32.totalorder %s36, 0
      %p419 = por %p417, %p418
      %p420 = scmp.ne.s32.totalorder %s406, %s407
      %p421 = scmp.eq.s32.totalorder %s37, 1
      %p422 = por %p420, %p421
      %p424 = scmp.ne.s32.totalorder %s407, %s423
      %p425 = scmp.eq.s32.totalorder %s37, 0
      %p426 = por %p424, %p425
      %p427 = scmp.le.s32.totalorder 1, %s31
      %p428 = scmp.lt.s32.totalorder %s31, 3
      %p429 = pnand %p427, %p428
      %p430 = pneg %p429
      // Predicated region
      $region9: #{_encoder_forward.1} parent=5 // pred_check
        _
      $region10: #{_encoder_forward.1} parent=5 // pred_check_branch
        %432 = sbr.rel (%p429) target = $region12
      $region11: #{_encoder_forward.1} parent=5 // pred_region
        %s433 = ssub.s32 %s31, 1
        // Predicated region
        $region13: #{_encoder_forward.1} parent=11 // pred_check
          %p434 = pneg %p118
        $region14: #{_encoder_forward.1} parent=11 // pred_check_branch
          %436 = sbr.rel (%p434) target = $region16
        $region15: #{_encoder_forward.1} parent=11 // pred_region
          _
        $region16: #{_encoder_forward.1} parent=11 // pred_fallthru
          _
        // Predicated region
        $region17: #{_encoder_forward.1} parent=11 // pred_check
          %p437 = pneg %p139
        $region18: #{_encoder_forward.1} parent=11 // pred_check_branch
          %439 = sbr.rel (%p437) target = $region20
        $region19: #{_encoder_forward.1} parent=11 // pred_region
          %441 = vsyncadd [#allocation6], 0
          %s443 = sshll.u32 %s3, 4
          %s444 = int_to_ptr.hbm [resolvable:$true] %s443
          %s445 = sshll.u32 [#allocation5], 4
          %s446 = int_to_ptr.vmem [resolvable:$true] %s445
          %448 = dma.hbm_to_vmem [thread:$0]  %s444, 16, %s446, [#allocation6]
        $region20: #{_encoder_forward.1} parent=11 // pred_fallthru
          _
        // Predicated region
        $region21: #{_encoder_forward.1} parent=11 // pred_check
          %p449 = pneg %p160
        $region22: #{_encoder_forward.1} parent=11 // pred_check_branch
          %451 = sbr.rel (%p449) target = $region24
        $region23: #{_encoder_forward.1} parent=11 // pred_region
          _
        $region24: #{_encoder_forward.1} parent=11 // pred_fallthru
          _
        // Predicated region
        $region25: #{_encoder_forward.1} parent=11 // pred_check
          %p452 = pneg %p181
        $region26: #{_encoder_forward.1} parent=11 // pred_check_branch
          %454 = sbr.rel (%p452) target = $region28
        $region27: #{_encoder_forward.1} parent=11 // pred_region
          %456 = vsyncadd [#allocation9], 0
          %s458 = sshll.u32 %s5, 4
          %s459 = int_to_ptr.hbm [resolvable:$true] %s458
          %s460 = sshll.u32 [#allocation8], 4
          %s461 = int_to_ptr.vmem [resolvable:$true] %s460
          %463 = dma.hbm_to_vmem [thread:$0]  %s459, 16, %s461, [#allocation9]
        $region28: #{_encoder_forward.1} parent=11 // pred_fallthru
          _
        // Predicated region
        $region29: #{_encoder_forward.1} parent=11 // pred_check
          %p464 = pneg %p202
        $region30: #{_encoder_forward.1} parent=11 // pred_check_branch
          %466 = sbr.rel (%p464) target = $region32
        $region31: #{_encoder_forward.1} parent=11 // pred_region
          _
        $region32: #{_encoder_forward.1} parent=11 // pred_fallthru
          _
        // Predicated region
        $region33: #{_encoder_forward.1} parent=11 // pred_check
          %p467 = pneg %p223
        $region34: #{_encoder_forward.1} parent=11 // pred_check_branch
          %469 = sbr.rel (%p467) target = $region36
        $region35: #{_encoder_forward.1} parent=11 // pred_region
          %471 = vsyncadd [#allocation9], 0
          %s473 = sshll.u32 %s7, 4
          %s474 = int_to_ptr.hbm [resolvable:$true] %s473
          %s475 = sshll.u32 [#allocation10], 4
          %s476 = int_to_ptr.vmem [resolvable:$true] %s475
          %478 = dma.hbm_to_vmem [thread:$0]  %s474, 16, %s476, [#allocation9]
        $region36: #{_encoder_forward.1} parent=11 // pred_fallthru
          _
        // Predicated region
        $region37: #{_encoder_forward.1} parent=11 // pred_check
          %p479 = pneg %p244
        $region38: #{_encoder_forward.1} parent=11 // pred_check_branch
          %481 = sbr.rel (%p479) target = $region40
        $region39: #{_encoder_forward.1} parent=11 // pred_region
          %483 = vsyncadd [#allocation12], 0
          %s484 = sshll.u32 %s8, 4
          %s485 = int_to_ptr.hbm [resolvable:$true] %s484
          %s486 = sshll.u32 [#allocation11], 4
          %s487 = int_to_ptr.vmem [resolvable:$true] %s486
          %492 = dma.hbm_to_vmem [thread:$0]  %s485, 256, %s487, [#allocation12], 64, 64, 4
        $region40: #{_encoder_forward.1} parent=11 // pred_fallthru
          _
        // Predicated region
        $region41: #{_encoder_forward.1} parent=11 // pred_check
          %p493 = pneg %p265
        $region42: #{_encoder_forward.1} parent=11 // pred_check_branch
          %495 = sbr.rel (%p493) target = $region44
        $region43: #{_encoder_forward.1} parent=11 // pred_region
          %497 = vsyncadd [#allocation12], 0
          %s499 = sshll.u32 %s9, 4
          %s500 = int_to_ptr.hbm [resolvable:$true] %s499
          %s501 = sshll.u32 [#allocation13], 4
          %s502 = int_to_ptr.vmem [resolvable:$true] %s501
          %504 = dma.hbm_to_vmem [thread:$0]  %s500, 16, %s502, [#allocation12]
        $region44: #{_encoder_forward.1} parent=11 // pred_fallthru
          _
        // Predicated region
        $region45: #{_encoder_forward.1} parent=11 // pred_check
          %p505 = pneg %p286
        $region46: #{_encoder_forward.1} parent=11 // pred_check_branch
          %507 = sbr.rel (%p505) target = $region48
        $region47: #{_encoder_forward.1} parent=11 // pred_region
          _
        $region48: #{_encoder_forward.1} parent=11 // pred_fallthru
          _
        // Predicated region
        $region49: #{_encoder_forward.1} parent=11 // pred_check
          %p508 = pneg %p307
        $region50: #{_encoder_forward.1} parent=11 // pred_check_branch
          %510 = sbr.rel (%p508) target = $region52
        $region51: #{_encoder_forward.1} parent=11 // pred_region
          %512 = vsyncadd [#allocation15], 0
          %s514 = sshll.u32 %s11, 4
          %s515 = int_to_ptr.hbm [resolvable:$true] %s514
          %s516 = sshll.u32 [#allocation14], 4
          %s517 = int_to_ptr.vmem [resolvable:$true] %s516
          %519 = dma.hbm_to_vmem [thread:$0]  %s515, 16, %s517, [#allocation15]
        $region52: #{_encoder_forward.1} parent=11 // pred_fallthru
          _
        // Predicated region
        $region53: #{_encoder_forward.1} parent=11 // pred_check
          %p520 = pneg %p328
        $region54: #{_encoder_forward.1} parent=11 // pred_check_branch
          %522 = sbr.rel (%p520) target = $region56
        $region55: #{_encoder_forward.1} parent=11 // pred_region
          %524 = vsyncadd [#allocation15], 0
          %s526 = sshll.u32 %s12, 4
          %s527 = int_to_ptr.hbm [resolvable:$true] %s526
          %s528 = sshll.u32 [#allocation16], 4
          %s529 = int_to_ptr.vmem [resolvable:$true] %s528
          %531 = dma.hbm_to_vmem [thread:$0]  %s527, 16, %s529, [#allocation15]
        $region56: #{_encoder_forward.1} parent=11 // pred_fallthru
          _
        // Predicated region
        $region57: #{_encoder_forward.1} parent=11 // pred_check
          %p532 = pneg %p349
        $region58: #{_encoder_forward.1} parent=11 // pred_check_branch
          %534 = sbr.rel (%p532) target = $region60
        $region59: #{_encoder_forward.1} parent=11 // pred_region
          %536 = vsyncadd [#allocation18], 0
          %s538 = sshll.u32 %s13, 4
          %s539 = int_to_ptr.hbm [resolvable:$true] %s538
          %s540 = sshll.u32 [#allocation17], 4
          %s541 = int_to_ptr.vmem [resolvable:$true] %s540
          %543 = dma.hbm_to_vmem [thread:$0]  %s539, 16, %s541, [#allocation18]
        $region60: #{_encoder_forward.1} parent=11 // pred_fallthru
          _
        // Predicated region
        $region61: #{_encoder_forward.1} parent=11 // pred_check
          %p544 = pneg %p370
        $region62: #{_encoder_forward.1} parent=11 // pred_check_branch
          %546 = sbr.rel (%p544) target = $region64
        $region63: #{_encoder_forward.1} parent=11 // pred_region
          %548 = vsyncadd [#allocation18], 0
          %s550 = sshll.u32 %s14, 4
          %s551 = int_to_ptr.hbm [resolvable:$true] %s550
          %s552 = sshll.u32 [#allocation19], 4
          %s553 = int_to_ptr.vmem [resolvable:$true] %s552
          %555 = dma.hbm_to_vmem [thread:$0]  %s551, 16, %s553, [#allocation18]
        $region64: #{_encoder_forward.1} parent=11 // pred_fallthru
          _
        // Predicated region
        $region65: #{_encoder_forward.1} parent=11 // pred_check
          %p556 = pneg %p391
        $region66: #{_encoder_forward.1} parent=11 // pred_check_branch
          %558 = sbr.rel (%p556) target = $region68
        $region67: #{_encoder_forward.1} parent=11 // pred_region
          %560 = vsyncadd [#allocation21], 0
          %s562 = sshll.u32 %s15, 4
          %s563 = int_to_ptr.hbm [resolvable:$true] %s562
          %s564 = sshll.u32 [#allocation20], 4
          %s565 = int_to_ptr.vmem [resolvable:$true] %s564
          %567 = dma.hbm_to_vmem [thread:$0]  %s563, 16, %s565, [#allocation21]
        $region68: #{_encoder_forward.1} parent=11 // pred_fallthru
          _
      $region12: #{_encoder_forward.1} parent=5 // pred_fallthru
        _
      %p568 = scmp.lt.s32.totalorder %s31, 2
      // Predicated region
      $region69: #{_encoder_forward.1} parent=5 // pred_check
        %p569 = pneg %p568
      $region70: #{_encoder_forward.1} parent=5 // pred_check_branch
        %571 = sbr.rel (%p569) target = $region72
      $region71: #{_encoder_forward.1} parent=5 // pred_region
        // Predicated region
        $region73: #{_encoder_forward.1} parent=71 // pred_check
          %p572 = pneg %p65
        $region74: #{_encoder_forward.1} parent=71 // pred_check_branch
          %574 = sbr.rel (%p572) target = $region76
        $region75: #{_encoder_forward.1} parent=71 // pred_region
          %p575 = scmp.lt.s32.totalorder %s38, 1
          %s576 = scalar_select %p575, %s38, 1
          %p577 = scmp.lt.s32.totalorder %s39, 0
          %s578 = scalar_select %p577, %s39, 0
          %s579 = sadd.s32 %s578, %s576
          %s580 = smul.addr %s579, 8
          %s581 = scalar_lea.vmem %s0, %s580
        $region76: #{_encoder_forward.1} parent=71 // pred_fallthru
          _
        // Predicated region
        $region77: #{_encoder_forward.1} parent=71 // pred_check
          %p582 = pneg %p91
        $region78: #{_encoder_forward.1} parent=71 // pred_check_branch
          %584 = sbr.rel (%p582) target = $region80
        $region79: #{_encoder_forward.1} parent=71 // pred_region
          %p585 = scmp.lt.s32.totalorder %s38, 1
          %s586 = scalar_select %p585, %s38, 1
          %s587 = smul.addr %s586, 4
          %s588 = scalar_lea.vmem %s1, %s587
        $region80: #{_encoder_forward.1} parent=71 // pred_fallthru
          _
      $region72: #{_encoder_forward.1} parent=5 // pred_fallthru
        _
      %p589 = scmp.le.s32.totalorder 1, %s31
      %p590 = scmp.lt.s32.totalorder %s31, 3
      %p591 = pnand %p589, %p590
      %p592 = pneg %p591
      // Predicated region
      $region81: #{_encoder_forward.1} parent=5 // pred_check
        _
      $region82: #{_encoder_forward.1} parent=5 // pred_check_branch
        %594 = sbr.rel (%p591) target = $region84
      $region83: #{_encoder_forward.1} parent=5 // pred_region
        %s595 = ssub.s32 %s31, 1
        // Predicated region
        $region85: #{_encoder_forward.1} parent=83 // pred_check
          %p596 = pneg %p139
        $region86: #{_encoder_forward.1} parent=83 // pred_check_branch
          %598 = sbr.rel (%p596) target = $region88
        $region87: #{_encoder_forward.1} parent=83 // pred_region
          %600 = dma.done [#allocation6], 16
        $region88: #{_encoder_forward.1} parent=83 // pred_fallthru
          _
        // Predicated region
        $region89: #{_encoder_forward.1} parent=83 // pred_check
          %p601 = pneg %p181
        $region90: #{_encoder_forward.1} parent=83 // pred_check_branch
          %603 = sbr.rel (%p601) target = $region92
        $region91: #{_encoder_forward.1} parent=83 // pred_region
          %605 = dma.done [#allocation9], 16
        $region92: #{_encoder_forward.1} parent=83 // pred_fallthru
          _
        // Predicated region
        $region93: #{_encoder_forward.1} parent=83 // pred_check
          %p606 = pneg %p223
        $region94: #{_encoder_forward.1} parent=83 // pred_check_branch
          %608 = sbr.rel (%p606) target = $region96
        $region95: #{_encoder_forward.1} parent=83 // pred_region
          %610 = dma.done [#allocation9], 16
        $region96: #{_encoder_forward.1} parent=83 // pred_fallthru
          _
        // Predicated region
        $region97: #{_encoder_forward.1} parent=83 // pred_check
          %p611 = pneg %p244
        $region98: #{_encoder_forward.1} parent=83 // pred_check_branch
          %613 = sbr.rel (%p611) target = $region100
        $region99: #{_encoder_forward.1} parent=83 // pred_region
          %615 = dma.done [#allocation12], 256
        $region100: #{_encoder_forward.1} parent=83 // pred_fallthru
          _
        // Predicated region
        $region101: #{_encoder_forward.1} parent=83 // pred_check
          %p616 = pneg %p265
        $region102: #{_encoder_forward.1} parent=83 // pred_check_branch
          %618 = sbr.rel (%p616) target = $region104
        $region103: #{_encoder_forward.1} parent=83 // pred_region
          %620 = dma.done [#allocation12], 16
        $region104: #{_encoder_forward.1} parent=83 // pred_fallthru
          _
        // Predicated region
        $region105: #{_encoder_forward.1} parent=83 // pred_check
          %p621 = pneg %p307
        $region106: #{_encoder_forward.1} parent=83 // pred_check_branch
          %623 = sbr.rel (%p621) target = $region108
        $region107: #{_encoder_forward.1} parent=83 // pred_region
          %625 = dma.done [#allocation15], 16
        $region108: #{_encoder_forward.1} parent=83 // pred_fallthru
          _
        // Predicated region
        $region109: #{_encoder_forward.1} parent=83 // pred_check
          %p626 = pneg %p328
        $region110: #{_encoder_forward.1} parent=83 // pred_check_branch
          %628 = sbr.rel (%p626) target = $region112
        $region111: #{_encoder_forward.1} parent=83 // pred_region
          %630 = dma.done [#allocation15], 16
        $region112: #{_encoder_forward.1} parent=83 // pred_fallthru
          _
        // Predicated region
        $region113: #{_encoder_forward.1} parent=83 // pred_check
          %p631 = pneg %p349
        $region114: #{_encoder_forward.1} parent=83 // pred_check_branch
          %633 = sbr.rel (%p631) target = $region116
        $region115: #{_encoder_forward.1} parent=83 // pred_region
          %635 = dma.done [#allocation18], 16
        $region116: #{_encoder_forward.1} parent=83 // pred_fallthru
          _
        // Predicated region
        $region117: #{_encoder_forward.1} parent=83 // pred_check
          %p636 = pneg %p370
        $region118: #{_encoder_forward.1} parent=83 // pred_check_branch
          %638 = sbr.rel (%p636) target = $region120
        $region119: #{_encoder_forward.1} parent=83 // pred_region
          %640 = dma.done [#allocation18], 16
        $region120: #{_encoder_forward.1} parent=83 // pred_fallthru
          _
        // Predicated region
        $region121: #{_encoder_forward.1} parent=83 // pred_check
          %p641 = pneg %p391
        $region122: #{_encoder_forward.1} parent=83 // pred_check_branch
          %643 = sbr.rel (%p641) target = $region124
        $region123: #{_encoder_forward.1} parent=83 // pred_region
          %645 = dma.done [#allocation21], 16
        $region124: #{_encoder_forward.1} parent=83 // pred_fallthru
          _
        %p646 = scmp.lt.s32.totalorder %s40, 1
        %s647 = scalar_select %p646, %s40, 1
        %p648 = scmp.lt.s32.totalorder %s41, 0
        %s649 = scalar_select %p648, %s41, 0
        %s650 = sadd.s32 %s649, %s647
        %s651 = smul.addr %s650, 8
        %s652 = scalar_lea.vmem %s0, %s651
        %p653 = pneg %p71
        %p654 = pneg %p68
        %p655 = scmp.lt.s32.totalorder %s40, 1
        %s656 = scalar_select %p655, %s40, 1
        %s657 = smul.addr %s656, 4
        %s658 = scalar_lea.vmem %s1, %s657
        %p659 = pneg %p97
        %p660 = pneg %p94
        %p661 = pneg %p118
        %p662 = pneg %p115
        %p663 = pneg %p139
        %p664 = pneg %p136
        %p665 = pneg %p160
        %p666 = pneg %p157
        %p667 = pneg %p181
        %p668 = pneg %p178
        %p669 = pneg %p202
        %p670 = pneg %p199
        %p671 = pneg %p223
        %p672 = pneg %p220
        %p673 = pneg %p244
        %p674 = pneg %p241
        %p675 = pneg %p265
        %p676 = pneg %p262
        %p677 = pneg %p286
        %p678 = pneg %p283
        %p679 = pneg %p307
        %p680 = pneg %p304
        %p681 = pneg %p328
        %p682 = pneg %p325
        %p683 = pneg %p349
        %p684 = pneg %p346
        %p685 = pneg %p370
        %p686 = pneg %p367
        %p687 = pneg %p391
        %p688 = pneg %p388
        %p689 = pneg %p419
        %p690 = pneg %p416
        %s691 = sand.u32 %s406, 1
        %s692 = scalar_lea.sflag [#allocation7], %s691
        %s693 = sand.u32 %s406, 1
        %s694 = smul.addr %s693, 8
        %s695 = scalar_lea.vmem [#allocation22], %s694
        %p696 = scmp.lt.s32.totalorder %s40, 1
        %s697 = scalar_select %p696, %s40, 1
        %p698 = scmp.lt.s32.totalorder %s41, 0
        %s699 = scalar_select %p698, %s41, 0
        %s700 = sadd.s32 %s699, %s697
        %s701 = smul.addr %s700, 8
        %s702 = scalar_lea.vmem %s0, %s701
        %p703 = scmp.lt.s32.totalorder %s40, 1
        %s704 = scalar_select %p703, %s40, 1
        %s705 = smul.addr %s704, 4
        %s706 = scalar_lea.vmem %s1, %s705
        %p708 = scmp.eq.s32.totalorder %s41, 0
        // Predicated region
        $region125: #{_encoder_forward.1} parent=83 // pred_check
          %p709 = pneg %p708
        $region126: #{_encoder_forward.1} parent=83 // pred_check_branch
          %711 = sbr.rel (%p709) target = $region128
        $region127: #{_encoder_forward.1} parent=83 // pred_region
          %v712 = vld [vmem:[%s706] sm:$0xf]
          %v713 = vld [vmem:[%s4] sm:$0xf]
          %v714 = vld [vmem:[%s4 + $0x4] sm:$0xf]
          %v715 = vld [vmem:[%s4 + $0x8] sm:$0xf]
          %v716 = vld [vmem:[%s4 + $0xc] sm:$0xf]
          %v717 = vld [vmem:[#allocation8] sm:$0x1]
          %v719 = vperm.slane %v717, 0
          %v725 = vunpack.c.l.b16 %v713
          %v726 = vunpack.c.l.b16 %v714
          %v727 = vunpack.c.l.b16 %v715
          %v728 = vunpack.c.l.b16 %v716
          %v729 = vpack.c.b16 %v726, %v725
          %v730 = vpack.c.b16 %v728, %v727
          %vm733 = vcmask 261120
          %v735 = vsel %vm733, %v712, 0
          %737 = vmatpush.bf16.msra.mxu0 0
          %738 = vmatpush.bf16.msra.mxu0 0
          %739 = vmatpush.bf16.msra.mxu0 0
          %740 = vmatpush.bf16.msra.mxu0 0
          %741 = vmatpush.bf16.msra.mxu0 0
          %742 = vmatpush.bf16.msra.mxu0 0
          %743 = vmatpush.bf16.msra.mxu0 %v730
          %744 = vmatpush.bf16.msra.mxu0 %v729
          %745 = vmatmul.bf16.gmra.mxu0 %v735
          %v746 = vpop.f32.mrf.mxu0
          %v747 = vadd.f32 %v719, %v746
          %v748 = vpop.f32.mrf.mxu0
          %749 = vdwg.mxu0
          %v750 = vpack.c.bf16 %v747, %v747
          %vm751 = vcmask 257024
          %752 = vst.msk [vmem:[#allocation2] sm:$0xf] %vm751, %v750
          %754 = vrot.lane.b32.xlu0 %v750, 96
          %v755 = vpop.permute.xlu0 %754
          %757 = vst.msk [vmem:[#allocation3] sm:$0xf] %vm751, %v755
        $region128: #{_encoder_forward.1} parent=83 // pred_fallthru
          _
        %v758 = vld [vmem:[%s702] sm:$0xff]
        %v759 = vpack.c.bf16 %v758, %v758
        %v760 = vld [vmem:[%s2] sm:$0xf]
        %v761 = vld [vmem:[%s2 + $0x4] sm:$0xf]
        %v762 = vld [vmem:[%s2 + $0x8] sm:$0xf]
        %v763 = vld [vmem:[%s2 + $0xc] sm:$0xf]
        %v764 = vld [vmem:[#allocation5] sm:$0x1]
        %v766 = vperm.slane %v764, 0
        %v772 = vunpack.c.l.b16 %v760
        %v773 = vunpack.c.l.b16 %v761
        %v774 = vunpack.c.l.b16 %v762
        %v775 = vunpack.c.l.b16 %v763
        %v776 = vpack.c.b16 %v773, %v772
        %v777 = vpack.c.b16 %v775, %v774
        %vm780 = vcmask 261120
        %v782 = vsel %vm780, %v759, 0
        %784 = vmatpush.bf16.msra.mxu0 0
        %785 = vmatpush.bf16.msra.mxu0 0
        %786 = vmatpush.bf16.msra.mxu0 0
        %787 = vmatpush.bf16.msra.mxu0 0
        %788 = vmatpush.bf16.msra.mxu0 0
        %789 = vmatpush.bf16.msra.mxu0 0
        %790 = vmatpush.bf16.msra.mxu0 %v777
        %791 = vmatpush.bf16.msra.mxu0 %v776
        %792 = vmatmul.bf16.gmra.mxu0 %v782
        %v793 = vpop.f32.mrf.mxu0
        %v794 = vadd.f32 %v766, %v793
        %v795 = vpop.f32.mrf.mxu0
        %796 = vdwg.mxu0
        %v797 = vpack.c.bf16 %v794, %v794
        %v798 = vld [vmem:[#allocation2] sm:$0xf]
        %v799 = vld [vmem:[#allocation3] sm:$0xf]
        %vm800 = vcmask 64512
        %v802 = vsel %vm800, %v797, 0
        %v805 = vsel %vm800, %v798, 0
        %807 = vmatpush.bf16.xpose.msra.mxu0 0
        %808 = vmatpush.bf16.xpose.msra.mxu0 0
        %809 = vmatpush.bf16.xpose.msra.mxu0 0
        %810 = vmatpush.bf16.xpose.msra.mxu0 0
        %811 = vmatpush.bf16.xpose.msra.mxu0 0
        %812 = vmatpush.bf16.xpose.msra.mxu0 0
        %813 = vmatpush.bf16.xpose.msra.mxu0 0
        %814 = vmatpush.bf16.xpose.msra.mxu0 %v805
        %815 = vmatmul.bf16.gmra.mxu0 %v802
        %v816 = vpop.f32.mrf.mxu0
        %v817 = vadd.f32 0.0, %v816
        %v818 = vpop.f32.mrf.mxu0
        %819 = vdwg.mxu0
        %v820 = vmul.f32 %v817, 0.35355338
        %v821 = vsel %vm800, %v820, -inf
        %822 = vmax.xlane.f32.xlu0 %v821
        %v823 = vpop.xlane.xlu0 %822
        %v824 = vsub.f32 %v820, %v823
        %v825 = vmul.f32 %v824, 1.442695
        %v826 = vpow.pop %v825
        %v827 = vsel %vm800, %v826, 0.0
        %828 = vadd.xlane.f32.xlu0 %v827
        %v829 = vpop.xlane.xlu0 %828
        %v830 = vrcp.pop %v829
        %v831 = vmul.f32 %v826, %v830
        %v832 = vpack.c.bf16 %v831, %v831
        %v834 = vsel %vm800, %v832, 0
        %vm836 = vcmask 1043456
        %v838 = vsel %vm836, %v799, 0
        %840 = vmatpush.bf16.msra.mxu0 0
        %841 = vmatpush.bf16.msra.mxu0 0
        %842 = vmatpush.bf16.msra.mxu0 0
        %843 = vmatpush.bf16.msra.mxu0 0
        %844 = vmatpush.bf16.msra.mxu0 0
        %845 = vmatpush.bf16.msra.mxu0 0
        %846 = vmatpush.bf16.msra.mxu0 0
        %847 = vmatpush.bf16.msra.mxu0 %v838
        %848 = vmatmul.bf16.gmra.mxu0 %v834
        %v849 = vpop.f32.mrf.mxu0
        %v850 = vadd.f32 0.0, %v849
        %v851 = vpop.f32.mrf.mxu0
        %852 = vdwg.mxu0
        %v853 = vpack.c.bf16 %v850, %v850
        %vm854 = vcmask 60416
        %855 = vst.msk [vmem:[#allocation4] sm:$0xf] %vm854, %v853
        %v857 = vunpack.c.l.b16 %v797
        %v858 = vpack.c.b16 %v857, %v857
        %859 = vrot.lane.b32.xlu0 %v858, 120
        %v860 = vpop.permute.xlu0 %859
        %v862 = vunpack.c.l.b16 %v798
        %v863 = vpack.c.b16 %v862, %v862
        %864 = vrot.lane.b32.xlu0 %v863, 120
        %v865 = vpop.permute.xlu0 %864
        %v867 = vsel %vm800, %v860, 0
        %v870 = vsel %vm800, %v865, 0
        %872 = vmatpush.bf16.xpose.msra.mxu0 0
        %873 = vmatpush.bf16.xpose.msra.mxu0 0
        %874 = vmatpush.bf16.xpose.msra.mxu0 0
        %875 = vmatpush.bf16.xpose.msra.mxu0 0
        %876 = vmatpush.bf16.xpose.msra.mxu0 0
        %877 = vmatpush.bf16.xpose.msra.mxu0 0
        %878 = vmatpush.bf16.xpose.msra.mxu0 0
        %879 = vmatpush.bf16.xpose.msra.mxu0 %v870
        %880 = vmatmul.bf16.gmra.mxu0 %v867
        %v881 = vpop.f32.mrf.mxu0
        %v882 = vadd.f32 0.0, %v881
        %v883 = vpop.f32.mrf.mxu0
        %884 = vdwg.mxu0
        %v885 = vmul.f32 %v882, 0.35355338
        %v886 = vsel %vm800, %v885, -inf
        %887 = vmax.xlane.f32.xlu0 %v886
        %v888 = vpop.xlane.xlu0 %887
        %v889 = vsub.f32 %v885, %v888
        %v890 = vmul.f32 %v889, 1.442695
        %v891 = vpow.pop %v890
        %v892 = vsel %vm800, %v891, 0.0
        %893 = vadd.xlane.f32.xlu0 %v892
        %v894 = vpop.xlane.xlu0 %893
        %v895 = vrcp.pop %v894
        %v896 = vmul.f32 %v891, %v895
        %v897 = vpack.c.bf16 %v896, %v896
        %v899 = vunpack.c.l.b16 %v799
        %v900 = vpack.c.b16 %v899, %v899
        %901 = vrot.lane.b32.xlu0 %v900, 120
        %v902 = vpop.permute.xlu0 %901
        %v904 = vsel %vm800, %v897, 0
        %v907 = vsel %vm836, %v902, 0
        %909 = vmatpush.bf16.msra.mxu0 0
        %910 = vmatpush.bf16.msra.mxu0 0
        %911 = vmatpush.bf16.msra.mxu0 0
        %912 = vmatpush.bf16.msra.mxu0 0
        %913 = vmatpush.bf16.msra.mxu0 0
        %914 = vmatpush.bf16.msra.mxu0 0
        %915 = vmatpush.bf16.msra.mxu0 0
        %916 = vmatpush.bf16.msra.mxu0 %v907
        %917 = vmatmul.bf16.gmra.mxu0 %v904
        %v918 = vpop.f32.mrf.mxu0
        %v919 = vadd.f32 0.0, %v918
        %v920 = vpop.f32.mrf.mxu0
        %921 = vdwg.mxu0
        %v922 = vpack.c.bf16 %v919, %v919
        %924 = vrot.lane.b32.xlu0 %v922, 8
        %v925 = vpop.permute.xlu0 %924
        %vm927 = vcmask 126016
        %928 = vst.msk [vmem:[#allocation4] sm:$0xf] %vm927, %v925
        %929 = vrot.lane.b32.xlu0 %v858, 112
        %v930 = vpop.permute.xlu0 %929
        %931 = vrot.lane.b32.xlu0 %v863, 112
        %v932 = vpop.permute.xlu0 %931
        %v934 = vsel %vm800, %v930, 0
        %v937 = vsel %vm800, %v932, 0
        %939 = vmatpush.bf16.xpose.msra.mxu0 0
        %940 = vmatpush.bf16.xpose.msra.mxu0 0
        %941 = vmatpush.bf16.xpose.msra.mxu0 0
        %942 = vmatpush.bf16.xpose.msra.mxu0 0
        %943 = vmatpush.bf16.xpose.msra.mxu0 0
        %944 = vmatpush.bf16.xpose.msra.mxu0 0
        %945 = vmatpush.bf16.xpose.msra.mxu0 0
        %946 = vmatpush.bf16.xpose.msra.mxu0 %v937
        %947 = vmatmul.bf16.gmra.mxu0 %v934
        %v948 = vpop.f32.mrf.mxu0
        %v949 = vadd.f32 0.0, %v948
        %v950 = vpop.f32.mrf.mxu0
        %951 = vdwg.mxu0
        %v952 = vmul.f32 %v949, 0.35355338
        %v953 = vsel %vm800, %v952, -inf
        %954 = vmax.xlane.f32.xlu0 %v953
        %v955 = vpop.xlane.xlu0 %954
        %v956 = vsub.f32 %v952, %v955
        %v957 = vmul.f32 %v956, 1.442695
        %v958 = vpow.pop %v957
        %v959 = vsel %vm800, %v958, 0.0
        %960 = vadd.xlane.f32.xlu0 %v959
        %v961 = vpop.xlane.xlu0 %960
        %v962 = vrcp.pop %v961
        %v963 = vmul.f32 %v958, %v962
        %v964 = vpack.c.bf16 %v963, %v963
        %965 = vrot.lane.b32.xlu0 %v900, 112
        %v966 = vpop.permute.xlu0 %965
        %v968 = vsel %vm800, %v964, 0
        %v971 = vsel %vm836, %v966, 0
        %973 = vmatpush.bf16.msra.mxu0 0
        %974 = vmatpush.bf16.msra.mxu0 0
        %975 = vmatpush.bf16.msra.mxu0 0
        %976 = vmatpush.bf16.msra.mxu0 0
        %977 = vmatpush.bf16.msra.mxu0 0
        %978 = vmatpush.bf16.msra.mxu0 0
        %979 = vmatpush.bf16.msra.mxu0 0
        %980 = vmatpush.bf16.msra.mxu0 %v971
        %981 = vmatmul.bf16.gmra.mxu0 %v968
        %v982 = vpop.f32.mrf.mxu0
        %v983 = vadd.f32 0.0, %v982
        %v984 = vpop.f32.mrf.mxu0
        %985 = vdwg.mxu0
        %v986 = vpack.c.bf16 %v983, %v983
        %988 = vrot.lane.b32.xlu0 %v986, 16
        %v989 = vpop.permute.xlu0 %988
        %vm991 = vcmask 191616
        %992 = vst.msk [vmem:[#allocation4] sm:$0xf] %vm991, %v989
        %993 = vrot.lane.b32.xlu0 %v858, 104
        %v994 = vpop.permute.xlu0 %993
        %995 = vrot.lane.b32.xlu0 %v863, 104
        %v996 = vpop.permute.xlu0 %995
        %v998 = vsel %vm800, %v994, 0
        %v1001 = vsel %vm800, %v996, 0
        %1003 = vmatpush.bf16.xpose.msra.mxu0 0
        %1004 = vmatpush.bf16.xpose.msra.mxu0 0
        %1005 = vmatpush.bf16.xpose.msra.mxu0 0
        %1006 = vmatpush.bf16.xpose.msra.mxu0 0
        %1007 = vmatpush.bf16.xpose.msra.mxu0 0
        %1008 = vmatpush.bf16.xpose.msra.mxu0 0
        %1009 = vmatpush.bf16.xpose.msra.mxu0 0
        %1010 = vmatpush.bf16.xpose.msra.mxu0 %v1001
        %1011 = vmatmul.bf16.gmra.mxu0 %v998
        %v1012 = vpop.f32.mrf.mxu0
        %v1013 = vadd.f32 0.0, %v1012
        %v1014 = vpop.f32.mrf.mxu0
        %1015 = vdwg.mxu0
        %v1016 = vmul.f32 %v1013, 0.35355338
        %v1017 = vsel %vm800, %v1016, -inf
        %1018 = vmax.xlane.f32.xlu0 %v1017
        %v1019 = vpop.xlane.xlu0 %1018
        %v1020 = vsub.f32 %v1016, %v1019
        %v1021 = vmul.f32 %v1020, 1.442695
        %v1022 = vpow.pop %v1021
        %v1023 = vsel %vm800, %v1022, 0.0
        %1024 = vadd.xlane.f32.xlu0 %v1023
        %v1025 = vpop.xlane.xlu0 %1024
        %v1026 = vrcp.pop %v1025
        %v1027 = vmul.f32 %v1022, %v1026
        %v1028 = vpack.c.bf16 %v1027, %v1027
        %1029 = vrot.lane.b32.xlu0 %v900, 104
        %v1030 = vpop.permute.xlu0 %1029
        %v1032 = vsel %vm800, %v1028, 0
        %v1035 = vsel %vm836, %v1030, 0
        %1037 = vmatpush.bf16.msra.mxu0 0
        %1038 = vmatpush.bf16.msra.mxu0 0
        %1039 = vmatpush.bf16.msra.mxu0 0
        %1040 = vmatpush.bf16.msra.mxu0 0
        %1041 = vmatpush.bf16.msra.mxu0 0
        %1042 = vmatpush.bf16.msra.mxu0 0
        %1043 = vmatpush.bf16.msra.mxu0 0
        %1044 = vmatpush.bf16.msra.mxu0 %v1035
        %1045 = vmatmul.bf16.gmra.mxu0 %v1032
        %v1046 = vpop.f32.mrf.mxu0
        %v1047 = vadd.f32 0.0, %v1046
        %v1048 = vpop.f32.mrf.mxu0
        %1049 = vdwg.mxu0
        %v1050 = vpack.c.bf16 %v1047, %v1047
        %1052 = vrot.lane.b32.xlu0 %v1050, 24
        %v1053 = vpop.permute.xlu0 %1052
        %vm1055 = vcmask 257216
        %1056 = vst.msk [vmem:[#allocation4] sm:$0xf] %vm1055, %v1053
        %v1057 = vld [vmem:[#allocation4] sm:$0xf]
        %v1058 = vld [vmem:[%s6] sm:$0xf]
        %v1059 = vld [vmem:[%s6 + $0x4] sm:$0xf]
        %v1060 = vld [vmem:[%s6 + $0x8] sm:$0xf]
        %v1061 = vld [vmem:[%s6 + $0xc] sm:$0xf]
        %v1062 = vld [vmem:[#allocation10] sm:$0x1]
        %v1064 = vperm.slane %v1062, 0
        %v1070 = vunpack.c.l.b16 %v1058
        %v1071 = vunpack.c.l.b16 %v1059
        %v1072 = vunpack.c.l.b16 %v1060
        %v1073 = vunpack.c.l.b16 %v1061
        %v1074 = vpack.c.b16 %v1071, %v1070
        %v1075 = vpack.c.b16 %v1073, %v1072
        %v1079 = vsel %vm780, %v1057, 0
        %1081 = vmatpush.bf16.msra.mxu0 0
        %1082 = vmatpush.bf16.msra.mxu0 0
        %1083 = vmatpush.bf16.msra.mxu0 0
        %1084 = vmatpush.bf16.msra.mxu0 0
        %1085 = vmatpush.bf16.msra.mxu0 0
        %1086 = vmatpush.bf16.msra.mxu0 0
        %1087 = vmatpush.bf16.msra.mxu0 %v1075
        %1088 = vmatpush.bf16.msra.mxu0 %v1074
        %1089 = vmatmul.bf16.gmra.mxu0 %v1079
        %v1090 = vpop.f32.mrf.mxu0
        %v1091 = vadd.f32 %v1064, %v1090
        %v1092 = vpop.f32.mrf.mxu0
        %1093 = vdwg.mxu0
        %v1094 = vadd.f32 %v758, %v1091
        %v1095 = vld [vmem:[#allocation16] sm:$0x1]
        %v1096 = vld [vmem:[#allocation17] sm:$0x1]
        %v1097 = vsel %vm780, %v1094, 0.0
        %1098 = vadd.xlane.f32.xlu0 %v1097
        %v1099 = vpop.xlane.xlu0 %1098
        %v1100 = vrcp.pop 32.0
        %v1101 = vmul.f32 32.0, %v1100
        %v1102 = vsub.f32 1.0, %v1101
        %v1103 = vmul.f32 %v1100, %v1102
        %v1104 = vadd.f32 %v1100, %v1103
        %vm1105 = vweird.f32 %v1100
        %v1106 = vsel %vm1105, %v1100, %v1104
        %v1107 = vmul.f32 %v1099, %v1106
        %v1108 = vsub.f32 %v1094, %v1107
        %v1109 = vmul.f32 %v1108, %v1108
        %v1110 = vsel %vm780, %v1109, 0.0
        %1111 = vadd.xlane.f32.xlu0 %v1110
        %v1112 = vpop.xlane.xlu0 %1111
        %v1113 = vmul.f32 %v1112, %v1106
        %v1114 = vadd.f32 %v1113, 1e-05
        %v1115 = vrsqrt.pop %v1114
        %v1116 = vmul.f32 %v1115, %v1114
        %v1117 = vmul.f32 %v1116, %v1115
        %v1118 = vmul.f32 0.5, %v1117
        %v1119 = vsub.f32 1.5, %v1118
        %v1120 = vmul.f32 %v1115, %v1119
        %vm1121 = vweird.f32 %v1114
        %vm1122 = vweird.f32 %v1115
        %vm1123 = vmor %vm1121, %vm1122
        %v1124 = vsel %vm1123, %v1115, %v1120
        %v1125 = vmul.f32 %v1108, %v1124
        %v1127 = vperm.slane %v1095, 0
        %v1129 = vmul.f32 %v1125, %v1127
        %v1131 = vperm.slane %v1096, 0
        %v1133 = vadd.f32 %v1129, %v1131
        %v1134 = vpack.c.bf16 %v1133, %v1133
        %v1135 = vld [vmem:[#allocation11] sm:$0xf]
        %v1136 = vld [vmem:[#allocation11 + $0x4] sm:$0xf]
        %v1137 = vld [vmem:[#allocation11 + $0x8] sm:$0xf]
        %v1138 = vld [vmem:[#allocation11 + $0xc] sm:$0xf]
        %v1139 = vld [vmem:[#allocation13] sm:$0x1]
        %v1141 = vperm.slane %v1139, 0
        %v1147 = vunpack.c.l.b16 %v1135
        %v1148 = vunpack.c.l.b16 %v1136
        %v1149 = vunpack.c.l.b16 %v1137
        %v1150 = vunpack.c.l.b16 %v1138
        %v1151 = vpack.c.b16 %v1148, %v1147
        %v1152 = vpack.c.b16 %v1150, %v1149
        %v1156 = vsel %vm780, %v1134, 0
        %1158 = vmatpush.bf16.msra.mxu0 0
        %1159 = vmatpush.bf16.msra.mxu0 0
        %1160 = vmatpush.bf16.msra.mxu0 0
        %1161 = vmatpush.bf16.msra.mxu0 0
        %1162 = vmatpush.bf16.msra.mxu0 0
        %1163 = vmatpush.bf16.msra.mxu0 0
        %1164 = vmatpush.bf16.msra.mxu0 %v1152
        %1165 = vmatpush.bf16.msra.mxu0 %v1151
        %1166 = vmatmul.bf16.gmra.mxu0 %v1156
        %v1167 = vpop.f32.mrf.mxu0
        %v1168 = vadd.f32 %v1141, %v1167
        %v1169 = vpop.f32.mrf.mxu0
        %1170 = vdwg.mxu0
        %v1171 = vmax.f32 %v1168, 0.0
        %v1172 = vpack.c.bf16 %v1171, %v1171
        %v1173 = vld [vmem:[%s10] sm:$0xf]
        %v1174 = vld [vmem:[%s10 + $0x4] sm:$0xf]
        %v1175 = vld [vmem:[%s10 + $0x8] sm:$0xf]
        %v1176 = vld [vmem:[%s10 + $0xc] sm:$0xf]
        %v1177 = vld [vmem:[%s10 + $0x10] sm:$0xf]
        %v1178 = vld [vmem:[%s10 + $0x14] sm:$0xf]
        %v1179 = vld [vmem:[%s10 + $0x18] sm:$0xf]
        %v1180 = vld [vmem:[%s10 + $0x1c] sm:$0xf]
        %v1181 = vld [vmem:[#allocation14] sm:$0x1]
        %v1183 = vperm.slane %v1181, 0
        %v1193 = vunpack.c.l.b16 %v1173
        %v1194 = vunpack.c.l.b16 %v1174
        %v1195 = vunpack.c.l.b16 %v1175
        %v1196 = vunpack.c.l.b16 %v1176
        %v1197 = vunpack.c.l.b16 %v1177
        %v1198 = vunpack.c.l.b16 %v1178
        %v1199 = vunpack.c.l.b16 %v1179
        %v1200 = vunpack.c.l.b16 %v1180
        %v1201 = vpack.c.b16 %v1194, %v1193
        %v1202 = vpack.c.b16 %v1196, %v1195
        %v1203 = vpack.c.b16 %v1198, %v1197
        %v1204 = vpack.c.b16 %v1200, %v1199
        %vm1209 = vcmask 523264
        %v1211 = vsel %vm1209, %v1172, 0
        %1213 = vmatpush.bf16.msra.mxu0 0
        %1214 = vmatpush.bf16.msra.mxu0 0
        %1215 = vmatpush.bf16.msra.mxu0 0
        %1216 = vmatpush.bf16.msra.mxu0 0
        %1217 = vmatpush.bf16.msra.mxu0 %v1204
        %1218 = vmatpush.bf16.msra.mxu0 %v1203
        %1219 = vmatpush.bf16.msra.mxu0 %v1202
        %1220 = vmatpush.bf16.msra.mxu0 %v1201
        %1221 = vmatmul.bf16.gmra.mxu0 %v1211
        %v1222 = vpop.f32.mrf.mxu0
        %v1223 = vadd.f32 %v1183, %v1222
        %v1224 = vpop.f32.mrf.mxu0
        %1225 = vdwg.mxu0
        %v1226 = vadd.f32 %v1133, %v1223
        %v1227 = vld [vmem:[#allocation19] sm:$0x1]
        %v1228 = vld [vmem:[#allocation20] sm:$0x1]
        %v1229 = vsel %vm780, %v1226, 0.0
        %1230 = vadd.xlane.f32.xlu0 %v1229
        %v1231 = vpop.xlane.xlu0 %1230
        %v1232 = vmul.f32 %v1231, %v1106
        %v1233 = vsub.f32 %v1226, %v1232
        %v1234 = vmul.f32 %v1233, %v1233
        %v1235 = vsel %vm780, %v1234, 0.0
        %1236 = vadd.xlane.f32.xlu0 %v1235
        %v1237 = vpop.xlane.xlu0 %1236
        %v1238 = vmul.f32 %v1237, %v1106
        %v1239 = vadd.f32 %v1238, 1e-05
        %v1240 = vrsqrt.pop %v1239
        %v1241 = vmul.f32 %v1240, %v1239
        %v1242 = vmul.f32 %v1241, %v1240
        %v1243 = vmul.f32 0.5, %v1242
        %v1244 = vsub.f32 1.5, %v1243
        %v1245 = vmul.f32 %v1240, %v1244
        %vm1246 = vweird.f32 %v1239
        %vm1247 = vweird.f32 %v1240
        %vm1248 = vmor %vm1246, %vm1247
        %v1249 = vsel %vm1248, %v1240, %v1245
        %v1250 = vmul.f32 %v1233, %v1249
        %v1252 = vperm.slane %v1227, 0
        %v1254 = vmul.f32 %v1250, %v1252
        %v1256 = vperm.slane %v1228, 0
        %v1258 = vadd.f32 %v1254, %v1256
        %1259 = vst.msk [vmem:[%s695] sm:$0xff] %vm780, %v1258
        %s1260 = sand.u32 %s406, 1
        %s1261 = scalar_lea.sflag [#allocation7], %s1260
        %s1262 = sand.u32 %s406, 1
        %s1263 = smul.addr %s1262, 8
        %s1264 = scalar_lea.vmem [#allocation22], %s1263
        // Predicated region
        $region129: #{_encoder_forward.1} parent=83 // pred_check
          %p1265 = pneg %p416
        $region130: #{_encoder_forward.1} parent=83 // pred_check_branch
          %1267 = sbr.rel (%p1265) target = $region132
        $region131: #{_encoder_forward.1} parent=83 // pred_region
          %1269 = vsyncadd %s1261, 0
          %s1270 = sadd.s32 %s41, %s40
          %s1271 = smul.addr %s1270, 8
          %s1272 = scalar_lea.hbm %s16, %s1271
          %s1274 = sshll.u32 %s1264, 4
          %s1275 = int_to_ptr.vmem [resolvable:$true] %s1274
          %s1276 = sshll.u32 %s1272, 4
          %s1277 = int_to_ptr.hbm [resolvable:$true] %s1276
          %1279 = dma.vmem_to_hbm [thread:$0]  %s1275, 128, %s1277, %s1261
        $region132: #{_encoder_forward.1} parent=83 // pred_fallthru
          _
      $region84: #{_encoder_forward.1} parent=5 // pred_fallthru
        _
      %p1280 = scmp.le.s32.totalorder 2, %s31
      // Predicated region
      $region133: #{_encoder_forward.1} parent=5 // pred_check
        %p1281 = pneg %p1280
      $region134: #{_encoder_forward.1} parent=5 // pred_check_branch
        %1283 = sbr.rel (%p1281) target = $region136
      $region135: #{_encoder_forward.1} parent=5 // pred_region
        %s1284 = ssub.s32 %s31, 2
        // Predicated region
        $region137: #{_encoder_forward.1} parent=135 // pred_check
          %p1285 = pneg %p422
        $region138: #{_encoder_forward.1} parent=135 // pred_check_branch
          %1287 = sbr.rel (%p1285) target = $region140
        $region139: #{_encoder_forward.1} parent=135 // pred_region
          %s1288 = sand.u32 %s407, 1
          %s1289 = scalar_lea.sflag [#allocation7], %s1288
          %s1290 = sand.u32 %s407, 1
          %s1291 = smul.addr %s1290, 8
          %s1292 = scalar_lea.vmem [#allocation22], %s1291
          %1294 = dma.done %s1289, 128
        $region140: #{_encoder_forward.1} parent=135 // pred_fallthru
          _
      $region136: #{_encoder_forward.1} parent=5 // pred_fallthru
        _
    $region6: #{_encoder_forward.1} parent=1 // loop_footer
      %s35 = sadd.s32 1, %s31
    $region7: #{_encoder_forward.1} parent=1 // loop_footer_branch
      %30 = sbr.rel target = $region3
    $region8: #{_encoder_forward.1} parent=1 // loop_exit
      _
    %1295 = vsyncpa [#allocation6], 1
    %s1296 = scalar_lea.sflag [#allocation6], 1
    %1297 = vsyncpa %s1296, 1
    %1298 = vsyncpa [#allocation9], 1
    %1299 = vsyncpa [#allocation12], 1
    %1300 = vsyncpa [#allocation15], 1
    %1301 = vsyncpa [#allocation18], 1
    %1302 = vsyncpa [#allocation21], 1
    %1303 = vsyncpa [#allocation7], 1
    %s1304 = scalar_lea.sflag [#allocation7], 1
    %1305 = vsyncpa %s1304, 1

</llo_original>
